<compile_context>
chip_gen: v7x
topology: tpu7x:2x2x1
jax: 0.10.0
libtpu: 0.0.40
codegen_flags: <defaults>
</compile_context>

<pallas_src>
import jax
import jax.numpy as jnp
from jax.experimental import pallas as pl
from jax.experimental.pallas import tpu as pltpu


# --------------------------------------------------------------------------- #
# helpers
# --------------------------------------------------------------------------- #
def _round_up(x, m):
    return ((x + m - 1) // m) * m


def _cdiv(a, b):
    return -(-a // b)


def _sublane_pack(itemsize):
    # native sublane packing: f32 -> 8, bf16 -> 16, int8/fp8 -> 32
    return {4: 8, 2: 16, 1: 32}.get(itemsize, 8)


def _vmem_capacity_bytes():
    """Generation-aware VMEM capacity (64 MiB v7x, 128 MiB v5e/v6e)."""
    try:
        cap = getattr(pltpu.get_tpu_info(), "vmem_capacity_bytes", None)
        if cap:
            return int(cap)
    except Exception:
        pass
    return 64 << 20  # conservative default (v7x per-TensorCore VMEM)


def _pick_tn(cout_p):
    """Largest multiple of 128 that divides Cout_p, capped at 512."""
    nt = cout_p // 128
    for t in range(min(nt, 4), 0, -1):
        if nt % t == 0:
            return 128 * t
    return 128


# --------------------------------------------------------------------------- #
# kernels
# --------------------------------------------------------------------------- #
def _gemm_bn_relu_kernel(a_ref, b_ref, scale_ref, shift_ref, o_ref):
    """Single-K-step im2col GEMM + folded BN + ReLU (no accumulator scratch)."""
    acc = jnp.dot(a_ref[...], b_ref[...], preferred_element_type=jnp.float32)
    y = acc * scale_ref[...] + shift_ref[...]
    o_ref[...] = jnp.maximum(y, 0.0).astype(o_ref.dtype)


def _gemm_bn_relu_acc_kernel(a_ref, b_ref, scale_ref, shift_ref, o_ref, acc_ref):
    """Multi-K-step im2col GEMM with f32 VMEM accumulator."""
    @pl.when(pl.program_id(2) == 0)
    def _():
        acc_ref[...] = jnp.zeros_like(acc_ref)

    acc_ref[...] += jnp.dot(a_ref[...], b_ref[...],
                            preferred_element_type=jnp.float32)

    @pl.when(pl.program_id(2) == pl.num_programs(2) - 1)
    def _():
        y = acc_ref[...] * scale_ref[...] + shift_ref[...]
        o_ref[...] = jnp.maximum(y, 0.0).astype(o_ref.dtype)


def _make_direct_conv_kernel(KH, KW, dil, TH, WO):
    """Implicit-GEMM conv: unrolled (kh, kw) shifted matmuls over a VMEM band.

    x_ref:     (1, TH + (KH-1)*dil, W_band, Cin) activation row-band
    w_ref:     (KH*KW, Cin, TN)                  conv weights
    scale_ref: (1, TN)  folded BN scale (f32)
    shift_ref: (1, TN)  folded BN shift (f32)
    o_ref:     (1, TH*WO, TN)                    lane-dense output tile
    """
    def kernel(x_ref, w_ref, scale_ref, shift_ref, o_ref):
        acc = None
        for kh in range(KH):
            for kw in range(KW):
                xs = x_ref[0, kh * dil:kh * dil + TH, kw * dil:kw * dil + WO, :]
                # WO is a multiple of the sublane packing, so this collapse is
                # layout-preserving (no cross-tile relayout).
                xs = xs.reshape(TH * WO, xs.shape[-1])
                part = jnp.dot(xs, w_ref[kh * KW + kw],
                               preferred_element_type=jnp.float32)
                acc = part if acc is None else acc + part
        y = acc * scale_ref[...] + shift_ref[...]
        o_ref[0] = jnp.maximum(y, 0.0).astype(o_ref.dtype)
    return kernel


# --------------------------------------------------------------------------- #
# stride==1 path: implicit GEMM (no im2col materialization in HBM)
# --------------------------------------------------------------------------- #
def _direct_conv_path(x_p, weight_oihw, scale, shift, *, N, H_out, W_out,
                      Cout, dilation, KH, KW, Cin, mm_dtype, out_dtype,
                      vmem_cap):
    itm = jnp.dtype(mm_dtype).itemsize
    oitm = jnp.dtype(out_dtype).itemsize
    pack = _sublane_pack(itm)
    halo = (KH - 1) * dilation

    Cout_p = _round_up(Cout, 128)
    TN = _pick_tn(Cout_p)
    budget = int(0.55 * vmem_cap)
    if 2 * KH * KW * Cin * TN * itm > budget // 2:
        TN = 128

    # Pad output width so the in-kernel (TH, WO, Cin)->(TH*WO, Cin) collapse is
    # layout-preserving, and pad the input accordingly.
    WO = _round_up(W_out, pack)
    W_pp = WO + (KW - 1) * dilation

    def footprint(th):
        band = (th + halo) * W_pp * Cin * itm
        wgt = KH * KW * Cin * TN * itm
        outb = th * WO * TN * oitm
        acc = th * WO * TN * 4
        tmp = th * WO * (2 * Cin * itm + TN * 4)
        return 2 * band + 2 * wgt + 2 * outb + acc + tmp + (2 << 20)

    TH = H_out
    while TH > 1 and footprint(TH) > budget:
        TH = _cdiv(TH, 2)
    if footprint(TH) > budget:
        return None  # even a single output row does not fit -> im2col fallback
    # v7x megacore: make sure there are at least 2 parallel row-band tiles.
    if N * _cdiv(H_out, TH) < 2 and H_out >= 2:
        TH = _cdiv(H_out, 2)

    n_h = _cdiv(H_out, TH)
    TH_in = TH + halo
    H_need = (n_h - 1) * TH + TH_in

    _, H_p, W_p, _ = x_p.shape
    x_p = jnp.pad(x_p, ((0, 0), (0, max(0, H_need - H_p)),
                        (0, max(0, W_pp - W_p)), (0, 0)))
    x_p = x_p[:, :H_need, :W_pp, :].astype(mm_dtype)

    if n_h == 1:
        bands = x_p                                     # no duplication at all
    else:
        bands = jnp.concatenate(
            [x_p[:, k * TH:k * TH + TH_in][:, None] for k in range(n_h)],
            axis=1).reshape(N * n_h, TH_in, W_pp, Cin)  # tiny halo overlap only

    w3 = jnp.transpose(weight_oihw, (2, 3, 1, 0)).reshape(KH * KW, Cin, Cout)
    w3 = jnp.pad(w3, ((0, 0), (0, 0), (0, Cout_p - Cout))).astype(mm_dtype)
    scale2 = jnp.pad(scale, (0, Cout_p - Cout)).reshape(1, Cout_p)
    shift2 = jnp.pad(shift, (0, Cout_p - Cout)).reshape(1, Cout_p)

    vmem_limit = int(min(0.75 * vmem_cap, max(2 * footprint(TH), 32 << 20)))

    kernel = _make_direct_conv_kernel(KH, KW, dilation, TH, WO)
    out = pl.pallas_call(
        kernel,
        out_shape=jax.ShapeDtypeStruct((N * n_h, TH * WO, Cout_p), out_dtype),
        grid_spec=pltpu.PrefetchScalarGridSpec(
            num_scalar_prefetch=0,
            grid=(N * n_h, Cout_p // TN),     # j innermost -> band fetched once
            in_specs=[
                pl.BlockSpec((1, TH_in, W_pp, Cin), lambda m, j: (m, 0, 0, 0)),
                pl.BlockSpec((KH * KW, Cin, TN), lambda m, j: (0, 0, j)),
                pl.BlockSpec((1, TN), lambda m, j: (0, j)),
                pl.BlockSpec((1, TN), lambda m, j: (0, j)),
            ],
            out_specs=pl.BlockSpec((1, TH * WO, TN), lambda m, j: (m, 0, j)),
        ),
        compiler_params=pltpu.CompilerParams(
            dimension_semantics=("parallel", "parallel"),
            vmem_limit_bytes=vmem_limit),
    )(bands, w3, scale2, shift2)

    out = out.reshape(N, n_h * TH, WO, Cout_p)[:, :H_out, :W_out, :Cout]
    return out


# --------------------------------------------------------------------------- #
# fallback path: tiled im2col GEMM (stride != 1 or oversized bands)
# --------------------------------------------------------------------------- #
def _im2col_gemm_path(x_p, weight_oihw, scale, shift, *, N, H_out, W_out,
                      Cout, stride, dilation, KH, KW, Cin, mm_dtype,
                      out_dtype, vmem_cap):
    itm = jnp.dtype(mm_dtype).itemsize
    oitm = jnp.dtype(out_dtype).itemsize
    pack = _sublane_pack(itm)

    cols = []
    for kh in range(KH):
        for kw in range(KW):
            h0, w0 = kh * dilation, kw * dilation
            cols.append(x_p[:, h0:h0 + (H_out - 1) * stride + 1:stride,
                            w0:w0 + (W_out - 1) * stride + 1:stride, :])
    a = jnp.concatenate(cols, axis=-1).reshape(
        N * H_out * W_out, KH * KW * Cin).astype(mm_dtype)
    w = jnp.transpose(weight_oihw, (2, 3, 1, 0)).reshape(
        KH * KW * Cin, Cout).astype(mm_dtype)

    M, K = a.shape
    Cout_p = _round_up(Cout, 128)
    TN = _pick_tn(Cout_p)
    K_p = _round_up(K, 128)            # lane-dense A tiles, full MXU passes
    budget = int(0.55 * vmem_cap)

    def fits(tm, tk):
        return (2 * (tm * tk + tk * TN) * itm + 2 * tm * TN * oitm
                + tm * TN * 4 + (2 << 20)) <= budget

    TM = min(1024, _round_up(M, pack))
    if M <= 2 * TM:                    # >= 2 M-tiles for the v7x megacore
        TM = max(pack, _round_up(_cdiv(M, 2), pack))
    TK = K_p                           # cover the whole K when it fits
    if not fits(TM, TK):
        nk = K_p // 128
        t = nk
        while t > 1 and not (nk % t == 0 and fits(TM, 128 * t)):
            t -= 1
        TK = 128 * t
    while not fits(TM, TK) and TM > pack:
        TM = max(pack, _round_up(TM // 2, pack))
    M_p = _round_up(M, TM)

    a = jnp.pad(a, ((0, M_p - M), (0, K_p - K)))
    w = jnp.pad(w, ((0, K_p - K), (0, Cout_p - Cout)))
    scale2 = jnp.pad(scale, (0, Cout_p - Cout)).reshape(1, Cout_p)
    shift2 = jnp.pad(shift, (0, Cout_p - Cout)).reshape(1, Cout_p)

    needed = (2 * (TM * TK + TK * TN) * itm + 2 * TM * TN * oitm
              + TM * TN * 4 + (2 << 20))
    vmem_limit = int(min(0.75 * vmem_cap, max(2 * needed, 32 << 20)))
    k_steps = K_p // TK

    if k_steps == 1:
        grid_spec = pltpu.PrefetchScalarGridSpec(
            num_scalar_prefetch=0,
            grid=(M_p // TM, Cout_p // TN),
            in_specs=[
                pl.BlockSpec((TM, TK), lambda i, j: (i, 0)),
                pl.BlockSpec((TK, TN), lambda i, j: (0, j)),
                pl.BlockSpec((1, TN), lambda i, j: (0, j)),
                pl.BlockSpec((1, TN), lambda i, j: (0, j)),
            ],
            out_specs=pl.BlockSpec((TM, TN), lambda i, j: (i, j)),
        )
        kernel = _gemm_bn_relu_kernel
        dims = ("parallel", "parallel")
    else:
        grid_spec = pltpu.PrefetchScalarGridSpec(
            num_scalar_prefetch=0,
            grid=(M_p // TM, Cout_p // TN, k_steps),
            in_specs=[
                pl.BlockSpec((TM, TK), lambda i, j, k: (i, k)),
                pl.BlockSpec((TK, TN), lambda i, j, k: (k, j)),
                pl.BlockSpec((1, TN), lambda i, j, k: (0, j)),
                pl.BlockSpec((1, TN), lambda i, j, k: (0, j)),
            ],
            out_specs=pl.BlockSpec((TM, TN), lambda i, j, k: (i, j)),
            scratch_shapes=[pltpu.VMEM((TM, TN), jnp.float32)],
        )
        kernel = _gemm_bn_relu_acc_kernel
        dims = ("parallel", "parallel", "arbitrary")

    out = pl.pallas_call(
        kernel,
        out_shape=jax.ShapeDtypeStruct((M_p, Cout_p), out_dtype),
        grid_spec=grid_spec,
        compiler_params=pltpu.CompilerParams(
            dimension_semantics=dims, vmem_limit_bytes=vmem_limit),
    )(a, w, scale2, shift2)

    return out[:M, :Cout].reshape(N, H_out, W_out, Cout)


# --------------------------------------------------------------------------- #
# public forward
# --------------------------------------------------------------------------- #
def conv_module_forward(x_nchw, weight_oihw, gamma, beta, running_mean,
                        running_var, *, stride=1, padding=0, dilation=1,
                        eps=1e-5, matmul_dtype=None):
    """Conv2d(bias=False) -> BatchNorm2d (inference stats) -> ReLU.

    matmul_dtype: optional numerics policy (e.g. jnp.bfloat16) for the matmul
    operands; accumulation is always f32 and BN scale/shift stay f32.
    """
    N, Cin, H, W = x_nchw.shape
    Cout, _, KH, KW = weight_oihw.shape
    H_out = (H + 2 * padding - dilation * (KH - 1) - 1) // stride + 1
    W_out = (W + 2 * padding - dilation * (KW - 1) - 1) // stride + 1

    out_dtype = x_nchw.dtype
    mm_dtype = (jnp.dtype(matmul_dtype) if matmul_dtype is not None
                else jnp.dtype(out_dtype))

    # NCHW -> NHWC + spatial zero-pad.
    x_p = jnp.transpose(x_nchw, (0, 2, 3, 1))
    x_p = jnp.pad(x_p, ((0, 0), (padding, padding), (padding, padding), (0, 0)))

    # Fold BatchNorm (inference) into per-channel scale/shift.
    scale = (gamma / jnp.sqrt(running_var + eps)).astype(jnp.float32)
    shift = (beta - running_mean * scale).astype(jnp.float32)

    vmem_cap = _vmem_capacity_bytes()
    common = dict(N=N, H_out=H_out, W_out=W_out, Cout=Cout, dilation=dilation,
                  KH=KH, KW=KW, Cin=Cin, mm_dtype=mm_dtype,
                  out_dtype=out_dtype, vmem_cap=vmem_cap)

    out_nhwc = None
    if stride == 1:
        try:
            out_nhwc = _direct_conv_path(x_p, weight_oihw, scale, shift,
                                         **common)
        except Exception:
            out_nhwc = None  # conservative portability net -> im2col GEMM
    if out_nhwc is None:
        out_nhwc = _im2col_gemm_path(x_p, weight_oihw, scale, shift,
                                     stride=stride, **common)
    return jnp.transpose(out_nhwc, (0, 3, 1, 2))


# --------------------------------------------------------------------------- #
# reference + self-test
# --------------------------------------------------------------------------- #
def _reference(x_nchw, weight_oihw, gamma, beta, mean, var, *, stride, padding,
               dilation, eps=1e-5):
    y = jax.lax.conv_general_dilated(
        x_nchw, weight_oihw,
        window_strides=(stride, stride),
        padding=((padding, padding), (padding, padding)),
        rhs_dilation=(dilation, dilation),
        dimension_numbers=("NCHW", "OIHW", "NCHW"))
    y = (y - mean[None, :, None, None]) / jnp.sqrt(var[None, :, None, None] + eps)
    y = y * gamma[None, :, None, None] + beta[None, :, None, None]
    return jnp.maximum(y, 0.0)


if __name__ == "__main__":
    key = jax.random.PRNGKey(0)
    kx, kw, kg, kb, km, kv = jax.random.split(key, 6)

    # ConvModule(in_dim=4, out_dim=8, kernel_size=3, stride=1, padding=1)
    N, Cin, H, W = 2, 4, 16, 16
    Cout, Ksz = 8, 3

    x = jax.random.normal(kx, (N, Cin, H, W), dtype=jnp.float32)
    weight = jax.random.normal(kw, (Cout, Cin, Ksz, Ksz), dtype=jnp.float32) * 0.1
    gamma = 1.0 + 0.1 * jax.random.normal(kg, (Cout,), dtype=jnp.float32)
    beta = 0.1 * jax.random.normal(kb, (Cout,), dtype=jnp.float32)
    running_mean = 0.1 * jax.random.normal(km, (Cout,), dtype=jnp.float32)
    running_var = jnp.abs(1.0 + 0.1 * jax.random.normal(kv, (Cout,),
                                                        dtype=jnp.float32))

    # 1) stride=1 (the module's default config): implicit-GEMM path.
    out1 = conv_module_forward(x, weight, gamma, beta, running_mean,
                               running_var, stride=1, padding=1, dilation=1)
    out1 = jax.block_until_ready(out1)
    ref1 = _reference(x, weight, gamma, beta, running_mean, running_var,
                      stride=1, padding=1, dilation=1)
    assert out1.shape == (N, Cout, H, W)
    assert jnp.allclose(out1, ref1, atol=1e-4, rtol=1e-4)

    # 2) stride=2: exercises the tiled im2col GEMM fallback path.
    out2 = conv_module_forward(x, weight, gamma, beta, running_mean,
                               running_var, stride=2, padding=1, dilation=1)
    out2 = jax.block_until_ready(out2)
    ref2 = _reference(x, weight, gamma, beta, running_mean, running_var,
                      stride=2, padding=1, dilation=1)
    assert out2.shape == ref2.shape
    assert jnp.allclose(out2, ref2, atol=1e-4, rtol=1e-4)

    print("KERNEL_OK")
</pallas_src>

<mosaic_0001>
module attributes {stable_mosaic.version = 11 : i64} {
  func.func @kernel(%arg0: i32, %arg1: i32, %arg2: memref<1x18x18x4xf32, #tpu.memory_space<vmem>>, %arg3: memref<9x4x128xf32, #tpu.memory_space<vmem>>, %arg4: memref<1x128xf32, #tpu.memory_space<vmem>>, %arg5: memref<1x128xf32, #tpu.memory_space<vmem>>, %arg6: memref<1x256x128xf32, #tpu.memory_space<vmem>>) attributes {dimension_semantics = [#tpu.dimension_semantics<parallel>, #tpu.dimension_semantics<parallel>], iteration_bounds = array<i64: 2, 1>, scalar_prefetch = 0 : i64, scratch_operands = 0 : i64, tpu.core_type = #tpu.core_type<tc>, window_params = [{transform_indices = @transform_0, window_bounds = array<i64: 1, 18, 18, 4>}, {transform_indices = @transform_1, window_bounds = array<i64: 9, 4, 128>}, {transform_indices = @transform_2, window_bounds = array<i64: 1, 128>}, {transform_indices = @transform_3, window_bounds = array<i64: 1, 128>}, {transform_indices = @transform_4, window_bounds = array<i64: 1, 256, 128>}]} {
    %c0 = arith.constant 0 : index
    %c0_0 = arith.constant 0 : index
    %c0_1 = arith.constant 0 : index
    %c0_2 = arith.constant 0 : index
    %0 = vector.load %arg2[%c0, %c0_0, %c0_1, %c0_2] : memref<1x18x18x4xf32, #tpu.memory_space<vmem>>, vector<1x16x16x4xf32>
    %1 = vector.shape_cast %0 : vector<1x16x16x4xf32> to vector<16x16x4xf32>
    %2 = vector.shape_cast %1 : vector<16x16x4xf32> to vector<256x4xf32>
    %c0_3 = arith.constant 0 : index
    %c0_4 = arith.constant 0 : index
    %c0_5 = arith.constant 0 : index
    %3 = vector.load %arg3[%c0_3, %c0_4, %c0_5] : memref<9x4x128xf32, #tpu.memory_space<vmem>>, vector<1x4x128xf32>
    %4 = vector.shape_cast %3 : vector<1x4x128xf32> to vector<4x128xf32>
    %cst = arith.constant dense<0.000000e+00> : vector<256x128xf32>
    %5 = tpu.matmul %2, %4, %cst {dimension_numbers = #tpu.dot_dimension_numbers<[1], [0], [0], [1], [0, 0, 1, 1], [], []>} : vector<256x4xf32>, vector<4x128xf32>, vector<256x128xf32> -> vector<256x128xf32>
    %c0_6 = arith.constant 0 : index
    %c0_7 = arith.constant 0 : index
    %c1 = arith.constant 1 : index
    %c0_8 = arith.constant 0 : index
    %6 = vector.load %arg2[%c0_6, %c0_7, %c1, %c0_8] : memref<1x18x18x4xf32, #tpu.memory_space<vmem>>, vector<1x16x16x4xf32>
    %7 = vector.shape_cast %6 : vector<1x16x16x4xf32> to vector<16x16x4xf32>
    %8 = vector.shape_cast %7 : vector<16x16x4xf32> to vector<256x4xf32>
    %c1_9 = arith.constant 1 : index
    %c0_10 = arith.constant 0 : index
    %c0_11 = arith.constant 0 : index
    %9 = vector.load %arg3[%c1_9, %c0_10, %c0_11] : memref<9x4x128xf32, #tpu.memory_space<vmem>>, vector<1x4x128xf32>
    %10 = vector.shape_cast %9 : vector<1x4x128xf32> to vector<4x128xf32>
    %cst_12 = arith.constant dense<0.000000e+00> : vector<256x128xf32>
    %11 = tpu.matmul %8, %10, %cst_12 {dimension_numbers = #tpu.dot_dimension_numbers<[1], [0], [0], [1], [0, 0, 1, 1], [], []>} : vector<256x4xf32>, vector<4x128xf32>, vector<256x128xf32> -> vector<256x128xf32>
    %12 = arith.addf %5, %11 : vector<256x128xf32>
    %c0_13 = arith.constant 0 : index
    %c0_14 = arith.constant 0 : index
    %c2 = arith.constant 2 : index
    %c0_15 = arith.constant 0 : index
    %13 = vector.load %arg2[%c0_13, %c0_14, %c2, %c0_15] : memref<1x18x18x4xf32, #tpu.memory_space<vmem>>, vector<1x16x16x4xf32>
    %14 = vector.shape_cast %13 : vector<1x16x16x4xf32> to vector<16x16x4xf32>
    %15 = vector.shape_cast %14 : vector<16x16x4xf32> to vector<256x4xf32>
    %c2_16 = arith.constant 2 : index
    %c0_17 = arith.constant 0 : index
    %c0_18 = arith.constant 0 : index
    %16 = vector.load %arg3[%c2_16, %c0_17, %c0_18] : memref<9x4x128xf32, #tpu.memory_space<vmem>>, vector<1x4x128xf32>
    %17 = vector.shape_cast %16 : vector<1x4x128xf32> to vector<4x128xf32>
    %cst_19 = arith.constant dense<0.000000e+00> : vector<256x128xf32>
    %18 = tpu.matmul %15, %17, %cst_19 {dimension_numbers = #tpu.dot_dimension_numbers<[1], [0], [0], [1], [0, 0, 1, 1], [], []>} : vector<256x4xf32>, vector<4x128xf32>, vector<256x128xf32> -> vector<256x128xf32>
    %19 = arith.addf %12, %18 : vector<256x128xf32>
    %c0_20 = arith.constant 0 : index
    %c1_21 = arith.constant 1 : index
    %c0_22 = arith.constant 0 : index
    %c0_23 = arith.constant 0 : index
    %20 = vector.load %arg2[%c0_20, %c1_21, %c0_22, %c0_23] : memref<1x18x18x4xf32, #tpu.memory_space<vmem>>, vector<1x16x16x4xf32>
    %21 = vector.shape_cast %20 : vector<1x16x16x4xf32> to vector<16x16x4xf32>
    %22 = vector.shape_cast %21 : vector<16x16x4xf32> to vector<256x4xf32>
    %c3 = arith.constant 3 : index
    %c0_24 = arith.constant 0 : index
    %c0_25 = arith.constant 0 : index
    %23 = vector.load %arg3[%c3, %c0_24, %c0_25] : memref<9x4x128xf32, #tpu.memory_space<vmem>>, vector<1x4x128xf32>
    %24 = vector.shape_cast %23 : vector<1x4x128xf32> to vector<4x128xf32>
    %cst_26 = arith.constant dense<0.000000e+00> : vector<256x128xf32>
    %25 = tpu.matmul %22, %24, %cst_26 {dimension_numbers = #tpu.dot_dimension_numbers<[1], [0], [0], [1], [0, 0, 1, 1], [], []>} : vector<256x4xf32>, vector<4x128xf32>, vector<256x128xf32> -> vector<256x128xf32>
    %26 = arith.addf %19, %25 : vector<256x128xf32>
    %c0_27 = arith.constant 0 : index
    %c1_28 = arith.constant 1 : index
    %c1_29 = arith.constant 1 : index
    %c0_30 = arith.constant 0 : index
    %27 = vector.load %arg2[%c0_27, %c1_28, %c1_29, %c0_30] : memref<1x18x18x4xf32, #tpu.memory_space<vmem>>, vector<1x16x16x4xf32>
    %28 = vector.shape_cast %27 : vector<1x16x16x4xf32> to vector<16x16x4xf32>
    %29 = vector.shape_cast %28 : vector<16x16x4xf32> to vector<256x4xf32>
    %c4 = arith.constant 4 : index
    %c0_31 = arith.constant 0 : index
    %c0_32 = arith.constant 0 : index
    %30 = vector.load %arg3[%c4, %c0_31, %c0_32] : memref<9x4x128xf32, #tpu.memory_space<vmem>>, vector<1x4x128xf32>
    %31 = vector.shape_cast %30 : vector<1x4x128xf32> to vector<4x128xf32>
    %cst_33 = arith.constant dense<0.000000e+00> : vector<256x128xf32>
    %32 = tpu.matmul %29, %31, %cst_33 {dimension_numbers = #tpu.dot_dimension_numbers<[1], [0], [0], [1], [0, 0, 1, 1], [], []>} : vector<256x4xf32>, vector<4x128xf32>, vector<256x128xf32> -> vector<256x128xf32>
    %33 = arith.addf %26, %32 : vector<256x128xf32>
    %c0_34 = arith.constant 0 : index
    %c1_35 = arith.constant 1 : index
    %c2_36 = arith.constant 2 : index
    %c0_37 = arith.constant 0 : index
    %34 = vector.load %arg2[%c0_34, %c1_35, %c2_36, %c0_37] : memref<1x18x18x4xf32, #tpu.memory_space<vmem>>, vector<1x16x16x4xf32>
    %35 = vector.shape_cast %34 : vector<1x16x16x4xf32> to vector<16x16x4xf32>
    %36 = vector.shape_cast %35 : vector<16x16x4xf32> to vector<256x4xf32>
    %c5 = arith.constant 5 : index
    %c0_38 = arith.constant 0 : index
    %c0_39 = arith.constant 0 : index
    %37 = vector.load %arg3[%c5, %c0_38, %c0_39] : memref<9x4x128xf32, #tpu.memory_space<vmem>>, vector<1x4x128xf32>
    %38 = vector.shape_cast %37 : vector<1x4x128xf32> to vector<4x128xf32>
    %cst_40 = arith.constant dense<0.000000e+00> : vector<256x128xf32>
    %39 = tpu.matmul %36, %38, %cst_40 {dimension_numbers = #tpu.dot_dimension_numbers<[1], [0], [0], [1], [0, 0, 1, 1], [], []>} : vector<256x4xf32>, vector<4x128xf32>, vector<256x128xf32> -> vector<256x128xf32>
    %40 = arith.addf %33, %39 : vector<256x128xf32>
    %c0_41 = arith.constant 0 : index
    %c2_42 = arith.constant 2 : index
    %c0_43 = arith.constant 0 : index
    %c0_44 = arith.constant 0 : index
    %41 = vector.load %arg2[%c0_41, %c2_42, %c0_43, %c0_44] : memref<1x18x18x4xf32, #tpu.memory_space<vmem>>, vector<1x16x16x4xf32>
    %42 = vector.shape_cast %41 : vector<1x16x16x4xf32> to vector<16x16x4xf32>
    %43 = vector.shape_cast %42 : vector<16x16x4xf32> to vector<256x4xf32>
    %c6 = arith.constant 6 : index
    %c0_45 = arith.constant 0 : index
    %c0_46 = arith.constant 0 : index
    %44 = vector.load %arg3[%c6, %c0_45, %c0_46] : memref<9x4x128xf32, #tpu.memory_space<vmem>>, vector<1x4x128xf32>
    %45 = vector.shape_cast %44 : vector<1x4x128xf32> to vector<4x128xf32>
    %cst_47 = arith.constant dense<0.000000e+00> : vector<256x128xf32>
    %46 = tpu.matmul %43, %45, %cst_47 {dimension_numbers = #tpu.dot_dimension_numbers<[1], [0], [0], [1], [0, 0, 1, 1], [], []>} : vector<256x4xf32>, vector<4x128xf32>, vector<256x128xf32> -> vector<256x128xf32>
    %47 = arith.addf %40, %46 : vector<256x128xf32>
    %c0_48 = arith.constant 0 : index
    %c2_49 = arith.constant 2 : index
    %c1_50 = arith.constant 1 : index
    %c0_51 = arith.constant 0 : index
    %48 = vector.load %arg2[%c0_48, %c2_49, %c1_50, %c0_51] : memref<1x18x18x4xf32, #tpu.memory_space<vmem>>, vector<1x16x16x4xf32>
    %49 = vector.shape_cast %48 : vector<1x16x16x4xf32> to vector<16x16x4xf32>
    %50 = vector.shape_cast %49 : vector<16x16x4xf32> to vector<256x4xf32>
    %c7 = arith.constant 7 : index
    %c0_52 = arith.constant 0 : index
    %c0_53 = arith.constant 0 : index
    %51 = vector.load %arg3[%c7, %c0_52, %c0_53] : memref<9x4x128xf32, #tpu.memory_space<vmem>>, vector<1x4x128xf32>
    %52 = vector.shape_cast %51 : vector<1x4x128xf32> to vector<4x128xf32>
    %cst_54 = arith.constant dense<0.000000e+00> : vector<256x128xf32>
    %53 = tpu.matmul %50, %52, %cst_54 {dimension_numbers = #tpu.dot_dimension_numbers<[1], [0], [0], [1], [0, 0, 1, 1], [], []>} : vector<256x4xf32>, vector<4x128xf32>, vector<256x128xf32> -> vector<256x128xf32>
    %54 = arith.addf %47, %53 : vector<256x128xf32>
    %c0_55 = arith.constant 0 : index
    %c2_56 = arith.constant 2 : index
    %c2_57 = arith.constant 2 : index
    %c0_58 = arith.constant 0 : index
    %55 = vector.load %arg2[%c0_55, %c2_56, %c2_57, %c0_58] : memref<1x18x18x4xf32, #tpu.memory_space<vmem>>, vector<1x16x16x4xf32>
    %56 = vector.shape_cast %55 : vector<1x16x16x4xf32> to vector<16x16x4xf32>
    %57 = vector.shape_cast %56 : vector<16x16x4xf32> to vector<256x4xf32>
    %c8 = arith.constant 8 : index
    %c0_59 = arith.constant 0 : index
    %c0_60 = arith.constant 0 : index
    %58 = vector.load %arg3[%c8, %c0_59, %c0_60] : memref<9x4x128xf32, #tpu.memory_space<vmem>>, vector<1x4x128xf32>
    %59 = vector.shape_cast %58 : vector<1x4x128xf32> to vector<4x128xf32>
    %cst_61 = arith.constant dense<0.000000e+00> : vector<256x128xf32>
    %60 = tpu.matmul %57, %59, %cst_61 {dimension_numbers = #tpu.dot_dimension_numbers<[1], [0], [0], [1], [0, 0, 1, 1], [], []>} : vector<256x4xf32>, vector<4x128xf32>, vector<256x128xf32> -> vector<256x128xf32>
    %61 = arith.addf %54, %60 : vector<256x128xf32>
    %c0_62 = arith.constant 0 : index
    %c0_63 = arith.constant 0 : index
    %62 = vector.load %arg4[%c0_62, %c0_63] : memref<1x128xf32, #tpu.memory_space<vmem>>, vector<1x128xf32>
    %63 = vector.broadcast %62 : vector<1x128xf32> to vector<256x128xf32>
    %64 = arith.mulf %61, %63 : vector<256x128xf32>
    %c0_64 = arith.constant 0 : index
    %c0_65 = arith.constant 0 : index
    %65 = vector.load %arg5[%c0_64, %c0_65] : memref<1x128xf32, #tpu.memory_space<vmem>>, vector<1x128xf32>
    %66 = vector.broadcast %65 : vector<1x128xf32> to vector<256x128xf32>
    %67 = arith.addf %64, %66 : vector<256x128xf32>
    %cst_66 = arith.constant 0.000000e+00 : f32
    %68 = vector.broadcast %cst_66 : f32 to vector<256x128xf32>
    %69 = arith.maximumf %67, %68 : vector<256x128xf32>
    %c0_67 = arith.constant 0 : index
    %c0_68 = arith.constant 0 : index
    %c0_69 = arith.constant 0 : index
    %70 = vector.load %arg6[%c0_67, %c0_68, %c0_69] : memref<1x256x128xf32, #tpu.memory_space<vmem>>, vector<1x256x128xf32>
    %71 = vector.shape_cast %70 : vector<1x256x128xf32> to vector<256x128xf32>
    %72 = vector.shape_cast %69 : vector<256x128xf32> to vector<1x256x128xf32>
    tpu.vector_store %arg6[%c0_67, %c0_68, %c0_69], %72 {strides = array<i32>} : memref<1x256x128xf32, #tpu.memory_space<vmem>>, vector<1x256x128xf32>,
    return
  }
  func.func @transform_0(%arg0: i32, %arg1: i32) -> (i32, i32, i32, i32) {
    %c0_i32 = arith.constant 0 : i32
    %c0_i32_0 = arith.constant 0 : i32
    %c0_i32_1 = arith.constant 0 : i32
    %c0_i32_2 = arith.constant 0 : i32
    return %arg0, %c0_i32, %c0_i32_0, %c0_i32_1 : i32, i32, i32, i32
  }
  func.func @transform_1(%arg0: i32, %arg1: i32) -> (i32, i32, i32) {
    %c0_i32 = arith.constant 0 : i32
    %c0_i32_0 = arith.constant 0 : i32
    %c0_i32_1 = arith.constant 0 : i32
    return %c0_i32, %c0_i32_0, %arg1 : i32, i32, i32
  }
  func.func @transform_2(%arg0: i32, %arg1: i32) -> (i32, i32) {
    %c0_i32 = arith.constant 0 : i32
    %c0_i32_0 = arith.constant 0 : i32
    return %c0_i32, %arg1 : i32, i32
  }
  func.func @transform_3(%arg0: i32, %arg1: i32) -> (i32, i32) {
    %c0_i32 = arith.constant 0 : i32
    %c0_i32_0 = arith.constant 0 : i32
    return %c0_i32, %arg1 : i32, i32
  }
  func.func @transform_4(%arg0: i32, %arg1: i32) -> (i32, i32, i32) {
    %c0_i32 = arith.constant 0 : i32
    %c0_i32_0 = arith.constant 0 : i32
    return %arg0, %c0_i32, %arg1 : i32, i32, i32
  }
}

module attributes {stable_mosaic.version = 11 : i64} {
  func.func @_gemm_bn_relu_kernel(%arg0: i32, %arg1: i32, %arg2: memref<256x128xf32, #tpu.memory_space<vmem>>, %arg3: memref<128x128xf32, #tpu.memory_space<vmem>>, %arg4: memref<1x128xf32, #tpu.memory_space<vmem>>, %arg5: memref<1x128xf32, #tpu.memory_space<vmem>>, %arg6: memref<256x128xf32, #tpu.memory_space<vmem>>) attributes {dimension_semantics = [#tpu.dimension_semantics<parallel>, #tpu.dimension_semantics<parallel>], iteration_bounds = array<i64: 2, 1>, scalar_prefetch = 0 : i64, scratch_operands = 0 : i64, tpu.core_type = #tpu.core_type<tc>, window_params = [{transform_indices = @transform_0, window_bounds = array<i64: 256, 128>}, {transform_indices = @transform_1, window_bounds = array<i64: 128, 128>}, {transform_indices = @transform_2, window_bounds = array<i64: 1, 128>}, {transform_indices = @transform_3, window_bounds = array<i64: 1, 128>}, {transform_indices = @transform_4, window_bounds = array<i64: 256, 128>}]} {
    %c0 = arith.constant 0 : index
    %c0_0 = arith.constant 0 : index
    %0 = vector.load %arg2[%c0, %c0_0] : memref<256x128xf32, #tpu.memory_space<vmem>>, vector<256x128xf32>
    %c0_1 = arith.constant 0 : index
    %c0_2 = arith.constant 0 : index
    %1 = vector.load %arg3[%c0_1, %c0_2] : memref<128x128xf32, #tpu.memory_space<vmem>>, vector<128x128xf32>
    %cst = arith.constant dense<0.000000e+00> : vector<256x128xf32>
    %2 = tpu.matmul %0, %1, %cst {dimension_numbers = #tpu.dot_dimension_numbers<[1], [0], [0], [1], [0, 0, 1, 1], [], []>} : vector<256x128xf32>, vector<128x128xf32>, vector<256x128xf32> -> vector<256x128xf32>
    %c0_3 = arith.constant 0 : index
    %c0_4 = arith.constant 0 : index
    %3 = vector.load %arg4[%c0_3, %c0_4] : memref<1x128xf32, #tpu.memory_space<vmem>>, vector<1x128xf32>
    %4 = vector.broadcast %3 : vector<1x128xf32> to vector<256x128xf32>
    %5 = arith.mulf %2, %4 : vector<256x128xf32>
    %c0_5 = arith.constant 0 : index
    %c0_6 = arith.constant 0 : index
    %6 = vector.load %arg5[%c0_5, %c0_6] : memref<1x128xf32, #tpu.memory_space<vmem>>, vector<1x128xf32>
    %7 = vector.broadcast %6 : vector<1x128xf32> to vector<256x128xf32>
    %8 = arith.addf %5, %7 : vector<256x128xf32>
    %cst_7 = arith.constant 0.000000e+00 : f32
    %9 = vector.broadcast %cst_7 : f32 to vector<256x128xf32>
    %10 = arith.maximumf %8, %9 : vector<256x128xf32>
    %c0_8 = arith.constant 0 : index
    %c0_9 = arith.constant 0 : index
    %11 = vector.load %arg6[%c0_8, %c0_9] : memref<256x128xf32, #tpu.memory_space<vmem>>, vector<256x128xf32>
    tpu.vector_store %arg6[%c0_8, %c0_9], %10 {strides = array<i32>} : memref<256x128xf32, #tpu.memory_space<vmem>>, vector<256x128xf32>,
    return
  }
  func.func @transform_0(%arg0: i32, %arg1: i32) -> (i32, i32) {
    %c0_i32 = arith.constant 0 : i32
    %c0_i32_0 = arith.constant 0 : i32
    return %arg0, %c0_i32 : i32, i32
  }
  func.func @transform_1(%arg0: i32, %arg1: i32) -> (i32, i32) {
    %c0_i32 = arith.constant 0 : i32
    %c0_i32_0 = arith.constant 0 : i32
    return %c0_i32, %arg1 : i32, i32
  }
  func.func @transform_2(%arg0: i32, %arg1: i32) -> (i32, i32) {
    %c0_i32 = arith.constant 0 : i32
    %c0_i32_0 = arith.constant 0 : i32
    return %c0_i32, %arg1 : i32, i32
  }
  func.func @transform_3(%arg0: i32, %arg1: i32) -> (i32, i32) {
    %c0_i32 = arith.constant 0 : i32
    %c0_i32_0 = arith.constant 0 : i32
    return %c0_i32, %arg1 : i32, i32
  }
  func.func @transform_4(%arg0: i32, %arg1: i32) -> (i32, i32) {
    %c0_i32 = arith.constant 0 : i32
    return %arg0, %arg1 : i32, i32
  }
}

</mosaic_0001>

<llo_original>
// kernel: tpu_custom_call.1
$region0: #{tpu_custom_call.1}
  #allocation0 [shape = 'u32[]', space=smem, size = 0x4, offset = 0x4, fixed_abs, tag = 'smem constant byte address 0x4 - core index']
  #allocation1 [shape = 'u32[144,128]{1,0:T(1,128)}', space=vmem, size = 0x12000, scoped, tag = 'internal scratch']
  %s0 = inlined_call_operand.vmem [shape: f32[2,18,18,4], index: 0, kind: input, shape index: {}]
  %s1 = inlined_call_operand.vmem [shape: f32[9,4,128], index: 1, kind: input, shape index: {}]
  %s2 = inlined_call_operand.vmem [shape: f32[1,128], index: 2, kind: input, shape index: {}]
  %s3 = inlined_call_operand.vmem [shape: f32[1,128], index: 3, kind: input, shape index: {}]
  %s4 = inlined_call_operand.hbm [shape: f32[2,256,128], index: 4, kind: output, shape index: {}]
  %s5 = sld [smem:[#allocation0]]
  $region49: #{tpu_custom_call.1} parent=0
    _
  %s7 = ssub.s32 1, %s5
  %s8 = scalar_select 0, %s7, %s5
  $region1: #{tpu_custom_call.1} parent=0
    #allocation2 [shape = 'u8[262144]{0}', space=vmem, size = 0x40000, scoped, tag = 'output window, operand 0']
    #allocation3 [shape = 's32[2]{0}', space=sflag, size = 0x8, scoped, tag = 'scoped memory for tpu_custom_call.1']
    %9 = vsyncpa [#allocation3], 0
    %s10 = scalar_lea.sflag [#allocation3], 1
    %11 = vsyncpa %s10, 0
    loop: start=0, step=1, limit=4
    $region2: #{tpu_custom_call.1} parent=1 // loop_pre_header
      _
    $region3: #{tpu_custom_call.1} parent=1 // loop_header
      %s13 = sphi 0, %s17
      %p14 = scmp.ge.s32.totalorder %s13, 4
      %s20 = sphi 0, %s32
      %s21 = sphi 0, %s28
      %s22 = sphi 0, %s20
      %s23 = sphi 0, %s21
      %s24 = sphi 0, %s22
      %s25 = sphi 0, %s23
      %s35 = sphi 0, %s37
      %s38 = sphi 0, %s35
      %s39 = sphi 0, %s38
      %s55 = sphi 0, %s39
      %s61 = sphi 0, %s63
      %s64 = sphi 0, %s61
      %s65 = sphi 0, %s64
      %s81 = sphi 0, %s65
      %s87 = sphi 0, %s89
      %s90 = sphi 0, %s87
      %s91 = sphi 0, %s90
      %s107 = sphi 0, %s91
      %s113 = sphi 0, %s115
      %s116 = sphi 0, %s113
      %s117 = sphi 0, %s116
      %s133 = sphi 0, %s117
      %s141 = sphi 0, %s143
      %s144 = sphi 0, %s141
      %s145 = sphi 0, %s144
      %s161 = sphi 0, %s145
    $region4: #{tpu_custom_call.1} parent=1 // loop_header_branch
      %16 = sbr.rel (%p14) target = $region8
    $region5: #{tpu_custom_call.1} parent=1 // loop_body
      %s18 = ssub.s32 %s13, 1
      %s19 = ssub.s32 %s13, 2
      %s26 = sadd.s32 1, %s21
      %p27 = scmp.ge.s32.totalorder %s26, 1
      %s28 = scalar_select %p27, 0, %s26
      %s29 = sadd.s32 1, %s20
      %s30 = scalar_select %p27, %s29, %s20
      %p31 = scmp.ge.s32.totalorder %s30, 2
      %s32 = scalar_select %p31, 0, %s30
      %s33 = ssub.s32 %s20, %s32
      %p34 = scmp.eq.s32.totalorder %s33, 0
      %s36 = sadd.s32 %s35, 1
      %s37 = scalar_select %p34, %s35, %s36
      %p40 = pneg %p34
      %p41 = scmp.eq.s32.totalorder %s13, 1
      %p42 = por %p40, %p41
      %p43 = scmp.ne.s32.totalorder %s35, %s38
      %p44 = scmp.eq.s32.totalorder %s13, 0
      %p45 = por %p43, %p44
      %p46 = scmp.ne.s32.totalorder %s35, %s38
      %p47 = scmp.eq.s32.totalorder %s18, 1
      %p48 = por %p46, %p47
      %p49 = scmp.ne.s32.totalorder %s38, %s39
      %p50 = scmp.eq.s32.totalorder %s18, 0
      %p51 = por %p49, %p50
      %p52 = scmp.ne.s32.totalorder %s38, %s39
      %p53 = scmp.eq.s32.totalorder %s19, 1
      %p54 = por %p52, %p53
      %p56 = scmp.ne.s32.totalorder %s39, %s55
      %p57 = scmp.eq.s32.totalorder %s19, 0
      %p58 = por %p56, %p57
      %s59 = ssub.s32 %s21, %s28
      %p60 = scmp.eq.s32.totalorder %s59, 0
      %s62 = sadd.s32 %s61, 1
      %s63 = scalar_select %p60, %s61, %s62
      %p66 = pneg %p60
      %p67 = scmp.eq.s32.totalorder %s13, 1
      %p68 = por %p66, %p67
      %p69 = scmp.ne.s32.totalorder %s61, %s64
      %p70 = scmp.eq.s32.totalorder %s13, 0
      %p71 = por %p69, %p70
      %p72 = scmp.ne.s32.totalorder %s61, %s64
      %p73 = scmp.eq.s32.totalorder %s18, 1
      %p74 = por %p72, %p73
      %p75 = scmp.ne.s32.totalorder %s64, %s65
      %p76 = scmp.eq.s32.totalorder %s18, 0
      %p77 = por %p75, %p76
      %p78 = scmp.ne.s32.totalorder %s64, %s65
      %p79 = scmp.eq.s32.totalorder %s19, 1
      %p80 = por %p78, %p79
      %p82 = scmp.ne.s32.totalorder %s65, %s81
      %p83 = scmp.eq.s32.totalorder %s19, 0
      %p84 = por %p82, %p83
      %s85 = ssub.s32 %s21, %s28
      %p86 = scmp.eq.s32.totalorder %s85, 0
      %s88 = sadd.s32 %s87, 1
      %s89 = scalar_select %p86, %s87, %s88
      %p92 = pneg %p86
      %p93 = scmp.eq.s32.totalorder %s13, 1
      %p94 = por %p92, %p93
      %p95 = scmp.ne.s32.totalorder %s87, %s90
      %p96 = scmp.eq.s32.totalorder %s13, 0
      %p97 = por %p95, %p96
      %p98 = scmp.ne.s32.totalorder %s87, %s90
      %p99 = scmp.eq.s32.totalorder %s18, 1
      %p100 = por %p98, %p99
      %p101 = scmp.ne.s32.totalorder %s90, %s91
      %p102 = scmp.eq.s32.totalorder %s18, 0
      %p103 = por %p101, %p102
      %p104 = scmp.ne.s32.totalorder %s90, %s91
      %p105 = scmp.eq.s32.totalorder %s19, 1
      %p106 = por %p104, %p105
      %p108 = scmp.ne.s32.totalorder %s91, %s107
      %p109 = scmp.eq.s32.totalorder %s19, 0
      %p110 = por %p108, %p109
      %s111 = ssub.s32 %s21, %s28
      %p112 = scmp.eq.s32.totalorder %s111, 0
      %s114 = sadd.s32 %s113, 1
      %s115 = scalar_select %p112, %s113, %s114
      %p118 = pneg %p112
      %p119 = scmp.eq.s32.totalorder %s13, 1
      %p120 = por %p118, %p119
      %p121 = scmp.ne.s32.totalorder %s113, %s116
      %p122 = scmp.eq.s32.totalorder %s13, 0
      %p123 = por %p121, %p122
      %p124 = scmp.ne.s32.totalorder %s113, %s116
      %p125 = scmp.eq.s32.totalorder %s18, 1
      %p126 = por %p124, %p125
      %p127 = scmp.ne.s32.totalorder %s116, %s117
      %p128 = scmp.eq.s32.totalorder %s18, 0
      %p129 = por %p127, %p128
      %p130 = scmp.ne.s32.totalorder %s116, %s117
      %p131 = scmp.eq.s32.totalorder %s19, 1
      %p132 = por %p130, %p131
      %p134 = scmp.ne.s32.totalorder %s117, %s133
      %p135 = scmp.eq.s32.totalorder %s19, 0
      %p136 = por %p134, %p135
      %s137 = ssub.s32 %s20, %s32
      %s138 = ssub.s32 %s21, %s28
      %s139 = sor.u32 %s137, %s138
      %p140 = scmp.eq.s32.totalorder %s139, 0
      %s142 = sadd.s32 %s141, 1
      %s143 = scalar_select %p140, %s141, %s142
      %p146 = pneg %p140
      %p147 = scmp.eq.s32.totalorder %s13, 1
      %p148 = por %p146, %p147
      %p149 = scmp.ne.s32.totalorder %s141, %s144
      %p150 = scmp.eq.s32.totalorder %s13, 0
      %p151 = por %p149, %p150
      %p152 = scmp.ne.s32.totalorder %s141, %s144
      %p153 = scmp.eq.s32.totalorder %s18, 1
      %p154 = por %p152, %p153
      %p155 = scmp.ne.s32.totalorder %s144, %s145
      %p156 = scmp.eq.s32.totalorder %s18, 0
      %p157 = por %p155, %p156
      %p158 = scmp.ne.s32.totalorder %s144, %s145
      %p159 = scmp.eq.s32.totalorder %s19, 1
      %p160 = por %p158, %p159
      %p162 = scmp.ne.s32.totalorder %s145, %s161
      %p163 = scmp.eq.s32.totalorder %s19, 0
      %p164 = por %p162, %p163
      %p165 = scmp.le.s32.totalorder 1, %s13
      %p166 = scmp.lt.s32.totalorder %s13, 3
      %p167 = pnand %p165, %p166
      %p168 = pneg %p167
      // Predicated region
      $region9: #{tpu_custom_call.1} parent=5 // pred_check
        _
      $region10: #{tpu_custom_call.1} parent=5 // pred_check_branch
        %170 = sbr.rel (%p167) target = $region12
      $region11: #{tpu_custom_call.1} parent=5 // pred_region
        %s171 = ssub.s32 %s13, 1
        // Predicated region
        $region13: #{tpu_custom_call.1} parent=11 // pred_check
          %p172 = pneg %p77
        $region14: #{tpu_custom_call.1} parent=11 // pred_check_branch
          %174 = sbr.rel (%p172) target = $region16
        $region15: #{tpu_custom_call.1} parent=11 // pred_region
          %p175 = scmp.lt.s32.totalorder %s23, 0
          %s176 = scalar_select %p175, %s23, 0
          %s177 = smul.addr %s176, 4
          %s178 = scalar_lea.vmem %s1, %s177
        $region16: #{tpu_custom_call.1} parent=11 // pred_fallthru
          _
        // Predicated region
        $region17: #{tpu_custom_call.1} parent=11 // pred_check
          %p179 = pneg %p103
        $region18: #{tpu_custom_call.1} parent=11 // pred_check_branch
          %181 = sbr.rel (%p179) target = $region20
        $region19: #{tpu_custom_call.1} parent=11 // pred_region
          %p182 = scmp.lt.s32.totalorder %s23, 0
          %s183 = scalar_select %p182, %s23, 0
          %s184 = scalar_lea.vmem %s2, %s183
        $region20: #{tpu_custom_call.1} parent=11 // pred_fallthru
          _
        // Predicated region
        $region21: #{tpu_custom_call.1} parent=11 // pred_check
          %p185 = pneg %p129
        $region22: #{tpu_custom_call.1} parent=11 // pred_check_branch
          %187 = sbr.rel (%p185) target = $region24
        $region23: #{tpu_custom_call.1} parent=11 // pred_region
          %p188 = scmp.lt.s32.totalorder %s23, 0
          %s189 = scalar_select %p188, %s23, 0
          %s190 = scalar_lea.vmem %s3, %s189
        $region24: #{tpu_custom_call.1} parent=11 // pred_fallthru
          _
      $region12: #{tpu_custom_call.1} parent=5 // pred_fallthru
        _
      %p191 = scmp.lt.s32.totalorder %s13, 2
      // Predicated region
      $region25: #{tpu_custom_call.1} parent=5 // pred_check
        %p192 = pneg %p191
      $region26: #{tpu_custom_call.1} parent=5 // pred_check_branch
        %194 = sbr.rel (%p192) target = $region28
      $region27: #{tpu_custom_call.1} parent=5 // pred_region
        // Predicated region
        $region29: #{tpu_custom_call.1} parent=27 // pred_check
          %p195 = pneg %p45
        $region30: #{tpu_custom_call.1} parent=27 // pred_check_branch
          %197 = sbr.rel (%p195) target = $region32
        $region31: #{tpu_custom_call.1} parent=27 // pred_region
          %p198 = scmp.lt.s32.totalorder %s20, 1
          %s199 = scalar_select %p198, %s20, 1
          %s200 = smul.addr %s199, 54
          %s201 = smul.addr %s200, 8
          %s202 = scalar_lea.vmem %s0, %s201
        $region32: #{tpu_custom_call.1} parent=27 // pred_fallthru
          _
      $region28: #{tpu_custom_call.1} parent=5 // pred_fallthru
        _
      %p203 = scmp.le.s32.totalorder 1, %s13
      %p204 = scmp.lt.s32.totalorder %s13, 3
      %p205 = pnand %p203, %p204
      %p206 = pneg %p205
      // Predicated region
      $region33: #{tpu_custom_call.1} parent=5 // pred_check
        _
      $region34: #{tpu_custom_call.1} parent=5 // pred_check_branch
        %208 = sbr.rel (%p205) target = $region36
      $region35: #{tpu_custom_call.1} parent=5 // pred_region
        %s209 = ssub.s32 %s13, 1
        %p210 = scmp.lt.s32.totalorder %s22, 1
        %s211 = scalar_select %p210, %s22, 1
        %s212 = smul.addr %s211, 54
        %s213 = smul.addr %s212, 8
        %s214 = scalar_lea.vmem %s0, %s213
        %p215 = pneg %p51
        %p216 = pneg %p48
        %p217 = scmp.lt.s32.totalorder %s23, 0
        %s218 = scalar_select %p217, %s23, 0
        %s219 = smul.addr %s218, 4
        %s220 = scalar_lea.vmem %s1, %s219
        %p221 = pneg %p77
        %p222 = pneg %p74
        %p223 = scmp.lt.s32.totalorder %s23, 0
        %s224 = scalar_select %p223, %s23, 0
        %s225 = scalar_lea.vmem %s2, %s224
        %p226 = pneg %p103
        %p227 = pneg %p100
        %p228 = scmp.lt.s32.totalorder %s23, 0
        %s229 = scalar_select %p228, %s23, 0
        %s230 = scalar_lea.vmem %s3, %s229
        %p231 = pneg %p129
        %p232 = pneg %p126
        %p233 = pneg %p157
        %p234 = pneg %p154
        %s235 = sand.u32 %s144, 1
        %s236 = scalar_lea.sflag [#allocation3], %s235
        %s237 = sand.u32 %s144, 1
        %s238 = smul.addr %s237, 256
        %s239 = scalar_lea.vmem [#allocation2], %s238
        %p240 = scmp.lt.s32.totalorder %s22, 1
        %s241 = scalar_select %p240, %s22, 1
        %s242 = smul.addr %s241, 54
        %s243 = smul.addr %s242, 8
        %s244 = scalar_lea.vmem %s0, %s243
        %p245 = scmp.lt.s32.totalorder %s23, 0
        %s246 = scalar_select %p245, %s23, 0
        %s247 = smul.addr %s246, 4
        %s248 = scalar_lea.vmem %s1, %s247
        %p249 = scmp.lt.s32.totalorder %s23, 0
        %s250 = scalar_select %p249, %s23, 0
        %s251 = scalar_lea.vmem %s2, %s250
        %p252 = scmp.lt.s32.totalorder %s23, 0
        %s253 = scalar_select %p252, %s23, 0
        %s254 = scalar_lea.vmem %s3, %s253
        %v255 = vld [vmem:[%s244] sm:$0xff]
        %v256 = vld [vmem:[%s244 + $0x8] sm:$0xff]
        %v257 = vld [vmem:[%s244 + $0x18] sm:$0xff]
        %v258 = vld [vmem:[%s244 + $0x20] sm:$0xff]
        %v259 = vld [vmem:[%s244 + $0x30] sm:$0xff]
        %v260 = vld [vmem:[%s244 + $0x38] sm:$0xff]
        %v261 = vld [vmem:[%s244 + $0x48] sm:$0xff]
        %v262 = vld [vmem:[%s244 + $0x50] sm:$0xff]
        %v263 = vld [vmem:[%s244 + $0x60] sm:$0xff]
        %v264 = vld [vmem:[%s244 + $0x68] sm:$0xff]
        %v265 = vld [vmem:[%s244 + $0x78] sm:$0xff]
        %v266 = vld [vmem:[%s244 + $0x80] sm:$0xff]
        %v267 = vld [vmem:[%s244 + $0x90] sm:$0xff]
        %v268 = vld [vmem:[%s244 + $0x98] sm:$0xff]
        %v269 = vld [vmem:[%s244 + $0xa8] sm:$0xff]
        %v270 = vld [vmem:[%s244 + $0xb0] sm:$0xff]
        %v271 = vld [vmem:[%s244 + $0xc0] sm:$0xff]
        %v272 = vld [vmem:[%s244 + $0xc8] sm:$0xff]
        %v273 = vld [vmem:[%s244 + $0xd8] sm:$0xff]
        %v274 = vld [vmem:[%s244 + $0xe0] sm:$0xff]
        %v275 = vld [vmem:[%s244 + $0xf0] sm:$0xff]
        %v276 = vld [vmem:[%s244 + $0xf8] sm:$0xff]
        %v277 = vld [vmem:[%s244 + $0x108] sm:$0xff]
        %v278 = vld [vmem:[%s244 + $0x110] sm:$0xff]
        %v279 = vld [vmem:[%s244 + $0x120] sm:$0xff]
        %v280 = vld [vmem:[%s244 + $0x128] sm:$0xff]
        %v281 = vld [vmem:[%s244 + $0x138] sm:$0xff]
        %v282 = vld [vmem:[%s244 + $0x140] sm:$0xff]
        %v283 = vld [vmem:[%s244 + $0x150] sm:$0xff]
        %v284 = vld [vmem:[%s244 + $0x158] sm:$0xff]
        %v285 = vld [vmem:[%s244 + $0x168] sm:$0xff]
        %v286 = vld [vmem:[%s244 + $0x170] sm:$0xff]
        %v287 = vld [vmem:[%s248] sm:$0xf]
        %v288 = vld [vmem:[%s244 + $0x1] sm:$0xff]
        %v289 = vld [vmem:[%s244 + $0x9] sm:$0xff]
        %v290 = vld [vmem:[%s244 + $0x19] sm:$0xff]
        %v291 = vld [vmem:[%s244 + $0x21] sm:$0xff]
        %v292 = vld [vmem:[%s244 + $0x31] sm:$0xff]
        %v293 = vld [vmem:[%s244 + $0x39] sm:$0xff]
        %v294 = vld [vmem:[%s244 + $0x49] sm:$0xff]
        %v295 = vld [vmem:[%s244 + $0x51] sm:$0xff]
        %v296 = vld [vmem:[%s244 + $0x61] sm:$0xff]
        %v297 = vld [vmem:[%s244 + $0x69] sm:$0xff]
        %v298 = vld [vmem:[%s244 + $0x79] sm:$0xff]
        %v299 = vld [vmem:[%s244 + $0x81] sm:$0xff]
        %v300 = vld [vmem:[%s244 + $0x91] sm:$0xff]
        %v301 = vld [vmem:[%s244 + $0x99] sm:$0xff]
        %v302 = vld [vmem:[%s244 + $0xa9] sm:$0xff]
        %v303 = vld [vmem:[%s244 + $0xb1] sm:$0xff]
        %v304 = vld [vmem:[%s244 + $0xc1] sm:$0xff]
        %v305 = vld [vmem:[%s244 + $0xc9] sm:$0xff]
        %v306 = vld [vmem:[%s244 + $0xd9] sm:$0xff]
        %v307 = vld [vmem:[%s244 + $0xe1] sm:$0xff]
        %v308 = vld [vmem:[%s244 + $0xf1] sm:$0xff]
        %v309 = vld [vmem:[%s244 + $0xf9] sm:$0xff]
        %v310 = vld [vmem:[%s244 + $0x109] sm:$0xff]
        %v311 = vld [vmem:[%s244 + $0x111] sm:$0xff]
        %v312 = vld [vmem:[%s244 + $0x121] sm:$0xff]
        %v313 = vld [vmem:[%s244 + $0x129] sm:$0xff]
        %v314 = vld [vmem:[%s244 + $0x139] sm:$0xff]
        %v315 = vld [vmem:[%s244 + $0x141] sm:$0xff]
        %v316 = vld [vmem:[%s244 + $0x151] sm:$0xff]
        %v317 = vld [vmem:[%s244 + $0x159] sm:$0xff]
        %v318 = vld [vmem:[%s244 + $0x169] sm:$0xff]
        %v319 = vld [vmem:[%s244 + $0x171] sm:$0xff]
        %s320 = scalar_lea.vmem %s248, 4
        %v321 = vld [vmem:[%s320] sm:$0xf]
        %vm322 = vcmask 31744
        %v324 = vsel %vm322, %v288, 0
        %v327 = vsel %vm322, %v289, 0
        %v330 = vsel %vm322, %v290, 0
        %v333 = vsel %vm322, %v291, 0
        %v336 = vsel %vm322, %v292, 0
        %v339 = vsel %vm322, %v293, 0
        %v342 = vsel %vm322, %v294, 0
        %v345 = vsel %vm322, %v295, 0
        %v348 = vsel %vm322, %v296, 0
        %v351 = vsel %vm322, %v297, 0
        %v354 = vsel %vm322, %v298, 0
        %v357 = vsel %vm322, %v299, 0
        %v360 = vsel %vm322, %v300, 0
        %v363 = vsel %vm322, %v301, 0
        %v366 = vsel %vm322, %v302, 0
        %v369 = vsel %vm322, %v303, 0
        %v372 = vsel %vm322, %v304, 0
        %v375 = vsel %vm322, %v305, 0
        %v378 = vsel %vm322, %v306, 0
        %v381 = vsel %vm322, %v307, 0
        %v384 = vsel %vm322, %v308, 0
        %v387 = vsel %vm322, %v309, 0
        %v390 = vsel %vm322, %v310, 0
        %v393 = vsel %vm322, %v311, 0
        %v396 = vsel %vm322, %v312, 0
        %v399 = vsel %vm322, %v313, 0
        %v402 = vsel %vm322, %v314, 0
        %v405 = vsel %vm322, %v315, 0
        %v408 = vsel %vm322, %v316, 0
        %v411 = vsel %vm322, %v317, 0
        %v414 = vsel %vm322, %v318, 0
        %v417 = vsel %vm322, %v319, 0
        %vm419 = vcmask 1043456
        %v421 = vsel %vm419, %v321, 0
        %423 = vmatprep.subr.mxu0 0.0
        %424 = vmatpush1.msra.mxu0 %v421
        %425 = vmatprep.subr.mxu0 0.0
        %426 = vmatpush1.msra.mxu0 0.0
        %427 = vmatprep.subr.mxu0 0.0
        %428 = vmatpush1.msra.mxu0 0.0
        %429 = vmatprep.subr.mxu0 0.0
        %430 = vmatpush1.msra.mxu0 0.0
        %431 = vmatprep.subr.mxu0 0.0
        %432 = vmatpush1.msra.mxu0 0.0
        %433 = vmatprep.subr.mxu0 0.0
        %434 = vmatpush1.msra.mxu0 0.0
        %435 = vmatprep.subr.mxu0 0.0
        %436 = vmatpush1.msra.mxu0 0.0
        %437 = vmatprep.subr.mxu0 0.0
        %438 = vmatpush1.msra.mxu0 0.0
        %439 = vmatprep.subr.mxu0 0.0
        %440 = vmatpush1.msra.mxu0 0.0
        %441 = vmatprep.subr.mxu0 0.0
        %442 = vmatpush1.msra.mxu0 0.0
        %443 = vmatprep.subr.mxu0 0.0
        %444 = vmatpush1.msra.mxu0 0.0
        %445 = vmatprep.subr.mxu0 0.0
        %446 = vmatpush1.msra.mxu0 0.0
        %447 = vmatprep.subr.mxu0 0.0
        %448 = vmatpush1.msra.mxu0 0.0
        %449 = vmatprep.subr.mxu0 0.0
        %450 = vmatpush1.msra.mxu0 0.0
        %451 = vmatprep.subr.mxu0 0.0
        %452 = vmatpush1.msra.mxu0 0.0
        %453 = vmatprep.subr.mxu0 0.0
        %454 = vmatpush1.msra.mxu0 0.0
        %455 = vmatprep.subr.mxu0 0.0
        %456 = vmatpush1.msra.mxu0 0.0
        %457 = vmatprep.subr.mxu0 0.0
        %458 = vmatpush1.msra.mxu0 0.0
        %459 = vmatprep.subr.mxu0 0.0
        %460 = vmatpush1.msra.mxu0 0.0
        %461 = vmatprep.subr.mxu0 0.0
        %462 = vmatpush1.msra.mxu0 0.0
        %463 = vmatprep.subr.mxu0 0.0
        %464 = vmatpush1.msra.mxu0 0.0
        %465 = vmatprep.subr.mxu0 0.0
        %466 = vmatpush1.msra.mxu0 0.0
        %467 = vmatprep.subr.mxu0 0.0
        %468 = vmatpush1.msra.mxu0 0.0
        %469 = vmatprep.subr.mxu0 0.0
        %470 = vmatpush1.msra.mxu0 0.0
        %471 = vmatprep.subr.mxu0 0.0
        %472 = vmatpush1.msra.mxu0 0.0
        %473 = vmatprep.subr.mxu0 0.0
        %474 = vmatpush1.msra.mxu0 0.0
        %475 = vmatprep.subr.mxu0 0.0
        %476 = vmatpush1.msra.mxu0 0.0
        %477 = vmatprep.subr.mxu0 0.0
        %478 = vmatpush1.msra.mxu0 0.0
        %479 = vmatprep.subr.mxu0 0.0
        %480 = vmatpush1.msra.mxu0 0.0
        %481 = vmatprep.subr.mxu0 0.0
        %482 = vmatpush1.msra.mxu0 0.0
        %483 = vmatprep.subr.mxu0 0.0
        %484 = vmatpush1.msra.mxu0 0.0
        %485 = vmatprep.subr.mxu0 0.0
        %486 = vmatpush1.msra.mxu0 0.0
        %487 = vmatprep.mubr.f32.mxu0 0.0
        %488 = vmatmul.mubr.f32.gmra.mrb[0].mxu0 %v324
        %v489 = vpop.f32.mrb[0].mxu0
        %v490 = vadd.f32 0.0, %v489
        %v491 = vpop.f32.mrb[0].mxu0
        %492 = vmatprep.mubr.f32.mxu0 0.0
        %493 = vmatmul.mubr.f32.gmra.mrb[0].mxu0 %v327
        %v494 = vpop.f32.mrb[0].mxu0
        %v495 = vadd.f32 0.0, %v494
        %v496 = vpop.f32.mrb[0].mxu0
        %497 = vmatprep.mubr.f32.mxu0 0.0
        %498 = vmatmul.mubr.f32.gmra.mrb[0].mxu0 %v330
        %v499 = vpop.f32.mrb[0].mxu0
        %v500 = vadd.f32 0.0, %v499
        %v501 = vpop.f32.mrb[0].mxu0
        %502 = vmatprep.mubr.f32.mxu0 0.0
        %503 = vmatmul.mubr.f32.gmra.mrb[0].mxu0 %v333
        %v504 = vpop.f32.mrb[0].mxu0
        %v505 = vadd.f32 0.0, %v504
        %v506 = vpop.f32.mrb[0].mxu0
        %507 = vmatprep.mubr.f32.mxu0 0.0
        %508 = vmatmul.mubr.f32.gmra.mrb[0].mxu0 %v336
        %v509 = vpop.f32.mrb[0].mxu0
        %v510 = vadd.f32 0.0, %v509
        %v511 = vpop.f32.mrb[0].mxu0
        %512 = vmatprep.mubr.f32.mxu0 0.0
        %513 = vmatmul.mubr.f32.gmra.mrb[0].mxu0 %v339
        %v514 = vpop.f32.mrb[0].mxu0
        %v515 = vadd.f32 0.0, %v514
        %v516 = vpop.f32.mrb[0].mxu0
        %517 = vmatprep.mubr.f32.mxu0 0.0
        %518 = vmatmul.mubr.f32.gmra.mrb[0].mxu0 %v342
        %v519 = vpop.f32.mrb[0].mxu0
        %v520 = vadd.f32 0.0, %v519
        %v521 = vpop.f32.mrb[0].mxu0
        %522 = vmatprep.mubr.f32.mxu0 0.0
        %523 = vmatmul.mubr.f32.gmra.mrb[0].mxu0 %v345
        %v524 = vpop.f32.mrb[0].mxu0
        %v525 = vadd.f32 0.0, %v524
        %v526 = vpop.f32.mrb[0].mxu0
        %527 = vmatprep.mubr.f32.mxu0 0.0
        %528 = vmatmul.mubr.f32.gmra.mrb[0].mxu0 %v348
        %v529 = vpop.f32.mrb[0].mxu0
        %v530 = vadd.f32 0.0, %v529
        %v531 = vpop.f32.mrb[0].mxu0
        %532 = vmatprep.mubr.f32.mxu0 0.0
        %533 = vmatmul.mubr.f32.gmra.mrb[0].mxu0 %v351
        %v534 = vpop.f32.mrb[0].mxu0
        %v535 = vadd.f32 0.0, %v534
        %v536 = vpop.f32.mrb[0].mxu0
        %537 = vmatprep.mubr.f32.mxu0 0.0
        %538 = vmatmul.mubr.f32.gmra.mrb[0].mxu0 %v354
        %v539 = vpop.f32.mrb[0].mxu0
        %v540 = vadd.f32 0.0, %v539
        %v541 = vpop.f32.mrb[0].mxu0
        %542 = vmatprep.mubr.f32.mxu0 0.0
        %543 = vmatmul.mubr.f32.gmra.mrb[0].mxu0 %v357
        %v544 = vpop.f32.mrb[0].mxu0
        %v545 = vadd.f32 0.0, %v544
        %v546 = vpop.f32.mrb[0].mxu0
        %547 = vmatprep.mubr.f32.mxu0 0.0
        %548 = vmatmul.mubr.f32.gmra.mrb[0].mxu0 %v360
        %v549 = vpop.f32.mrb[0].mxu0
        %v550 = vadd.f32 0.0, %v549
        %v551 = vpop.f32.mrb[0].mxu0
        %552 = vmatprep.mubr.f32.mxu0 0.0
        %553 = vmatmul.mubr.f32.gmra.mrb[0].mxu0 %v363
        %v554 = vpop.f32.mrb[0].mxu0
        %v555 = vadd.f32 0.0, %v554
        %v556 = vpop.f32.mrb[0].mxu0
        %557 = vmatprep.mubr.f32.mxu0 0.0
        %558 = vmatmul.mubr.f32.gmra.mrb[0].mxu0 %v366
        %v559 = vpop.f32.mrb[0].mxu0
        %v560 = vadd.f32 0.0, %v559
        %v561 = vpop.f32.mrb[0].mxu0
        %562 = vmatprep.mubr.f32.mxu0 0.0
        %563 = vmatmul.mubr.f32.gmra.mrb[0].mxu0 %v369
        %v564 = vpop.f32.mrb[0].mxu0
        %v565 = vadd.f32 0.0, %v564
        %v566 = vpop.f32.mrb[0].mxu0
        %567 = vmatprep.mubr.f32.mxu0 0.0
        %568 = vmatmul.mubr.f32.gmra.mrb[0].mxu0 %v372
        %v569 = vpop.f32.mrb[0].mxu0
        %v570 = vadd.f32 0.0, %v569
        %v571 = vpop.f32.mrb[0].mxu0
        %572 = vmatprep.mubr.f32.mxu0 0.0
        %573 = vmatmul.mubr.f32.gmra.mrb[0].mxu0 %v375
        %v574 = vpop.f32.mrb[0].mxu0
        %v575 = vadd.f32 0.0, %v574
        %v576 = vpop.f32.mrb[0].mxu0
        %577 = vmatprep.mubr.f32.mxu0 0.0
        %578 = vmatmul.mubr.f32.gmra.mrb[0].mxu0 %v378
        %v579 = vpop.f32.mrb[0].mxu0
        %v580 = vadd.f32 0.0, %v579
        %v581 = vpop.f32.mrb[0].mxu0
        %582 = vmatprep.mubr.f32.mxu0 0.0
        %583 = vmatmul.mubr.f32.gmra.mrb[0].mxu0 %v381
        %v584 = vpop.f32.mrb[0].mxu0
        %v585 = vadd.f32 0.0, %v584
        %v586 = vpop.f32.mrb[0].mxu0
        %587 = vmatprep.mubr.f32.mxu0 0.0
        %588 = vmatmul.mubr.f32.gmra.mrb[0].mxu0 %v384
        %v589 = vpop.f32.mrb[0].mxu0
        %v590 = vadd.f32 0.0, %v589
        %v591 = vpop.f32.mrb[0].mxu0
        %592 = vmatprep.mubr.f32.mxu0 0.0
        %593 = vmatmul.mubr.f32.gmra.mrb[0].mxu0 %v387
        %v594 = vpop.f32.mrb[0].mxu0
        %v595 = vadd.f32 0.0, %v594
        %v596 = vpop.f32.mrb[0].mxu0
        %597 = vmatprep.mubr.f32.mxu0 0.0
        %598 = vmatmul.mubr.f32.gmra.mrb[0].mxu0 %v390
        %v599 = vpop.f32.mrb[0].mxu0
        %v600 = vadd.f32 0.0, %v599
        %v601 = vpop.f32.mrb[0].mxu0
        %602 = vmatprep.mubr.f32.mxu0 0.0
        %603 = vmatmul.mubr.f32.gmra.mrb[0].mxu0 %v393
        %v604 = vpop.f32.mrb[0].mxu0
        %v605 = vadd.f32 0.0, %v604
        %v606 = vpop.f32.mrb[0].mxu0
        %607 = vmatprep.mubr.f32.mxu0 0.0
        %608 = vmatmul.mubr.f32.gmra.mrb[0].mxu0 %v396
        %v609 = vpop.f32.mrb[0].mxu0
        %v610 = vadd.f32 0.0, %v609
        %v611 = vpop.f32.mrb[0].mxu0
        %612 = vmatprep.mubr.f32.mxu0 0.0
        %613 = vmatmul.mubr.f32.gmra.mrb[0].mxu0 %v399
        %v614 = vpop.f32.mrb[0].mxu0
        %v615 = vadd.f32 0.0, %v614
        %v616 = vpop.f32.mrb[0].mxu0
        %617 = vmatprep.mubr.f32.mxu0 0.0
        %618 = vmatmul.mubr.f32.gmra.mrb[0].mxu0 %v402
        %v619 = vpop.f32.mrb[0].mxu0
        %v620 = vadd.f32 0.0, %v619
        %v621 = vpop.f32.mrb[0].mxu0
        %622 = vmatprep.mubr.f32.mxu0 0.0
        %623 = vmatmul.mubr.f32.gmra.mrb[0].mxu0 %v405
        %v624 = vpop.f32.mrb[0].mxu0
        %v625 = vadd.f32 0.0, %v624
        %v626 = vpop.f32.mrb[0].mxu0
        %627 = vmatprep.mubr.f32.mxu0 0.0
        %628 = vmatmul.mubr.f32.gmra.mrb[0].mxu0 %v408
        %v629 = vpop.f32.mrb[0].mxu0
        %v630 = vadd.f32 0.0, %v629
        %v631 = vpop.f32.mrb[0].mxu0
        %632 = vmatprep.mubr.f32.mxu0 0.0
        %633 = vmatmul.mubr.f32.gmra.mrb[0].mxu0 %v411
        %v634 = vpop.f32.mrb[0].mxu0
        %v635 = vadd.f32 0.0, %v634
        %v636 = vpop.f32.mrb[0].mxu0
        %637 = vmatprep.mubr.f32.mxu0 0.0
        %638 = vmatmul.mubr.f32.gmra.mrb[0].mxu0 %v414
        %v639 = vpop.f32.mrb[0].mxu0
        %v640 = vadd.f32 0.0, %v639
        %v641 = vpop.f32.mrb[0].mxu0
        %642 = vmatprep.mubr.f32.mxu0 0.0
        %643 = vmatmul.mubr.f32.gmra.mrb[0].mxu0 %v417
        %v644 = vpop.f32.mrb[0].mxu0
        %v645 = vadd.f32 0.0, %v644
        %v646 = vpop.f32.mrb[0].mxu0
        %647 = vdwg.mxu0
        %v649 = vsel %vm322, %v255, 0
        %v652 = vsel %vm322, %v256, 0
        %v655 = vsel %vm322, %v257, 0
        %v658 = vsel %vm322, %v258, 0
        %v661 = vsel %vm322, %v259, 0
        %v664 = vsel %vm322, %v260, 0
        %v667 = vsel %vm322, %v261, 0
        %v670 = vsel %vm322, %v262, 0
        %v673 = vsel %vm322, %v263, 0
        %v676 = vsel %vm322, %v264, 0
        %v679 = vsel %vm322, %v265, 0
        %v682 = vsel %vm322, %v266, 0
        %v685 = vsel %vm322, %v267, 0
        %v688 = vsel %vm322, %v268, 0
        %v691 = vsel %vm322, %v269, 0
        %v694 = vsel %vm322, %v270, 0
        %v697 = vsel %vm322, %v271, 0
        %v700 = vsel %vm322, %v272, 0
        %v703 = vsel %vm322, %v273, 0
        %v706 = vsel %vm322, %v274, 0
        %v709 = vsel %vm322, %v275, 0
        %v712 = vsel %vm322, %v276, 0
        %v715 = vsel %vm322, %v277, 0
        %v718 = vsel %vm322, %v278, 0
        %v721 = vsel %vm322, %v279, 0
        %v724 = vsel %vm322, %v280, 0
        %v727 = vsel %vm322, %v281, 0
        %v730 = vsel %vm322, %v282, 0
        %v733 = vsel %vm322, %v283, 0
        %v736 = vsel %vm322, %v284, 0
        %v739 = vsel %vm322, %v285, 0
        %v742 = vsel %vm322, %v286, 0
        %v745 = vsel %vm419, %v287, 0
        %747 = vmatprep.subr.mxu0 0.0
        %748 = vmatpush1.msra.mxu0 %v745
        %749 = vmatprep.subr.mxu0 0.0
        %750 = vmatpush1.msra.mxu0 0.0
        %751 = vmatprep.subr.mxu0 0.0
        %752 = vmatpush1.msra.mxu0 0.0
        %753 = vmatprep.subr.mxu0 0.0
        %754 = vmatpush1.msra.mxu0 0.0
        %755 = vmatprep.subr.mxu0 0.0
        %756 = vmatpush1.msra.mxu0 0.0
        %757 = vmatprep.subr.mxu0 0.0
        %758 = vmatpush1.msra.mxu0 0.0
        %759 = vmatprep.subr.mxu0 0.0
        %760 = vmatpush1.msra.mxu0 0.0
        %761 = vmatprep.subr.mxu0 0.0
        %762 = vmatpush1.msra.mxu0 0.0
        %763 = vmatprep.subr.mxu0 0.0
        %764 = vmatpush1.msra.mxu0 0.0
        %765 = vmatprep.subr.mxu0 0.0
        %766 = vmatpush1.msra.mxu0 0.0
        %767 = vmatprep.subr.mxu0 0.0
        %768 = vmatpush1.msra.mxu0 0.0
        %769 = vmatprep.subr.mxu0 0.0
        %770 = vmatpush1.msra.mxu0 0.0
        %771 = vmatprep.subr.mxu0 0.0
        %772 = vmatpush1.msra.mxu0 0.0
        %773 = vmatprep.subr.mxu0 0.0
        %774 = vmatpush1.msra.mxu0 0.0
        %775 = vmatprep.subr.mxu0 0.0
        %776 = vmatpush1.msra.mxu0 0.0
        %777 = vmatprep.subr.mxu0 0.0
        %778 = vmatpush1.msra.mxu0 0.0
        %779 = vmatprep.subr.mxu0 0.0
        %780 = vmatpush1.msra.mxu0 0.0
        %781 = vmatprep.subr.mxu0 0.0
        %782 = vmatpush1.msra.mxu0 0.0
        %783 = vmatprep.subr.mxu0 0.0
        %784 = vmatpush1.msra.mxu0 0.0
        %785 = vmatprep.subr.mxu0 0.0
        %786 = vmatpush1.msra.mxu0 0.0
        %787 = vmatprep.subr.mxu0 0.0
        %788 = vmatpush1.msra.mxu0 0.0
        %789 = vmatprep.subr.mxu0 0.0
        %790 = vmatpush1.msra.mxu0 0.0
        %791 = vmatprep.subr.mxu0 0.0
        %792 = vmatpush1.msra.mxu0 0.0
        %793 = vmatprep.subr.mxu0 0.0
        %794 = vmatpush1.msra.mxu0 0.0
        %795 = vmatprep.subr.mxu0 0.0
        %796 = vmatpush1.msra.mxu0 0.0
        %797 = vmatprep.subr.mxu0 0.0
        %798 = vmatpush1.msra.mxu0 0.0
        %799 = vmatprep.subr.mxu0 0.0
        %800 = vmatpush1.msra.mxu0 0.0
        %801 = vmatprep.subr.mxu0 0.0
        %802 = vmatpush1.msra.mxu0 0.0
        %803 = vmatprep.subr.mxu0 0.0
        %804 = vmatpush1.msra.mxu0 0.0
        %805 = vmatprep.subr.mxu0 0.0
        %806 = vmatpush1.msra.mxu0 0.0
        %807 = vmatprep.subr.mxu0 0.0
        %808 = vmatpush1.msra.mxu0 0.0
        %809 = vmatprep.subr.mxu0 0.0
        %810 = vmatpush1.msra.mxu0 0.0
        %811 = vmatprep.mubr.f32.mxu0 0.0
        %812 = vmatmul.mubr.f32.gmra.mrb[0].mxu0 %v649
        %v813 = vpop.f32.mrb[0].mxu0
        %v814 = vadd.f32 %v490, %v813
        %v815 = vpop.f32.mrb[0].mxu0
        %816 = vmatprep.mubr.f32.mxu0 0.0
        %817 = vmatmul.mubr.f32.gmra.mrb[0].mxu0 %v652
        %v818 = vpop.f32.mrb[0].mxu0
        %v819 = vadd.f32 %v495, %v818
        %v820 = vpop.f32.mrb[0].mxu0
        %821 = vmatprep.mubr.f32.mxu0 0.0
        %822 = vmatmul.mubr.f32.gmra.mrb[0].mxu0 %v655
        %v823 = vpop.f32.mrb[0].mxu0
        %v824 = vadd.f32 %v500, %v823
        %v825 = vpop.f32.mrb[0].mxu0
        %826 = vmatprep.mubr.f32.mxu0 0.0
        %827 = vmatmul.mubr.f32.gmra.mrb[0].mxu0 %v658
        %v828 = vpop.f32.mrb[0].mxu0
        %v829 = vadd.f32 %v505, %v828
        %v830 = vpop.f32.mrb[0].mxu0
        %831 = vmatprep.mubr.f32.mxu0 0.0
        %832 = vmatmul.mubr.f32.gmra.mrb[0].mxu0 %v661
        %v833 = vpop.f32.mrb[0].mxu0
        %v834 = vadd.f32 %v510, %v833
        %v835 = vpop.f32.mrb[0].mxu0
        %836 = vmatprep.mubr.f32.mxu0 0.0
        %837 = vmatmul.mubr.f32.gmra.mrb[0].mxu0 %v664
        %v838 = vpop.f32.mrb[0].mxu0
        %v839 = vadd.f32 %v515, %v838
        %v840 = vpop.f32.mrb[0].mxu0
        %841 = vmatprep.mubr.f32.mxu0 0.0
        %842 = vmatmul.mubr.f32.gmra.mrb[0].mxu0 %v667
        %v843 = vpop.f32.mrb[0].mxu0
        %v844 = vadd.f32 %v520, %v843
        %v845 = vpop.f32.mrb[0].mxu0
        %846 = vmatprep.mubr.f32.mxu0 0.0
        %847 = vmatmul.mubr.f32.gmra.mrb[0].mxu0 %v670
        %v848 = vpop.f32.mrb[0].mxu0
        %v849 = vadd.f32 %v525, %v848
        %v850 = vpop.f32.mrb[0].mxu0
        %851 = vmatprep.mubr.f32.mxu0 0.0
        %852 = vmatmul.mubr.f32.gmra.mrb[0].mxu0 %v673
        %v853 = vpop.f32.mrb[0].mxu0
        %v854 = vadd.f32 %v530, %v853
        %v855 = vpop.f32.mrb[0].mxu0
        %856 = vmatprep.mubr.f32.mxu0 0.0
        %857 = vmatmul.mubr.f32.gmra.mrb[0].mxu0 %v676
        %v858 = vpop.f32.mrb[0].mxu0
        %v859 = vadd.f32 %v535, %v858
        %v860 = vpop.f32.mrb[0].mxu0
        %861 = vmatprep.mubr.f32.mxu0 0.0
        %862 = vmatmul.mubr.f32.gmra.mrb[0].mxu0 %v679
        %v863 = vpop.f32.mrb[0].mxu0
        %v864 = vadd.f32 %v540, %v863
        %v865 = vpop.f32.mrb[0].mxu0
        %866 = vmatprep.mubr.f32.mxu0 0.0
        %867 = vmatmul.mubr.f32.gmra.mrb[0].mxu0 %v682
        %v868 = vpop.f32.mrb[0].mxu0
        %v869 = vadd.f32 %v545, %v868
        %v870 = vpop.f32.mrb[0].mxu0
        %871 = vmatprep.mubr.f32.mxu0 0.0
        %872 = vmatmul.mubr.f32.gmra.mrb[0].mxu0 %v685
        %v873 = vpop.f32.mrb[0].mxu0
        %v874 = vadd.f32 %v550, %v873
        %v875 = vpop.f32.mrb[0].mxu0
        %876 = vmatprep.mubr.f32.mxu0 0.0
        %877 = vmatmul.mubr.f32.gmra.mrb[0].mxu0 %v688
        %v878 = vpop.f32.mrb[0].mxu0
        %v879 = vadd.f32 %v555, %v878
        %v880 = vpop.f32.mrb[0].mxu0
        %881 = vmatprep.mubr.f32.mxu0 0.0
        %882 = vmatmul.mubr.f32.gmra.mrb[0].mxu0 %v691
        %v883 = vpop.f32.mrb[0].mxu0
        %v884 = vadd.f32 %v560, %v883
        %v885 = vpop.f32.mrb[0].mxu0
        %886 = vmatprep.mubr.f32.mxu0 0.0
        %887 = vmatmul.mubr.f32.gmra.mrb[0].mxu0 %v694
        %v888 = vpop.f32.mrb[0].mxu0
        %v889 = vadd.f32 %v565, %v888
        %v890 = vpop.f32.mrb[0].mxu0
        %891 = vmatprep.mubr.f32.mxu0 0.0
        %892 = vmatmul.mubr.f32.gmra.mrb[0].mxu0 %v697
        %v893 = vpop.f32.mrb[0].mxu0
        %v894 = vadd.f32 %v570, %v893
        %v895 = vpop.f32.mrb[0].mxu0
        %896 = vmatprep.mubr.f32.mxu0 0.0
        %897 = vmatmul.mubr.f32.gmra.mrb[0].mxu0 %v700
        %v898 = vpop.f32.mrb[0].mxu0
        %v899 = vadd.f32 %v575, %v898
        %v900 = vpop.f32.mrb[0].mxu0
        %901 = vmatprep.mubr.f32.mxu0 0.0
        %902 = vmatmul.mubr.f32.gmra.mrb[0].mxu0 %v703
        %v903 = vpop.f32.mrb[0].mxu0
        %v904 = vadd.f32 %v580, %v903
        %v905 = vpop.f32.mrb[0].mxu0
        %906 = vmatprep.mubr.f32.mxu0 0.0
        %907 = vmatmul.mubr.f32.gmra.mrb[0].mxu0 %v706
        %v908 = vpop.f32.mrb[0].mxu0
        %v909 = vadd.f32 %v585, %v908
        %v910 = vpop.f32.mrb[0].mxu0
        %911 = vmatprep.mubr.f32.mxu0 0.0
        %912 = vmatmul.mubr.f32.gmra.mrb[0].mxu0 %v709
        %v913 = vpop.f32.mrb[0].mxu0
        %v914 = vadd.f32 %v590, %v913
        %v915 = vpop.f32.mrb[0].mxu0
        %916 = vmatprep.mubr.f32.mxu0 0.0
        %917 = vmatmul.mubr.f32.gmra.mrb[0].mxu0 %v712
        %v918 = vpop.f32.mrb[0].mxu0
        %v919 = vadd.f32 %v595, %v918
        %v920 = vpop.f32.mrb[0].mxu0
        %921 = vmatprep.mubr.f32.mxu0 0.0
        %922 = vmatmul.mubr.f32.gmra.mrb[0].mxu0 %v715
        %v923 = vpop.f32.mrb[0].mxu0
        %v924 = vadd.f32 %v600, %v923
        %v925 = vpop.f32.mrb[0].mxu0
        %926 = vmatprep.mubr.f32.mxu0 0.0
        %927 = vmatmul.mubr.f32.gmra.mrb[0].mxu0 %v718
        %v928 = vpop.f32.mrb[0].mxu0
        %v929 = vadd.f32 %v605, %v928
        %v930 = vpop.f32.mrb[0].mxu0
        %931 = vmatprep.mubr.f32.mxu0 0.0
        %932 = vmatmul.mubr.f32.gmra.mrb[0].mxu0 %v721
        %v933 = vpop.f32.mrb[0].mxu0
        %v934 = vadd.f32 %v610, %v933
        %v935 = vpop.f32.mrb[0].mxu0
        %936 = vmatprep.mubr.f32.mxu0 0.0
        %937 = vmatmul.mubr.f32.gmra.mrb[0].mxu0 %v724
        %v938 = vpop.f32.mrb[0].mxu0
        %v939 = vadd.f32 %v615, %v938
        %v940 = vpop.f32.mrb[0].mxu0
        %941 = vmatprep.mubr.f32.mxu0 0.0
        %942 = vmatmul.mubr.f32.gmra.mrb[0].mxu0 %v727
        %v943 = vpop.f32.mrb[0].mxu0
        %v944 = vadd.f32 %v620, %v943
        %v945 = vpop.f32.mrb[0].mxu0
        %946 = vmatprep.mubr.f32.mxu0 0.0
        %947 = vmatmul.mubr.f32.gmra.mrb[0].mxu0 %v730
        %v948 = vpop.f32.mrb[0].mxu0
        %v949 = vadd.f32 %v625, %v948
        %v950 = vpop.f32.mrb[0].mxu0
        %951 = vmatprep.mubr.f32.mxu0 0.0
        %952 = vmatmul.mubr.f32.gmra.mrb[0].mxu0 %v733
        %v953 = vpop.f32.mrb[0].mxu0
        %v954 = vadd.f32 %v630, %v953
        %v955 = vpop.f32.mrb[0].mxu0
        %956 = vmatprep.mubr.f32.mxu0 0.0
        %957 = vmatmul.mubr.f32.gmra.mrb[0].mxu0 %v736
        %v958 = vpop.f32.mrb[0].mxu0
        %v959 = vadd.f32 %v635, %v958
        %v960 = vpop.f32.mrb[0].mxu0
        %961 = vmatprep.mubr.f32.mxu0 0.0
        %962 = vmatmul.mubr.f32.gmra.mrb[0].mxu0 %v739
        %v963 = vpop.f32.mrb[0].mxu0
        %v964 = vadd.f32 %v640, %v963
        %v965 = vpop.f32.mrb[0].mxu0
        %966 = vmatprep.mubr.f32.mxu0 0.0
        %967 = vmatmul.mubr.f32.gmra.mrb[0].mxu0 %v742
        %v968 = vpop.f32.mrb[0].mxu0
        %v969 = vadd.f32 %v645, %v968
        %v970 = vpop.f32.mrb[0].mxu0
        %971 = vdwg.mxu0
        %v972 = vld [vmem:[%s244 + $0x2] sm:$0xff]
        %v973 = vld [vmem:[%s244 + $0xa] sm:$0xff]
        %v974 = vld [vmem:[%s244 + $0x1a] sm:$0xff]
        %v975 = vld [vmem:[%s244 + $0x22] sm:$0xff]
        %v976 = vld [vmem:[%s244 + $0x32] sm:$0xff]
        %v977 = vld [vmem:[%s244 + $0x3a] sm:$0xff]
        %v978 = vld [vmem:[%s244 + $0x4a] sm:$0xff]
        %v979 = vld [vmem:[%s244 + $0x52] sm:$0xff]
        %v980 = vld [vmem:[%s244 + $0x62] sm:$0xff]
        %v981 = vld [vmem:[%s244 + $0x6a] sm:$0xff]
        %v982 = vld [vmem:[%s244 + $0x7a] sm:$0xff]
        %v983 = vld [vmem:[%s244 + $0x82] sm:$0xff]
        %v984 = vld [vmem:[%s244 + $0x92] sm:$0xff]
        %v985 = vld [vmem:[%s244 + $0x9a] sm:$0xff]
        %v986 = vld [vmem:[%s244 + $0xaa] sm:$0xff]
        %v987 = vld [vmem:[%s244 + $0xb2] sm:$0xff]
        %v988 = vld [vmem:[%s244 + $0xc2] sm:$0xff]
        %v989 = vld [vmem:[%s244 + $0xca] sm:$0xff]
        %v990 = vld [vmem:[%s244 + $0xda] sm:$0xff]
        %v991 = vld [vmem:[%s244 + $0xe2] sm:$0xff]
        %v992 = vld [vmem:[%s244 + $0xf2] sm:$0xff]
        %v993 = vld [vmem:[%s244 + $0xfa] sm:$0xff]
        %v994 = vld [vmem:[%s244 + $0x10a] sm:$0xff]
        %v995 = vld [vmem:[%s244 + $0x112] sm:$0xff]
        %v996 = vld [vmem:[%s244 + $0x122] sm:$0xff]
        %v997 = vld [vmem:[%s244 + $0x12a] sm:$0xff]
        %v998 = vld [vmem:[%s244 + $0x13a] sm:$0xff]
        %v999 = vld [vmem:[%s244 + $0x142] sm:$0xff]
        %v1000 = vld [vmem:[%s244 + $0x152] sm:$0xff]
        %v1001 = vld [vmem:[%s244 + $0x15a] sm:$0xff]
        %v1002 = vld [vmem:[%s244 + $0x16a] sm:$0xff]
        %v1003 = vld [vmem:[%s244 + $0x172] sm:$0xff]
        %s1004 = scalar_lea.vmem %s248, 8
        %v1005 = vld [vmem:[%s1004] sm:$0xf]
        %v1007 = vsel %vm322, %v972, 0
        %v1010 = vsel %vm322, %v973, 0
        %v1013 = vsel %vm322, %v974, 0
        %v1016 = vsel %vm322, %v975, 0
        %v1019 = vsel %vm322, %v976, 0
        %v1022 = vsel %vm322, %v977, 0
        %v1025 = vsel %vm322, %v978, 0
        %v1028 = vsel %vm322, %v979, 0
        %v1031 = vsel %vm322, %v980, 0
        %v1034 = vsel %vm322, %v981, 0
        %v1037 = vsel %vm322, %v982, 0
        %v1040 = vsel %vm322, %v983, 0
        %v1043 = vsel %vm322, %v984, 0
        %v1046 = vsel %vm322, %v985, 0
        %v1049 = vsel %vm322, %v986, 0
        %v1052 = vsel %vm322, %v987, 0
        %v1055 = vsel %vm322, %v988, 0
        %v1058 = vsel %vm322, %v989, 0
        %v1061 = vsel %vm322, %v990, 0
        %v1064 = vsel %vm322, %v991, 0
        %v1067 = vsel %vm322, %v992, 0
        %v1070 = vsel %vm322, %v993, 0
        %v1073 = vsel %vm322, %v994, 0
        %v1076 = vsel %vm322, %v995, 0
        %v1079 = vsel %vm322, %v996, 0
        %v1082 = vsel %vm322, %v997, 0
        %v1085 = vsel %vm322, %v998, 0
        %v1088 = vsel %vm322, %v999, 0
        %v1091 = vsel %vm322, %v1000, 0
        %v1094 = vsel %vm322, %v1001, 0
        %v1097 = vsel %vm322, %v1002, 0
        %v1100 = vsel %vm322, %v1003, 0
        %v1103 = vsel %vm419, %v1005, 0
        %1105 = vmatprep.subr.mxu0 0.0
        %1106 = vmatpush1.msra.mxu0 %v1103
        %1107 = vmatprep.subr.mxu0 0.0
        %1108 = vmatpush1.msra.mxu0 0.0
        %1109 = vmatprep.subr.mxu0 0.0
        %1110 = vmatpush1.msra.mxu0 0.0
        %1111 = vmatprep.subr.mxu0 0.0
        %1112 = vmatpush1.msra.mxu0 0.0
        %1113 = vmatprep.subr.mxu0 0.0
        %1114 = vmatpush1.msra.mxu0 0.0
        %1115 = vmatprep.subr.mxu0 0.0
        %1116 = vmatpush1.msra.mxu0 0.0
        %1117 = vmatprep.subr.mxu0 0.0
        %1118 = vmatpush1.msra.mxu0 0.0
        %1119 = vmatprep.subr.mxu0 0.0
        %1120 = vmatpush1.msra.mxu0 0.0
        %1121 = vmatprep.subr.mxu0 0.0
        %1122 = vmatpush1.msra.mxu0 0.0
        %1123 = vmatprep.subr.mxu0 0.0
        %1124 = vmatpush1.msra.mxu0 0.0
        %1125 = vmatprep.subr.mxu0 0.0
        %1126 = vmatpush1.msra.mxu0 0.0
        %1127 = vmatprep.subr.mxu0 0.0
        %1128 = vmatpush1.msra.mxu0 0.0
        %1129 = vmatprep.subr.mxu0 0.0
        %1130 = vmatpush1.msra.mxu0 0.0
        %1131 = vmatprep.subr.mxu0 0.0
        %1132 = vmatpush1.msra.mxu0 0.0
        %1133 = vmatprep.subr.mxu0 0.0
        %1134 = vmatpush1.msra.mxu0 0.0
        %1135 = vmatprep.subr.mxu0 0.0
        %1136 = vmatpush1.msra.mxu0 0.0
        %1137 = vmatprep.subr.mxu0 0.0
        %1138 = vmatpush1.msra.mxu0 0.0
        %1139 = vmatprep.subr.mxu0 0.0
        %1140 = vmatpush1.msra.mxu0 0.0
        %1141 = vmatprep.subr.mxu0 0.0
        %1142 = vmatpush1.msra.mxu0 0.0
        %1143 = vmatprep.subr.mxu0 0.0
        %1144 = vmatpush1.msra.mxu0 0.0
        %1145 = vmatprep.subr.mxu0 0.0
        %1146 = vmatpush1.msra.mxu0 0.0
        %1147 = vmatprep.subr.mxu0 0.0
        %1148 = vmatpush1.msra.mxu0 0.0
        %1149 = vmatprep.subr.mxu0 0.0
        %1150 = vmatpush1.msra.mxu0 0.0
        %1151 = vmatprep.subr.mxu0 0.0
        %1152 = vmatpush1.msra.mxu0 0.0
        %1153 = vmatprep.subr.mxu0 0.0
        %1154 = vmatpush1.msra.mxu0 0.0
        %1155 = vmatprep.subr.mxu0 0.0
        %1156 = vmatpush1.msra.mxu0 0.0
        %1157 = vmatprep.subr.mxu0 0.0
        %1158 = vmatpush1.msra.mxu0 0.0
        %1159 = vmatprep.subr.mxu0 0.0
        %1160 = vmatpush1.msra.mxu0 0.0
        %1161 = vmatprep.subr.mxu0 0.0
        %1162 = vmatpush1.msra.mxu0 0.0
        %1163 = vmatprep.subr.mxu0 0.0
        %1164 = vmatpush1.msra.mxu0 0.0
        %1165 = vmatprep.subr.mxu0 0.0
        %1166 = vmatpush1.msra.mxu0 0.0
        %1167 = vmatprep.subr.mxu0 0.0
        %1168 = vmatpush1.msra.mxu0 0.0
        %1169 = vmatprep.mubr.f32.mxu0 0.0
        %1170 = vmatmul.mubr.f32.gmra.mrb[0].mxu0 %v1007
        %v1171 = vpop.f32.mrb[0].mxu0
        %v1172 = vadd.f32 0.0, %v1171
        %v1173 = vpop.f32.mrb[0].mxu0
        %1174 = vmatprep.mubr.f32.mxu0 0.0
        %1175 = vmatmul.mubr.f32.gmra.mrb[0].mxu0 %v1010
        %v1176 = vpop.f32.mrb[0].mxu0
        %v1177 = vadd.f32 0.0, %v1176
        %v1178 = vpop.f32.mrb[0].mxu0
        %1179 = vmatprep.mubr.f32.mxu0 0.0
        %1180 = vmatmul.mubr.f32.gmra.mrb[0].mxu0 %v1013
        %v1181 = vpop.f32.mrb[0].mxu0
        %v1182 = vadd.f32 0.0, %v1181
        %v1183 = vpop.f32.mrb[0].mxu0
        %1184 = vmatprep.mubr.f32.mxu0 0.0
        %1185 = vmatmul.mubr.f32.gmra.mrb[0].mxu0 %v1016
        %v1186 = vpop.f32.mrb[0].mxu0
        %v1187 = vadd.f32 0.0, %v1186
        %v1188 = vpop.f32.mrb[0].mxu0
        %1189 = vmatprep.mubr.f32.mxu0 0.0
        %1190 = vmatmul.mubr.f32.gmra.mrb[0].mxu0 %v1019
        %v1191 = vpop.f32.mrb[0].mxu0
        %v1192 = vadd.f32 0.0, %v1191
        %v1193 = vpop.f32.mrb[0].mxu0
        %1194 = vmatprep.mubr.f32.mxu0 0.0
        %1195 = vmatmul.mubr.f32.gmra.mrb[0].mxu0 %v1022
        %v1196 = vpop.f32.mrb[0].mxu0
        %v1197 = vadd.f32 0.0, %v1196
        %v1198 = vpop.f32.mrb[0].mxu0
        %1199 = vmatprep.mubr.f32.mxu0 0.0
        %1200 = vmatmul.mubr.f32.gmra.mrb[0].mxu0 %v1025
        %v1201 = vpop.f32.mrb[0].mxu0
        %v1202 = vadd.f32 0.0, %v1201
        %v1203 = vpop.f32.mrb[0].mxu0
        %1204 = vmatprep.mubr.f32.mxu0 0.0
        %1205 = vmatmul.mubr.f32.gmra.mrb[0].mxu0 %v1028
        %v1206 = vpop.f32.mrb[0].mxu0
        %v1207 = vadd.f32 0.0, %v1206
        %v1208 = vpop.f32.mrb[0].mxu0
        %1209 = vmatprep.mubr.f32.mxu0 0.0
        %1210 = vmatmul.mubr.f32.gmra.mrb[0].mxu0 %v1031
        %v1211 = vpop.f32.mrb[0].mxu0
        %v1212 = vadd.f32 0.0, %v1211
        %v1213 = vpop.f32.mrb[0].mxu0
        %1214 = vmatprep.mubr.f32.mxu0 0.0
        %1215 = vmatmul.mubr.f32.gmra.mrb[0].mxu0 %v1034
        %v1216 = vpop.f32.mrb[0].mxu0
        %v1217 = vadd.f32 0.0, %v1216
        %v1218 = vpop.f32.mrb[0].mxu0
        %1219 = vmatprep.mubr.f32.mxu0 0.0
        %1220 = vmatmul.mubr.f32.gmra.mrb[0].mxu0 %v1037
        %v1221 = vpop.f32.mrb[0].mxu0
        %v1222 = vadd.f32 0.0, %v1221
        %v1223 = vpop.f32.mrb[0].mxu0
        %1224 = vmatprep.mubr.f32.mxu0 0.0
        %1225 = vmatmul.mubr.f32.gmra.mrb[0].mxu0 %v1040
        %v1226 = vpop.f32.mrb[0].mxu0
        %v1227 = vadd.f32 0.0, %v1226
        %v1228 = vpop.f32.mrb[0].mxu0
        %1229 = vmatprep.mubr.f32.mxu0 0.0
        %1230 = vmatmul.mubr.f32.gmra.mrb[0].mxu0 %v1043
        %v1231 = vpop.f32.mrb[0].mxu0
        %v1232 = vadd.f32 0.0, %v1231
        %v1233 = vpop.f32.mrb[0].mxu0
        %1234 = vmatprep.mubr.f32.mxu0 0.0
        %1235 = vmatmul.mubr.f32.gmra.mrb[0].mxu0 %v1046
        %v1236 = vpop.f32.mrb[0].mxu0
        %v1237 = vadd.f32 0.0, %v1236
        %v1238 = vpop.f32.mrb[0].mxu0
        %1239 = vmatprep.mubr.f32.mxu0 0.0
        %1240 = vmatmul.mubr.f32.gmra.mrb[0].mxu0 %v1049
        %v1241 = vpop.f32.mrb[0].mxu0
        %v1242 = vadd.f32 0.0, %v1241
        %v1243 = vpop.f32.mrb[0].mxu0
        %1244 = vmatprep.mubr.f32.mxu0 0.0
        %1245 = vmatmul.mubr.f32.gmra.mrb[0].mxu0 %v1052
        %v1246 = vpop.f32.mrb[0].mxu0
        %v1247 = vadd.f32 0.0, %v1246
        %v1248 = vpop.f32.mrb[0].mxu0
        %1249 = vmatprep.mubr.f32.mxu0 0.0
        %1250 = vmatmul.mubr.f32.gmra.mrb[0].mxu0 %v1055
        %v1251 = vpop.f32.mrb[0].mxu0
        %v1252 = vadd.f32 0.0, %v1251
        %v1253 = vpop.f32.mrb[0].mxu0
        %1254 = vmatprep.mubr.f32.mxu0 0.0
        %1255 = vmatmul.mubr.f32.gmra.mrb[0].mxu0 %v1058
        %v1256 = vpop.f32.mrb[0].mxu0
        %v1257 = vadd.f32 0.0, %v1256
        %v1258 = vpop.f32.mrb[0].mxu0
        %1259 = vmatprep.mubr.f32.mxu0 0.0
        %1260 = vmatmul.mubr.f32.gmra.mrb[0].mxu0 %v1061
        %v1261 = vpop.f32.mrb[0].mxu0
        %v1262 = vadd.f32 0.0, %v1261
        %v1263 = vpop.f32.mrb[0].mxu0
        %1264 = vmatprep.mubr.f32.mxu0 0.0
        %1265 = vmatmul.mubr.f32.gmra.mrb[0].mxu0 %v1064
        %v1266 = vpop.f32.mrb[0].mxu0
        %v1267 = vadd.f32 0.0, %v1266
        %v1268 = vpop.f32.mrb[0].mxu0
        %1269 = vmatprep.mubr.f32.mxu0 0.0
        %1270 = vmatmul.mubr.f32.gmra.mrb[0].mxu0 %v1067
        %v1271 = vpop.f32.mrb[0].mxu0
        %v1272 = vadd.f32 0.0, %v1271
        %v1273 = vpop.f32.mrb[0].mxu0
        %1274 = vmatprep.mubr.f32.mxu0 0.0
        %1275 = vmatmul.mubr.f32.gmra.mrb[0].mxu0 %v1070
        %v1276 = vpop.f32.mrb[0].mxu0
        %v1277 = vadd.f32 0.0, %v1276
        %v1278 = vpop.f32.mrb[0].mxu0
        %1279 = vmatprep.mubr.f32.mxu0 0.0
        %1280 = vmatmul.mubr.f32.gmra.mrb[0].mxu0 %v1073
        %v1281 = vpop.f32.mrb[0].mxu0
        %v1282 = vadd.f32 0.0, %v1281
        %v1283 = vpop.f32.mrb[0].mxu0
        %1284 = vmatprep.mubr.f32.mxu0 0.0
        %1285 = vmatmul.mubr.f32.gmra.mrb[0].mxu0 %v1076
        %v1286 = vpop.f32.mrb[0].mxu0
        %v1287 = vadd.f32 0.0, %v1286
        %v1288 = vpop.f32.mrb[0].mxu0
        %1289 = vmatprep.mubr.f32.mxu0 0.0
        %1290 = vmatmul.mubr.f32.gmra.mrb[0].mxu0 %v1079
        %v1291 = vpop.f32.mrb[0].mxu0
        %v1292 = vadd.f32 0.0, %v1291
        %v1293 = vpop.f32.mrb[0].mxu0
        %1294 = vmatprep.mubr.f32.mxu0 0.0
        %1295 = vmatmul.mubr.f32.gmra.mrb[0].mxu0 %v1082
        %v1296 = vpop.f32.mrb[0].mxu0
        %v1297 = vadd.f32 0.0, %v1296
        %v1298 = vpop.f32.mrb[0].mxu0
        %1299 = vmatprep.mubr.f32.mxu0 0.0
        %1300 = vmatmul.mubr.f32.gmra.mrb[0].mxu0 %v1085
        %v1301 = vpop.f32.mrb[0].mxu0
        %v1302 = vadd.f32 0.0, %v1301
        %v1303 = vpop.f32.mrb[0].mxu0
        %1304 = vmatprep.mubr.f32.mxu0 0.0
        %1305 = vmatmul.mubr.f32.gmra.mrb[0].mxu0 %v1088
        %v1306 = vpop.f32.mrb[0].mxu0
        %v1307 = vadd.f32 0.0, %v1306
        %v1308 = vpop.f32.mrb[0].mxu0
        %1309 = vmatprep.mubr.f32.mxu0 0.0
        %1310 = vmatmul.mubr.f32.gmra.mrb[0].mxu0 %v1091
        %v1311 = vpop.f32.mrb[0].mxu0
        %v1312 = vadd.f32 0.0, %v1311
        %v1313 = vpop.f32.mrb[0].mxu0
        %1314 = vmatprep.mubr.f32.mxu0 0.0
        %1315 = vmatmul.mubr.f32.gmra.mrb[0].mxu0 %v1094
        %v1316 = vpop.f32.mrb[0].mxu0
        %v1317 = vadd.f32 0.0, %v1316
        %v1318 = vpop.f32.mrb[0].mxu0
        %1319 = vmatprep.mubr.f32.mxu0 0.0
        %1320 = vmatmul.mubr.f32.gmra.mrb[0].mxu0 %v1097
        %v1321 = vpop.f32.mrb[0].mxu0
        %v1322 = vadd.f32 0.0, %v1321
        %v1323 = vpop.f32.mrb[0].mxu0
        %1324 = vmatprep.mubr.f32.mxu0 0.0
        %1325 = vmatmul.mubr.f32.gmra.mrb[0].mxu0 %v1100
        %v1326 = vpop.f32.mrb[0].mxu0
        %v1327 = vadd.f32 0.0, %v1326
        %v1328 = vpop.f32.mrb[0].mxu0
        %1329 = vdwg.mxu0
        %v1330 = vadd.f32 %v814, %v1172
        %v1331 = vadd.f32 %v819, %v1177
        %v1332 = vadd.f32 %v824, %v1182
        %v1333 = vadd.f32 %v829, %v1187
        %v1334 = vadd.f32 %v834, %v1192
        %v1335 = vadd.f32 %v839, %v1197
        %v1336 = vadd.f32 %v844, %v1202
        %v1337 = vadd.f32 %v849, %v1207
        %v1338 = vadd.f32 %v854, %v1212
        %v1339 = vadd.f32 %v859, %v1217
        %v1340 = vadd.f32 %v864, %v1222
        %v1341 = vadd.f32 %v869, %v1227
        %v1342 = vadd.f32 %v874, %v1232
        %v1343 = vadd.f32 %v879, %v1237
        %v1344 = vadd.f32 %v884, %v1242
        %v1345 = vadd.f32 %v889, %v1247
        %v1346 = vadd.f32 %v894, %v1252
        %v1347 = vadd.f32 %v899, %v1257
        %v1348 = vadd.f32 %v904, %v1262
        %v1349 = vadd.f32 %v909, %v1267
        %v1350 = vadd.f32 %v914, %v1272
        %v1351 = vadd.f32 %v919, %v1277
        %v1352 = vadd.f32 %v924, %v1282
        %v1353 = vadd.f32 %v929, %v1287
        %v1354 = vadd.f32 %v934, %v1292
        %v1355 = vadd.f32 %v939, %v1297
        %v1356 = vadd.f32 %v944, %v1302
        %v1357 = vadd.f32 %v949, %v1307
        %v1358 = vadd.f32 %v954, %v1312
        %v1359 = vadd.f32 %v959, %v1317
        %v1360 = vadd.f32 %v964, %v1322
        %v1361 = vadd.f32 %v969, %v1327
        %s1362 = scalar_lea.vmem %s244, 24
        %v1363 = vld [vmem:[%s1362] sm:$0xff]
        %v1364 = vld [vmem:[%s1362 + $0x8] sm:$0xff]
        %v1365 = vld [vmem:[%s1362 + $0x18] sm:$0xff]
        %v1366 = vld [vmem:[%s1362 + $0x20] sm:$0xff]
        %v1367 = vld [vmem:[%s1362 + $0x30] sm:$0xff]
        %v1368 = vld [vmem:[%s1362 + $0x38] sm:$0xff]
        %v1369 = vld [vmem:[%s1362 + $0x48] sm:$0xff]
        %v1370 = vld [vmem:[%s1362 + $0x50] sm:$0xff]
        %v1371 = vld [vmem:[%s1362 + $0x60] sm:$0xff]
        %v1372 = vld [vmem:[%s1362 + $0x68] sm:$0xff]
        %v1373 = vld [vmem:[%s1362 + $0x78] sm:$0xff]
        %v1374 = vld [vmem:[%s1362 + $0x80] sm:$0xff]
        %v1375 = vld [vmem:[%s1362 + $0x90] sm:$0xff]
        %v1376 = vld [vmem:[%s1362 + $0x98] sm:$0xff]
        %v1377 = vld [vmem:[%s1362 + $0xa8] sm:$0xff]
        %v1378 = vld [vmem:[%s1362 + $0xb0] sm:$0xff]
        %v1379 = vld [vmem:[%s1362 + $0xc0] sm:$0xff]
        %v1380 = vld [vmem:[%s1362 + $0xc8] sm:$0xff]
        %v1381 = vld [vmem:[%s1362 + $0xd8] sm:$0xff]
        %v1382 = vld [vmem:[%s1362 + $0xe0] sm:$0xff]
        %v1383 = vld [vmem:[%s1362 + $0xf0] sm:$0xff]
        %v1384 = vld [vmem:[%s1362 + $0xf8] sm:$0xff]
        %v1385 = vld [vmem:[%s1362 + $0x108] sm:$0xff]
        %v1386 = vld [vmem:[%s1362 + $0x110] sm:$0xff]
        %v1387 = vld [vmem:[%s1362 + $0x120] sm:$0xff]
        %v1388 = vld [vmem:[%s1362 + $0x128] sm:$0xff]
        %v1389 = vld [vmem:[%s1362 + $0x138] sm:$0xff]
        %v1390 = vld [vmem:[%s1362 + $0x140] sm:$0xff]
        %v1391 = vld [vmem:[%s1362 + $0x150] sm:$0xff]
        %v1392 = vld [vmem:[%s1362 + $0x158] sm:$0xff]
        %v1393 = vld [vmem:[%s1362 + $0x168] sm:$0xff]
        %v1394 = vld [vmem:[%s1362 + $0x170] sm:$0xff]
        %s1395 = scalar_lea.vmem %s248, 12
        %v1396 = vld [vmem:[%s1395] sm:$0xf]
        %v1398 = vsel %vm322, %v1363, 0
        %v1401 = vsel %vm322, %v1364, 0
        %v1404 = vsel %vm322, %v1365, 0
        %v1407 = vsel %vm322, %v1366, 0
        %v1410 = vsel %vm322, %v1367, 0
        %v1413 = vsel %vm322, %v1368, 0
        %v1416 = vsel %vm322, %v1369, 0
        %v1419 = vsel %vm322, %v1370, 0
        %v1422 = vsel %vm322, %v1371, 0
        %v1425 = vsel %vm322, %v1372, 0
        %v1428 = vsel %vm322, %v1373, 0
        %v1431 = vsel %vm322, %v1374, 0
        %v1434 = vsel %vm322, %v1375, 0
        %v1437 = vsel %vm322, %v1376, 0
        %v1440 = vsel %vm322, %v1377, 0
        %v1443 = vsel %vm322, %v1378, 0
        %v1446 = vsel %vm322, %v1379, 0
        %v1449 = vsel %vm322, %v1380, 0
        %v1452 = vsel %vm322, %v1381, 0
        %v1455 = vsel %vm322, %v1382, 0
        %v1458 = vsel %vm322, %v1383, 0
        %v1461 = vsel %vm322, %v1384, 0
        %v1464 = vsel %vm322, %v1385, 0
        %v1467 = vsel %vm322, %v1386, 0
        %v1470 = vsel %vm322, %v1387, 0
        %v1473 = vsel %vm322, %v1388, 0
        %v1476 = vsel %vm322, %v1389, 0
        %v1479 = vsel %vm322, %v1390, 0
        %v1482 = vsel %vm322, %v1391, 0
        %v1485 = vsel %vm322, %v1392, 0
        %v1488 = vsel %vm322, %v1393, 0
        %v1491 = vsel %vm322, %v1394, 0
        %v1494 = vsel %vm419, %v1396, 0
        %1496 = vmatprep.subr.mxu0 0.0
        %1497 = vmatpush1.msra.mxu0 %v1494
        %1498 = vmatprep.subr.mxu0 0.0
        %1499 = vmatpush1.msra.mxu0 0.0
        %1500 = vmatprep.subr.mxu0 0.0
        %1501 = vmatpush1.msra.mxu0 0.0
        %1502 = vmatprep.subr.mxu0 0.0
        %1503 = vmatpush1.msra.mxu0 0.0
        %1504 = vmatprep.subr.mxu0 0.0
        %1505 = vmatpush1.msra.mxu0 0.0
        %1506 = vmatprep.subr.mxu0 0.0
        %1507 = vmatpush1.msra.mxu0 0.0
        %1508 = vmatprep.subr.mxu0 0.0
        %1509 = vmatpush1.msra.mxu0 0.0
        %1510 = vmatprep.subr.mxu0 0.0
        %1511 = vmatpush1.msra.mxu0 0.0
        %1512 = vmatprep.subr.mxu0 0.0
        %1513 = vmatpush1.msra.mxu0 0.0
        %1514 = vmatprep.subr.mxu0 0.0
        %1515 = vmatpush1.msra.mxu0 0.0
        %1516 = vmatprep.subr.mxu0 0.0
        %1517 = vmatpush1.msra.mxu0 0.0
        %1518 = vmatprep.subr.mxu0 0.0
        %1519 = vmatpush1.msra.mxu0 0.0
        %1520 = vmatprep.subr.mxu0 0.0
        %1521 = vmatpush1.msra.mxu0 0.0
        %1522 = vmatprep.subr.mxu0 0.0
        %1523 = vmatpush1.msra.mxu0 0.0
        %1524 = vmatprep.subr.mxu0 0.0
        %1525 = vmatpush1.msra.mxu0 0.0
        %1526 = vmatprep.subr.mxu0 0.0
        %1527 = vmatpush1.msra.mxu0 0.0
        %1528 = vmatprep.subr.mxu0 0.0
        %1529 = vmatpush1.msra.mxu0 0.0
        %1530 = vmatprep.subr.mxu0 0.0
        %1531 = vmatpush1.msra.mxu0 0.0
        %1532 = vmatprep.subr.mxu0 0.0
        %1533 = vmatpush1.msra.mxu0 0.0
        %1534 = vmatprep.subr.mxu0 0.0
        %1535 = vmatpush1.msra.mxu0 0.0
        %1536 = vmatprep.subr.mxu0 0.0
        %1537 = vmatpush1.msra.mxu0 0.0
        %1538 = vmatprep.subr.mxu0 0.0
        %1539 = vmatpush1.msra.mxu0 0.0
        %1540 = vmatprep.subr.mxu0 0.0
        %1541 = vmatpush1.msra.mxu0 0.0
        %1542 = vmatprep.subr.mxu0 0.0
        %1543 = vmatpush1.msra.mxu0 0.0
        %1544 = vmatprep.subr.mxu0 0.0
        %1545 = vmatpush1.msra.mxu0 0.0
        %1546 = vmatprep.subr.mxu0 0.0
        %1547 = vmatpush1.msra.mxu0 0.0
        %1548 = vmatprep.subr.mxu0 0.0
        %1549 = vmatpush1.msra.mxu0 0.0
        %1550 = vmatprep.subr.mxu0 0.0
        %1551 = vmatpush1.msra.mxu0 0.0
        %1552 = vmatprep.subr.mxu0 0.0
        %1553 = vmatpush1.msra.mxu0 0.0
        %1554 = vmatprep.subr.mxu0 0.0
        %1555 = vmatpush1.msra.mxu0 0.0
        %1556 = vmatprep.subr.mxu0 0.0
        %1557 = vmatpush1.msra.mxu0 0.0
        %1558 = vmatprep.subr.mxu0 0.0
        %1559 = vmatpush1.msra.mxu0 0.0
        %1560 = vmatprep.mubr.f32.mxu0 0.0
        %1561 = vmatmul.mubr.f32.gmra.mrb[0].mxu0 %v1398
        %v1562 = vpop.f32.mrb[0].mxu0
        %v1563 = vadd.f32 0.0, %v1562
        %v1564 = vpop.f32.mrb[0].mxu0
        %1565 = vmatprep.mubr.f32.mxu0 0.0
        %1566 = vmatmul.mubr.f32.gmra.mrb[0].mxu0 %v1401
        %v1567 = vpop.f32.mrb[0].mxu0
        %v1568 = vadd.f32 0.0, %v1567
        %v1569 = vpop.f32.mrb[0].mxu0
        %1570 = vmatprep.mubr.f32.mxu0 0.0
        %1571 = vmatmul.mubr.f32.gmra.mrb[0].mxu0 %v1404
        %v1572 = vpop.f32.mrb[0].mxu0
        %v1573 = vadd.f32 0.0, %v1572
        %v1574 = vpop.f32.mrb[0].mxu0
        %1575 = vmatprep.mubr.f32.mxu0 0.0
        %1576 = vmatmul.mubr.f32.gmra.mrb[0].mxu0 %v1407
        %v1577 = vpop.f32.mrb[0].mxu0
        %v1578 = vadd.f32 0.0, %v1577
        %v1579 = vpop.f32.mrb[0].mxu0
        %1580 = vmatprep.mubr.f32.mxu0 0.0
        %1581 = vmatmul.mubr.f32.gmra.mrb[0].mxu0 %v1410
        %v1582 = vpop.f32.mrb[0].mxu0
        %v1583 = vadd.f32 0.0, %v1582
        %v1584 = vpop.f32.mrb[0].mxu0
        %1585 = vmatprep.mubr.f32.mxu0 0.0
        %1586 = vmatmul.mubr.f32.gmra.mrb[0].mxu0 %v1413
        %v1587 = vpop.f32.mrb[0].mxu0
        %v1588 = vadd.f32 0.0, %v1587
        %v1589 = vpop.f32.mrb[0].mxu0
        %1590 = vmatprep.mubr.f32.mxu0 0.0
        %1591 = vmatmul.mubr.f32.gmra.mrb[0].mxu0 %v1416
        %v1592 = vpop.f32.mrb[0].mxu0
        %v1593 = vadd.f32 0.0, %v1592
        %v1594 = vpop.f32.mrb[0].mxu0
        %1595 = vmatprep.mubr.f32.mxu0 0.0
        %1596 = vmatmul.mubr.f32.gmra.mrb[0].mxu0 %v1419
        %v1597 = vpop.f32.mrb[0].mxu0
        %v1598 = vadd.f32 0.0, %v1597
        %v1599 = vpop.f32.mrb[0].mxu0
        %1600 = vmatprep.mubr.f32.mxu0 0.0
        %1601 = vmatmul.mubr.f32.gmra.mrb[0].mxu0 %v1422
        %v1602 = vpop.f32.mrb[0].mxu0
        %v1603 = vadd.f32 0.0, %v1602
        %v1604 = vpop.f32.mrb[0].mxu0
        %1605 = vmatprep.mubr.f32.mxu0 0.0
        %1606 = vmatmul.mubr.f32.gmra.mrb[0].mxu0 %v1425
        %v1607 = vpop.f32.mrb[0].mxu0
        %v1608 = vadd.f32 0.0, %v1607
        %v1609 = vpop.f32.mrb[0].mxu0
        %1610 = vmatprep.mubr.f32.mxu0 0.0
        %1611 = vmatmul.mubr.f32.gmra.mrb[0].mxu0 %v1428
        %v1612 = vpop.f32.mrb[0].mxu0
        %v1613 = vadd.f32 0.0, %v1612
        %v1614 = vpop.f32.mrb[0].mxu0
        %1615 = vmatprep.mubr.f32.mxu0 0.0
        %1616 = vmatmul.mubr.f32.gmra.mrb[0].mxu0 %v1431
        %v1617 = vpop.f32.mrb[0].mxu0
        %v1618 = vadd.f32 0.0, %v1617
        %v1619 = vpop.f32.mrb[0].mxu0
        %1620 = vmatprep.mubr.f32.mxu0 0.0
        %1621 = vmatmul.mubr.f32.gmra.mrb[0].mxu0 %v1434
        %v1622 = vpop.f32.mrb[0].mxu0
        %v1623 = vadd.f32 0.0, %v1622
        %v1624 = vpop.f32.mrb[0].mxu0
        %1625 = vmatprep.mubr.f32.mxu0 0.0
        %1626 = vmatmul.mubr.f32.gmra.mrb[0].mxu0 %v1437
        %v1627 = vpop.f32.mrb[0].mxu0
        %v1628 = vadd.f32 0.0, %v1627
        %v1629 = vpop.f32.mrb[0].mxu0
        %1630 = vmatprep.mubr.f32.mxu0 0.0
        %1631 = vmatmul.mubr.f32.gmra.mrb[0].mxu0 %v1440
        %v1632 = vpop.f32.mrb[0].mxu0
        %v1633 = vadd.f32 0.0, %v1632
        %v1634 = vpop.f32.mrb[0].mxu0
        %1635 = vmatprep.mubr.f32.mxu0 0.0
        %1636 = vmatmul.mubr.f32.gmra.mrb[0].mxu0 %v1443
        %v1637 = vpop.f32.mrb[0].mxu0
        %v1638 = vadd.f32 0.0, %v1637
        %v1639 = vpop.f32.mrb[0].mxu0
        %1640 = vmatprep.mubr.f32.mxu0 0.0
        %1641 = vmatmul.mubr.f32.gmra.mrb[0].mxu0 %v1446
        %v1642 = vpop.f32.mrb[0].mxu0
        %v1643 = vadd.f32 0.0, %v1642
        %v1644 = vpop.f32.mrb[0].mxu0
        %1645 = vmatprep.mubr.f32.mxu0 0.0
        %1646 = vmatmul.mubr.f32.gmra.mrb[0].mxu0 %v1449
        %v1647 = vpop.f32.mrb[0].mxu0
        %v1648 = vadd.f32 0.0, %v1647
        %v1649 = vpop.f32.mrb[0].mxu0
        %1650 = vmatprep.mubr.f32.mxu0 0.0
        %1651 = vmatmul.mubr.f32.gmra.mrb[0].mxu0 %v1452
        %v1652 = vpop.f32.mrb[0].mxu0
        %v1653 = vadd.f32 0.0, %v1652
        %v1654 = vpop.f32.mrb[0].mxu0
        %1655 = vmatprep.mubr.f32.mxu0 0.0
        %1656 = vmatmul.mubr.f32.gmra.mrb[0].mxu0 %v1455
        %v1657 = vpop.f32.mrb[0].mxu0
        %v1658 = vadd.f32 0.0, %v1657
        %v1659 = vpop.f32.mrb[0].mxu0
        %1660 = vmatprep.mubr.f32.mxu0 0.0
        %1661 = vmatmul.mubr.f32.gmra.mrb[0].mxu0 %v1458
        %v1662 = vpop.f32.mrb[0].mxu0
        %v1663 = vadd.f32 0.0, %v1662
        %v1664 = vpop.f32.mrb[0].mxu0
        %1665 = vmatprep.mubr.f32.mxu0 0.0
        %1666 = vmatmul.mubr.f32.gmra.mrb[0].mxu0 %v1461
        %v1667 = vpop.f32.mrb[0].mxu0
        %v1668 = vadd.f32 0.0, %v1667
        %v1669 = vpop.f32.mrb[0].mxu0
        %1670 = vmatprep.mubr.f32.mxu0 0.0
        %1671 = vmatmul.mubr.f32.gmra.mrb[0].mxu0 %v1464
        %v1672 = vpop.f32.mrb[0].mxu0
        %v1673 = vadd.f32 0.0, %v1672
        %v1674 = vpop.f32.mrb[0].mxu0
        %1675 = vmatprep.mubr.f32.mxu0 0.0
        %1676 = vmatmul.mubr.f32.gmra.mrb[0].mxu0 %v1467
        %v1677 = vpop.f32.mrb[0].mxu0
        %v1678 = vadd.f32 0.0, %v1677
        %v1679 = vpop.f32.mrb[0].mxu0
        %1680 = vmatprep.mubr.f32.mxu0 0.0
        %1681 = vmatmul.mubr.f32.gmra.mrb[0].mxu0 %v1470
        %v1682 = vpop.f32.mrb[0].mxu0
        %v1683 = vadd.f32 0.0, %v1682
        %v1684 = vpop.f32.mrb[0].mxu0
        %1685 = vmatprep.mubr.f32.mxu0 0.0
        %1686 = vmatmul.mubr.f32.gmra.mrb[0].mxu0 %v1473
        %v1687 = vpop.f32.mrb[0].mxu0
        %v1688 = vadd.f32 0.0, %v1687
        %v1689 = vpop.f32.mrb[0].mxu0
        %1690 = vmatprep.mubr.f32.mxu0 0.0
        %1691 = vmatmul.mubr.f32.gmra.mrb[0].mxu0 %v1476
        %v1692 = vpop.f32.mrb[0].mxu0
        %v1693 = vadd.f32 0.0, %v1692
        %v1694 = vpop.f32.mrb[0].mxu0
        %1695 = vmatprep.mubr.f32.mxu0 0.0
        %1696 = vmatmul.mubr.f32.gmra.mrb[0].mxu0 %v1479
        %v1697 = vpop.f32.mrb[0].mxu0
        %v1698 = vadd.f32 0.0, %v1697
        %v1699 = vpop.f32.mrb[0].mxu0
        %1700 = vmatprep.mubr.f32.mxu0 0.0
        %1701 = vmatmul.mubr.f32.gmra.mrb[0].mxu0 %v1482
        %v1702 = vpop.f32.mrb[0].mxu0
        %v1703 = vadd.f32 0.0, %v1702
        %v1704 = vpop.f32.mrb[0].mxu0
        %1705 = vmatprep.mubr.f32.mxu0 0.0
        %1706 = vmatmul.mubr.f32.gmra.mrb[0].mxu0 %v1485
        %v1707 = vpop.f32.mrb[0].mxu0
        %v1708 = vadd.f32 0.0, %v1707
        %v1709 = vpop.f32.mrb[0].mxu0
        %1710 = vmatprep.mubr.f32.mxu0 0.0
        %1711 = vmatmul.mubr.f32.gmra.mrb[0].mxu0 %v1488
        %v1712 = vpop.f32.mrb[0].mxu0
        %v1713 = vadd.f32 0.0, %v1712
        %v1714 = vpop.f32.mrb[0].mxu0
        %1715 = vmatprep.mubr.f32.mxu0 0.0
        %1716 = vmatmul.mubr.f32.gmra.mrb[0].mxu0 %v1491
        %v1717 = vpop.f32.mrb[0].mxu0
        %v1718 = vadd.f32 0.0, %v1717
        %v1719 = vpop.f32.mrb[0].mxu0
        %1720 = vdwg.mxu0
        %v1721 = vadd.f32 %v1330, %v1563
        %v1722 = vadd.f32 %v1331, %v1568
        %v1723 = vadd.f32 %v1332, %v1573
        %v1724 = vadd.f32 %v1333, %v1578
        %v1725 = vadd.f32 %v1334, %v1583
        %v1726 = vadd.f32 %v1335, %v1588
        %v1727 = vadd.f32 %v1336, %v1593
        %v1728 = vadd.f32 %v1337, %v1598
        %v1729 = vadd.f32 %v1338, %v1603
        %v1730 = vadd.f32 %v1339, %v1608
        %v1731 = vadd.f32 %v1340, %v1613
        %v1732 = vadd.f32 %v1341, %v1618
        %v1733 = vadd.f32 %v1342, %v1623
        %v1734 = vadd.f32 %v1343, %v1628
        %v1735 = vadd.f32 %v1344, %v1633
        %v1736 = vadd.f32 %v1345, %v1638
        %v1737 = vadd.f32 %v1346, %v1643
        %v1738 = vadd.f32 %v1347, %v1648
        %v1739 = vadd.f32 %v1348, %v1653
        %v1740 = vadd.f32 %v1349, %v1658
        %v1741 = vadd.f32 %v1350, %v1663
        %v1742 = vadd.f32 %v1351, %v1668
        %v1743 = vadd.f32 %v1352, %v1673
        %v1744 = vadd.f32 %v1353, %v1678
        %v1745 = vadd.f32 %v1354, %v1683
        %v1746 = vadd.f32 %v1355, %v1688
        %v1747 = vadd.f32 %v1356, %v1693
        %v1748 = vadd.f32 %v1357, %v1698
        %v1749 = vadd.f32 %v1358, %v1703
        %v1750 = vadd.f32 %v1359, %v1708
        %v1751 = vadd.f32 %v1360, %v1713
        %v1752 = vadd.f32 %v1361, %v1718
        %v1753 = vld [vmem:[%s1362 + $0x1] sm:$0xff]
        %v1754 = vld [vmem:[%s1362 + $0x9] sm:$0xff]
        %v1755 = vld [vmem:[%s1362 + $0x19] sm:$0xff]
        %v1756 = vld [vmem:[%s1362 + $0x21] sm:$0xff]
        %v1757 = vld [vmem:[%s1362 + $0x31] sm:$0xff]
        %v1758 = vld [vmem:[%s1362 + $0x39] sm:$0xff]
        %v1759 = vld [vmem:[%s1362 + $0x49] sm:$0xff]
        %v1760 = vld [vmem:[%s1362 + $0x51] sm:$0xff]
        %v1761 = vld [vmem:[%s1362 + $0x61] sm:$0xff]
        %v1762 = vld [vmem:[%s1362 + $0x69] sm:$0xff]
        %v1763 = vld [vmem:[%s1362 + $0x79] sm:$0xff]
        %v1764 = vld [vmem:[%s1362 + $0x81] sm:$0xff]
        %v1765 = vld [vmem:[%s1362 + $0x91] sm:$0xff]
        %v1766 = vld [vmem:[%s1362 + $0x99] sm:$0xff]
        %v1767 = vld [vmem:[%s1362 + $0xa9] sm:$0xff]
        %v1768 = vld [vmem:[%s1362 + $0xb1] sm:$0xff]
        %v1769 = vld [vmem:[%s1362 + $0xc1] sm:$0xff]
        %v1770 = vld [vmem:[%s1362 + $0xc9] sm:$0xff]
        %v1771 = vld [vmem:[%s1362 + $0xd9] sm:$0xff]
        %v1772 = vld [vmem:[%s1362 + $0xe1] sm:$0xff]
        %v1773 = vld [vmem:[%s1362 + $0xf1] sm:$0xff]
        %v1774 = vld [vmem:[%s1362 + $0xf9] sm:$0xff]
        %v1775 = vld [vmem:[%s1362 + $0x109] sm:$0xff]
        %v1776 = vld [vmem:[%s1362 + $0x111] sm:$0xff]
        %v1777 = vld [vmem:[%s1362 + $0x121] sm:$0xff]
        %v1778 = vld [vmem:[%s1362 + $0x129] sm:$0xff]
        %v1779 = vld [vmem:[%s1362 + $0x139] sm:$0xff]
        %v1780 = vld [vmem:[%s1362 + $0x141] sm:$0xff]
        %v1781 = vld [vmem:[%s1362 + $0x151] sm:$0xff]
        %v1782 = vld [vmem:[%s1362 + $0x159] sm:$0xff]
        %v1783 = vld [vmem:[%s1362 + $0x169] sm:$0xff]
        %v1784 = vld [vmem:[%s1362 + $0x171] sm:$0xff]
        %s1785 = scalar_lea.vmem %s248, 16
        %v1786 = vld [vmem:[%s1785] sm:$0xf]
        %v1788 = vsel %vm322, %v1753, 0
        %v1791 = vsel %vm322, %v1754, 0
        %v1794 = vsel %vm322, %v1755, 0
        %v1797 = vsel %vm322, %v1756, 0
        %v1800 = vsel %vm322, %v1757, 0
        %v1803 = vsel %vm322, %v1758, 0
        %v1806 = vsel %vm322, %v1759, 0
        %v1809 = vsel %vm322, %v1760, 0
        %v1812 = vsel %vm322, %v1761, 0
        %v1815 = vsel %vm322, %v1762, 0
        %v1818 = vsel %vm322, %v1763, 0
        %v1821 = vsel %vm322, %v1764, 0
        %v1824 = vsel %vm322, %v1765, 0
        %v1827 = vsel %vm322, %v1766, 0
        %v1830 = vsel %vm322, %v1767, 0
        %v1833 = vsel %vm322, %v1768, 0
        %v1836 = vsel %vm322, %v1769, 0
        %v1839 = vsel %vm322, %v1770, 0
        %v1842 = vsel %vm322, %v1771, 0
        %v1845 = vsel %vm322, %v1772, 0
        %v1848 = vsel %vm322, %v1773, 0
        %v1851 = vsel %vm322, %v1774, 0
        %v1854 = vsel %vm322, %v1775, 0
        %v1857 = vsel %vm322, %v1776, 0
        %v1860 = vsel %vm322, %v1777, 0
        %v1863 = vsel %vm322, %v1778, 0
        %v1866 = vsel %vm322, %v1779, 0
        %v1869 = vsel %vm322, %v1780, 0
        %v1872 = vsel %vm322, %v1781, 0
        %v1875 = vsel %vm322, %v1782, 0
        %v1878 = vsel %vm322, %v1783, 0
        %v1881 = vsel %vm322, %v1784, 0
        %v1884 = vsel %vm419, %v1786, 0
        %1886 = vmatprep.subr.mxu0 0.0
        %1887 = vmatpush1.msra.mxu0 %v1884
        %1888 = vmatprep.subr.mxu0 0.0
        %1889 = vmatpush1.msra.mxu0 0.0
        %1890 = vmatprep.subr.mxu0 0.0
        %1891 = vmatpush1.msra.mxu0 0.0
        %1892 = vmatprep.subr.mxu0 0.0
        %1893 = vmatpush1.msra.mxu0 0.0
        %1894 = vmatprep.subr.mxu0 0.0
        %1895 = vmatpush1.msra.mxu0 0.0
        %1896 = vmatprep.subr.mxu0 0.0
        %1897 = vmatpush1.msra.mxu0 0.0
        %1898 = vmatprep.subr.mxu0 0.0
        %1899 = vmatpush1.msra.mxu0 0.0
        %1900 = vmatprep.subr.mxu0 0.0
        %1901 = vmatpush1.msra.mxu0 0.0
        %1902 = vmatprep.subr.mxu0 0.0
        %1903 = vmatpush1.msra.mxu0 0.0
        %1904 = vmatprep.subr.mxu0 0.0
        %1905 = vmatpush1.msra.mxu0 0.0
        %1906 = vmatprep.subr.mxu0 0.0
        %1907 = vmatpush1.msra.mxu0 0.0
        %1908 = vmatprep.subr.mxu0 0.0
        %1909 = vmatpush1.msra.mxu0 0.0
        %1910 = vmatprep.subr.mxu0 0.0
        %1911 = vmatpush1.msra.mxu0 0.0
        %1912 = vmatprep.subr.mxu0 0.0
        %1913 = vmatpush1.msra.mxu0 0.0
        %1914 = vmatprep.subr.mxu0 0.0
        %1915 = vmatpush1.msra.mxu0 0.0
        %1916 = vmatprep.subr.mxu0 0.0
        %1917 = vmatpush1.msra.mxu0 0.0
        %1918 = vmatprep.subr.mxu0 0.0
        %1919 = vmatpush1.msra.mxu0 0.0
        %1920 = vmatprep.subr.mxu0 0.0
        %1921 = vmatpush1.msra.mxu0 0.0
        %1922 = vmatprep.subr.mxu0 0.0
        %1923 = vmatpush1.msra.mxu0 0.0
        %1924 = vmatprep.subr.mxu0 0.0
        %1925 = vmatpush1.msra.mxu0 0.0
        %1926 = vmatprep.subr.mxu0 0.0
        %1927 = vmatpush1.msra.mxu0 0.0
        %1928 = vmatprep.subr.mxu0 0.0
        %1929 = vmatpush1.msra.mxu0 0.0
        %1930 = vmatprep.subr.mxu0 0.0
        %1931 = vmatpush1.msra.mxu0 0.0
        %1932 = vmatprep.subr.mxu0 0.0
        %1933 = vmatpush1.msra.mxu0 0.0
        %1934 = vmatprep.subr.mxu0 0.0
        %1935 = vmatpush1.msra.mxu0 0.0
        %1936 = vmatprep.subr.mxu0 0.0
        %1937 = vmatpush1.msra.mxu0 0.0
        %1938 = vmatprep.subr.mxu0 0.0
        %1939 = vmatpush1.msra.mxu0 0.0
        %1940 = vmatprep.subr.mxu0 0.0
        %1941 = vmatpush1.msra.mxu0 0.0
        %1942 = vmatprep.subr.mxu0 0.0
        %1943 = vmatpush1.msra.mxu0 0.0
        %1944 = vmatprep.subr.mxu0 0.0
        %1945 = vmatpush1.msra.mxu0 0.0
        %1946 = vmatprep.subr.mxu0 0.0
        %1947 = vmatpush1.msra.mxu0 0.0
        %1948 = vmatprep.subr.mxu0 0.0
        %1949 = vmatpush1.msra.mxu0 0.0
        %1950 = vmatprep.mubr.f32.mxu0 0.0
        %1951 = vmatmul.mubr.f32.gmra.mrb[0].mxu0 %v1788
        %v1952 = vpop.f32.mrb[0].mxu0
        %v1953 = vadd.f32 0.0, %v1952
        %v1954 = vpop.f32.mrb[0].mxu0
        %1955 = vmatprep.mubr.f32.mxu0 0.0
        %1956 = vmatmul.mubr.f32.gmra.mrb[0].mxu0 %v1791
        %v1957 = vpop.f32.mrb[0].mxu0
        %v1958 = vadd.f32 0.0, %v1957
        %v1959 = vpop.f32.mrb[0].mxu0
        %1960 = vmatprep.mubr.f32.mxu0 0.0
        %1961 = vmatmul.mubr.f32.gmra.mrb[0].mxu0 %v1794
        %v1962 = vpop.f32.mrb[0].mxu0
        %v1963 = vadd.f32 0.0, %v1962
        %v1964 = vpop.f32.mrb[0].mxu0
        %1965 = vmatprep.mubr.f32.mxu0 0.0
        %1966 = vmatmul.mubr.f32.gmra.mrb[0].mxu0 %v1797
        %v1967 = vpop.f32.mrb[0].mxu0
        %v1968 = vadd.f32 0.0, %v1967
        %v1969 = vpop.f32.mrb[0].mxu0
        %1970 = vmatprep.mubr.f32.mxu0 0.0
        %1971 = vmatmul.mubr.f32.gmra.mrb[0].mxu0 %v1800
        %v1972 = vpop.f32.mrb[0].mxu0
        %v1973 = vadd.f32 0.0, %v1972
        %v1974 = vpop.f32.mrb[0].mxu0
        %1975 = vmatprep.mubr.f32.mxu0 0.0
        %1976 = vmatmul.mubr.f32.gmra.mrb[0].mxu0 %v1803
        %v1977 = vpop.f32.mrb[0].mxu0
        %v1978 = vadd.f32 0.0, %v1977
        %v1979 = vpop.f32.mrb[0].mxu0
        %1980 = vmatprep.mubr.f32.mxu0 0.0
        %1981 = vmatmul.mubr.f32.gmra.mrb[0].mxu0 %v1806
        %v1982 = vpop.f32.mrb[0].mxu0
        %v1983 = vadd.f32 0.0, %v1982
        %v1984 = vpop.f32.mrb[0].mxu0
        %1985 = vmatprep.mubr.f32.mxu0 0.0
        %1986 = vmatmul.mubr.f32.gmra.mrb[0].mxu0 %v1809
        %v1987 = vpop.f32.mrb[0].mxu0
        %v1988 = vadd.f32 0.0, %v1987
        %v1989 = vpop.f32.mrb[0].mxu0
        %1990 = vmatprep.mubr.f32.mxu0 0.0
        %1991 = vmatmul.mubr.f32.gmra.mrb[0].mxu0 %v1812
        %v1992 = vpop.f32.mrb[0].mxu0
        %v1993 = vadd.f32 0.0, %v1992
        %v1994 = vpop.f32.mrb[0].mxu0
        %1995 = vmatprep.mubr.f32.mxu0 0.0
        %1996 = vmatmul.mubr.f32.gmra.mrb[0].mxu0 %v1815
        %v1997 = vpop.f32.mrb[0].mxu0
        %v1998 = vadd.f32 0.0, %v1997
        %v1999 = vpop.f32.mrb[0].mxu0
        %2000 = vmatprep.mubr.f32.mxu0 0.0
        %2001 = vmatmul.mubr.f32.gmra.mrb[0].mxu0 %v1818
        %v2002 = vpop.f32.mrb[0].mxu0
        %v2003 = vadd.f32 0.0, %v2002
        %v2004 = vpop.f32.mrb[0].mxu0
        %2005 = vmatprep.mubr.f32.mxu0 0.0
        %2006 = vmatmul.mubr.f32.gmra.mrb[0].mxu0 %v1821
        %v2007 = vpop.f32.mrb[0].mxu0
        %v2008 = vadd.f32 0.0, %v2007
        %v2009 = vpop.f32.mrb[0].mxu0
        %2010 = vmatprep.mubr.f32.mxu0 0.0
        %2011 = vmatmul.mubr.f32.gmra.mrb[0].mxu0 %v1824
        %v2012 = vpop.f32.mrb[0].mxu0
        %v2013 = vadd.f32 0.0, %v2012
        %v2014 = vpop.f32.mrb[0].mxu0
        %2015 = vmatprep.mubr.f32.mxu0 0.0
        %2016 = vmatmul.mubr.f32.gmra.mrb[0].mxu0 %v1827
        %v2017 = vpop.f32.mrb[0].mxu0
        %v2018 = vadd.f32 0.0, %v2017
        %v2019 = vpop.f32.mrb[0].mxu0
        %2020 = vmatprep.mubr.f32.mxu0 0.0
        %2021 = vmatmul.mubr.f32.gmra.mrb[0].mxu0 %v1830
        %v2022 = vpop.f32.mrb[0].mxu0
        %v2023 = vadd.f32 0.0, %v2022
        %v2024 = vpop.f32.mrb[0].mxu0
        %2025 = vmatprep.mubr.f32.mxu0 0.0
        %2026 = vmatmul.mubr.f32.gmra.mrb[0].mxu0 %v1833
        %v2027 = vpop.f32.mrb[0].mxu0
        %v2028 = vadd.f32 0.0, %v2027
        %v2029 = vpop.f32.mrb[0].mxu0
        %2030 = vmatprep.mubr.f32.mxu0 0.0
        %2031 = vmatmul.mubr.f32.gmra.mrb[0].mxu0 %v1836
        %v2032 = vpop.f32.mrb[0].mxu0
        %v2033 = vadd.f32 0.0, %v2032
        %v2034 = vpop.f32.mrb[0].mxu0
        %2035 = vmatprep.mubr.f32.mxu0 0.0
        %2036 = vmatmul.mubr.f32.gmra.mrb[0].mxu0 %v1839
        %v2037 = vpop.f32.mrb[0].mxu0
        %v2038 = vadd.f32 0.0, %v2037
        %v2039 = vpop.f32.mrb[0].mxu0
        %2040 = vmatprep.mubr.f32.mxu0 0.0
        %2041 = vmatmul.mubr.f32.gmra.mrb[0].mxu0 %v1842
        %v2042 = vpop.f32.mrb[0].mxu0
        %v2043 = vadd.f32 0.0, %v2042
        %v2044 = vpop.f32.mrb[0].mxu0
        %2045 = vmatprep.mubr.f32.mxu0 0.0
        %2046 = vmatmul.mubr.f32.gmra.mrb[0].mxu0 %v1845
        %v2047 = vpop.f32.mrb[0].mxu0
        %v2048 = vadd.f32 0.0, %v2047
        %v2049 = vpop.f32.mrb[0].mxu0
        %2050 = vmatprep.mubr.f32.mxu0 0.0
        %2051 = vmatmul.mubr.f32.gmra.mrb[0].mxu0 %v1848
        %v2052 = vpop.f32.mrb[0].mxu0
        %v2053 = vadd.f32 0.0, %v2052
        %v2054 = vpop.f32.mrb[0].mxu0
        %2055 = vmatprep.mubr.f32.mxu0 0.0
        %2056 = vmatmul.mubr.f32.gmra.mrb[0].mxu0 %v1851
        %v2057 = vpop.f32.mrb[0].mxu0
        %v2058 = vadd.f32 0.0, %v2057
        %v2059 = vpop.f32.mrb[0].mxu0
        %2060 = vmatprep.mubr.f32.mxu0 0.0
        %2061 = vmatmul.mubr.f32.gmra.mrb[0].mxu0 %v1854
        %v2062 = vpop.f32.mrb[0].mxu0
        %v2063 = vadd.f32 0.0, %v2062
        %v2064 = vpop.f32.mrb[0].mxu0
        %2065 = vmatprep.mubr.f32.mxu0 0.0
        %2066 = vmatmul.mubr.f32.gmra.mrb[0].mxu0 %v1857
        %v2067 = vpop.f32.mrb[0].mxu0
        %v2068 = vadd.f32 0.0, %v2067
        %v2069 = vpop.f32.mrb[0].mxu0
        %2070 = vmatprep.mubr.f32.mxu0 0.0
        %2071 = vmatmul.mubr.f32.gmra.mrb[0].mxu0 %v1860
        %v2072 = vpop.f32.mrb[0].mxu0
        %v2073 = vadd.f32 0.0, %v2072
        %v2074 = vpop.f32.mrb[0].mxu0
        %2075 = vmatprep.mubr.f32.mxu0 0.0
        %2076 = vmatmul.mubr.f32.gmra.mrb[0].mxu0 %v1863
        %v2077 = vpop.f32.mrb[0].mxu0
        %v2078 = vadd.f32 0.0, %v2077
        %v2079 = vpop.f32.mrb[0].mxu0
        %2080 = vmatprep.mubr.f32.mxu0 0.0
        %2081 = vmatmul.mubr.f32.gmra.mrb[0].mxu0 %v1866
        %v2082 = vpop.f32.mrb[0].mxu0
        %v2083 = vadd.f32 0.0, %v2082
        %v2084 = vpop.f32.mrb[0].mxu0
        %2085 = vmatprep.mubr.f32.mxu0 0.0
        %2086 = vmatmul.mubr.f32.gmra.mrb[0].mxu0 %v1869
        %v2087 = vpop.f32.mrb[0].mxu0
        %v2088 = vadd.f32 0.0, %v2087
        %v2089 = vpop.f32.mrb[0].mxu0
        %2090 = vmatprep.mubr.f32.mxu0 0.0
        %2091 = vmatmul.mubr.f32.gmra.mrb[0].mxu0 %v1872
        %v2092 = vpop.f32.mrb[0].mxu0
        %v2093 = vadd.f32 0.0, %v2092
        %v2094 = vpop.f32.mrb[0].mxu0
        %2095 = vmatprep.mubr.f32.mxu0 0.0
        %2096 = vmatmul.mubr.f32.gmra.mrb[0].mxu0 %v1875
        %v2097 = vpop.f32.mrb[0].mxu0
        %v2098 = vadd.f32 0.0, %v2097
        %v2099 = vpop.f32.mrb[0].mxu0
        %2100 = vmatprep.mubr.f32.mxu0 0.0
        %2101 = vmatmul.mubr.f32.gmra.mrb[0].mxu0 %v1878
        %v2102 = vpop.f32.mrb[0].mxu0
        %v2103 = vadd.f32 0.0, %v2102
        %v2104 = vpop.f32.mrb[0].mxu0
        %2105 = vmatprep.mubr.f32.mxu0 0.0
        %2106 = vmatmul.mubr.f32.gmra.mrb[0].mxu0 %v1881
        %v2107 = vpop.f32.mrb[0].mxu0
        %v2108 = vadd.f32 0.0, %v2107
        %v2109 = vpop.f32.mrb[0].mxu0
        %2110 = vdwg.mxu0
        %v2111 = vadd.f32 %v1721, %v1953
        %v2112 = vadd.f32 %v1722, %v1958
        %v2113 = vadd.f32 %v1723, %v1963
        %v2114 = vadd.f32 %v1724, %v1968
        %v2115 = vadd.f32 %v1725, %v1973
        %v2116 = vadd.f32 %v1726, %v1978
        %v2117 = vadd.f32 %v1727, %v1983
        %v2118 = vadd.f32 %v1728, %v1988
        %v2119 = vadd.f32 %v1729, %v1993
        %v2120 = vadd.f32 %v1730, %v1998
        %v2121 = vadd.f32 %v1731, %v2003
        %v2122 = vadd.f32 %v1732, %v2008
        %v2123 = vadd.f32 %v1733, %v2013
        %v2124 = vadd.f32 %v1734, %v2018
        %v2125 = vadd.f32 %v1735, %v2023
        %v2126 = vadd.f32 %v1736, %v2028
        %v2127 = vadd.f32 %v1737, %v2033
        %v2128 = vadd.f32 %v1738, %v2038
        %v2129 = vadd.f32 %v1739, %v2043
        %v2130 = vadd.f32 %v1740, %v2048
        %v2131 = vadd.f32 %v1741, %v2053
        %v2132 = vadd.f32 %v1742, %v2058
        %v2133 = vadd.f32 %v1743, %v2063
        %v2134 = vadd.f32 %v1744, %v2068
        %v2135 = vadd.f32 %v1745, %v2073
        %v2136 = vadd.f32 %v1746, %v2078
        %v2137 = vadd.f32 %v1747, %v2083
        %v2138 = vadd.f32 %v1748, %v2088
        %v2139 = vadd.f32 %v1749, %v2093
        %v2140 = vadd.f32 %v1750, %v2098
        %v2141 = vadd.f32 %v1751, %v2103
        %v2142 = vadd.f32 %v1752, %v2108
        %v2143 = vld [vmem:[%s1362 + $0x2] sm:$0xff]
        %v2144 = vld [vmem:[%s1362 + $0xa] sm:$0xff]
        %v2145 = vld [vmem:[%s1362 + $0x1a] sm:$0xff]
        %v2146 = vld [vmem:[%s1362 + $0x22] sm:$0xff]
        %v2147 = vld [vmem:[%s1362 + $0x32] sm:$0xff]
        %v2148 = vld [vmem:[%s1362 + $0x3a] sm:$0xff]
        %v2149 = vld [vmem:[%s1362 + $0x4a] sm:$0xff]
        %v2150 = vld [vmem:[%s1362 + $0x52] sm:$0xff]
        %v2151 = vld [vmem:[%s1362 + $0x62] sm:$0xff]
        %v2152 = vld [vmem:[%s1362 + $0x6a] sm:$0xff]
        %v2153 = vld [vmem:[%s1362 + $0x7a] sm:$0xff]
        %v2154 = vld [vmem:[%s1362 + $0x82] sm:$0xff]
        %v2155 = vld [vmem:[%s1362 + $0x92] sm:$0xff]
        %v2156 = vld [vmem:[%s1362 + $0x9a] sm:$0xff]
        %v2157 = vld [vmem:[%s1362 + $0xaa] sm:$0xff]
        %v2158 = vld [vmem:[%s1362 + $0xb2] sm:$0xff]
        %v2159 = vld [vmem:[%s1362 + $0xc2] sm:$0xff]
        %v2160 = vld [vmem:[%s1362 + $0xca] sm:$0xff]
        %v2161 = vld [vmem:[%s1362 + $0xda] sm:$0xff]
        %v2162 = vld [vmem:[%s1362 + $0xe2] sm:$0xff]
        %v2163 = vld [vmem:[%s1362 + $0xf2] sm:$0xff]
        %v2164 = vld [vmem:[%s1362 + $0xfa] sm:$0xff]
        %v2165 = vld [vmem:[%s1362 + $0x10a] sm:$0xff]
        %v2166 = vld [vmem:[%s1362 + $0x112] sm:$0xff]
        %v2167 = vld [vmem:[%s1362 + $0x122] sm:$0xff]
        %v2168 = vld [vmem:[%s1362 + $0x12a] sm:$0xff]
        %v2169 = vld [vmem:[%s1362 + $0x13a] sm:$0xff]
        %v2170 = vld [vmem:[%s1362 + $0x142] sm:$0xff]
        %v2171 = vld [vmem:[%s1362 + $0x152] sm:$0xff]
        %v2172 = vld [vmem:[%s1362 + $0x15a] sm:$0xff]
        %v2173 = vld [vmem:[%s1362 + $0x16a] sm:$0xff]
        %v2174 = vld [vmem:[%s1362 + $0x172] sm:$0xff]
        %s2175 = scalar_lea.vmem %s248, 20
        %v2176 = vld [vmem:[%s2175] sm:$0xf]
        %v2178 = vsel %vm322, %v2143, 0
        %v2181 = vsel %vm322, %v2144, 0
        %v2184 = vsel %vm322, %v2145, 0
        %v2187 = vsel %vm322, %v2146, 0
        %v2190 = vsel %vm322, %v2147, 0
        %v2193 = vsel %vm322, %v2148, 0
        %v2196 = vsel %vm322, %v2149, 0
        %v2199 = vsel %vm322, %v2150, 0
        %v2202 = vsel %vm322, %v2151, 0
        %v2205 = vsel %vm322, %v2152, 0
        %v2208 = vsel %vm322, %v2153, 0
        %v2211 = vsel %vm322, %v2154, 0
        %v2214 = vsel %vm322, %v2155, 0
        %v2217 = vsel %vm322, %v2156, 0
        %v2220 = vsel %vm322, %v2157, 0
        %v2223 = vsel %vm322, %v2158, 0
        %v2226 = vsel %vm322, %v2159, 0
        %v2229 = vsel %vm322, %v2160, 0
        %v2232 = vsel %vm322, %v2161, 0
        %v2235 = vsel %vm322, %v2162, 0
        %v2238 = vsel %vm322, %v2163, 0
        %v2241 = vsel %vm322, %v2164, 0
        %v2244 = vsel %vm322, %v2165, 0
        %v2247 = vsel %vm322, %v2166, 0
        %v2250 = vsel %vm322, %v2167, 0
        %v2253 = vsel %vm322, %v2168, 0
        %v2256 = vsel %vm322, %v2169, 0
        %v2259 = vsel %vm322, %v2170, 0
        %v2262 = vsel %vm322, %v2171, 0
        %v2265 = vsel %vm322, %v2172, 0
        %v2268 = vsel %vm322, %v2173, 0
        %v2271 = vsel %vm322, %v2174, 0
        %v2274 = vsel %vm419, %v2176, 0
        %2276 = vmatprep.subr.mxu0 0.0
        %2277 = vmatpush1.msra.mxu0 %v2274
        %2278 = vmatprep.subr.mxu0 0.0
        %2279 = vmatpush1.msra.mxu0 0.0
        %2280 = vmatprep.subr.mxu0 0.0
        %2281 = vmatpush1.msra.mxu0 0.0
        %2282 = vmatprep.subr.mxu0 0.0
        %2283 = vmatpush1.msra.mxu0 0.0
        %2284 = vmatprep.subr.mxu0 0.0
        %2285 = vmatpush1.msra.mxu0 0.0
        %2286 = vmatprep.subr.mxu0 0.0
        %2287 = vmatpush1.msra.mxu0 0.0
        %2288 = vmatprep.subr.mxu0 0.0
        %2289 = vmatpush1.msra.mxu0 0.0
        %2290 = vmatprep.subr.mxu0 0.0
        %2291 = vmatpush1.msra.mxu0 0.0
        %2292 = vmatprep.subr.mxu0 0.0
        %2293 = vmatpush1.msra.mxu0 0.0
        %2294 = vmatprep.subr.mxu0 0.0
        %2295 = vmatpush1.msra.mxu0 0.0
        %2296 = vmatprep.subr.mxu0 0.0
        %2297 = vmatpush1.msra.mxu0 0.0
        %2298 = vmatprep.subr.mxu0 0.0
        %2299 = vmatpush1.msra.mxu0 0.0
        %2300 = vmatprep.subr.mxu0 0.0
        %2301 = vmatpush1.msra.mxu0 0.0
        %2302 = vmatprep.subr.mxu0 0.0
        %2303 = vmatpush1.msra.mxu0 0.0
        %2304 = vmatprep.subr.mxu0 0.0
        %2305 = vmatpush1.msra.mxu0 0.0
        %2306 = vmatprep.subr.mxu0 0.0
        %2307 = vmatpush1.msra.mxu0 0.0
        %2308 = vmatprep.subr.mxu0 0.0
        %2309 = vmatpush1.msra.mxu0 0.0
        %2310 = vmatprep.subr.mxu0 0.0
        %2311 = vmatpush1.msra.mxu0 0.0
        %2312 = vmatprep.subr.mxu0 0.0
        %2313 = vmatpush1.msra.mxu0 0.0
        %2314 = vmatprep.subr.mxu0 0.0
        %2315 = vmatpush1.msra.mxu0 0.0
        %2316 = vmatprep.subr.mxu0 0.0
        %2317 = vmatpush1.msra.mxu0 0.0
        %2318 = vmatprep.subr.mxu0 0.0
        %2319 = vmatpush1.msra.mxu0 0.0
        %2320 = vmatprep.subr.mxu0 0.0
        %2321 = vmatpush1.msra.mxu0 0.0
        %2322 = vmatprep.subr.mxu0 0.0
        %2323 = vmatpush1.msra.mxu0 0.0
        %2324 = vmatprep.subr.mxu0 0.0
        %2325 = vmatpush1.msra.mxu0 0.0
        %2326 = vmatprep.subr.mxu0 0.0
        %2327 = vmatpush1.msra.mxu0 0.0
        %2328 = vmatprep.subr.mxu0 0.0
        %2329 = vmatpush1.msra.mxu0 0.0
        %2330 = vmatprep.subr.mxu0 0.0
        %2331 = vmatpush1.msra.mxu0 0.0
        %2332 = vmatprep.subr.mxu0 0.0
        %2333 = vmatpush1.msra.mxu0 0.0
        %2334 = vmatprep.subr.mxu0 0.0
        %2335 = vmatpush1.msra.mxu0 0.0
        %2336 = vmatprep.subr.mxu0 0.0
        %2337 = vmatpush1.msra.mxu0 0.0
        %2338 = vmatprep.subr.mxu0 0.0
        %2339 = vmatpush1.msra.mxu0 0.0
        %2340 = vmatprep.mubr.f32.mxu0 0.0
        %2341 = vmatmul.mubr.f32.gmra.mrb[0].mxu0 %v2178
        %v2342 = vpop.f32.mrb[0].mxu0
        %v2343 = vadd.f32 0.0, %v2342
        %v2344 = vpop.f32.mrb[0].mxu0
        %2345 = vmatprep.mubr.f32.mxu0 0.0
        %2346 = vmatmul.mubr.f32.gmra.mrb[0].mxu0 %v2181
        %v2347 = vpop.f32.mrb[0].mxu0
        %v2348 = vadd.f32 0.0, %v2347
        %v2349 = vpop.f32.mrb[0].mxu0
        %2350 = vmatprep.mubr.f32.mxu0 0.0
        %2351 = vmatmul.mubr.f32.gmra.mrb[0].mxu0 %v2184
        %v2352 = vpop.f32.mrb[0].mxu0
        %v2353 = vadd.f32 0.0, %v2352
        %v2354 = vpop.f32.mrb[0].mxu0
        %2355 = vmatprep.mubr.f32.mxu0 0.0
        %2356 = vmatmul.mubr.f32.gmra.mrb[0].mxu0 %v2187
        %v2357 = vpop.f32.mrb[0].mxu0
        %v2358 = vadd.f32 0.0, %v2357
        %v2359 = vpop.f32.mrb[0].mxu0
        %2360 = vmatprep.mubr.f32.mxu0 0.0
        %2361 = vmatmul.mubr.f32.gmra.mrb[0].mxu0 %v2190
        %v2362 = vpop.f32.mrb[0].mxu0
        %v2363 = vadd.f32 0.0, %v2362
        %v2364 = vpop.f32.mrb[0].mxu0
        %2365 = vmatprep.mubr.f32.mxu0 0.0
        %2366 = vmatmul.mubr.f32.gmra.mrb[0].mxu0 %v2193
        %v2367 = vpop.f32.mrb[0].mxu0
        %v2368 = vadd.f32 0.0, %v2367
        %v2369 = vpop.f32.mrb[0].mxu0
        %2370 = vmatprep.mubr.f32.mxu0 0.0
        %2371 = vmatmul.mubr.f32.gmra.mrb[0].mxu0 %v2196
        %v2372 = vpop.f32.mrb[0].mxu0
        %v2373 = vadd.f32 0.0, %v2372
        %v2374 = vpop.f32.mrb[0].mxu0
        %2375 = vmatprep.mubr.f32.mxu0 0.0
        %2376 = vmatmul.mubr.f32.gmra.mrb[0].mxu0 %v2199
        %v2377 = vpop.f32.mrb[0].mxu0
        %v2378 = vadd.f32 0.0, %v2377
        %v2379 = vpop.f32.mrb[0].mxu0
        %2380 = vmatprep.mubr.f32.mxu0 0.0
        %2381 = vmatmul.mubr.f32.gmra.mrb[0].mxu0 %v2202
        %v2382 = vpop.f32.mrb[0].mxu0
        %v2383 = vadd.f32 0.0, %v2382
        %v2384 = vpop.f32.mrb[0].mxu0
        %2385 = vmatprep.mubr.f32.mxu0 0.0
        %2386 = vmatmul.mubr.f32.gmra.mrb[0].mxu0 %v2205
        %v2387 = vpop.f32.mrb[0].mxu0
        %v2388 = vadd.f32 0.0, %v2387
        %v2389 = vpop.f32.mrb[0].mxu0
        %2390 = vmatprep.mubr.f32.mxu0 0.0
        %2391 = vmatmul.mubr.f32.gmra.mrb[0].mxu0 %v2208
        %v2392 = vpop.f32.mrb[0].mxu0
        %v2393 = vadd.f32 0.0, %v2392
        %v2394 = vpop.f32.mrb[0].mxu0
        %2395 = vmatprep.mubr.f32.mxu0 0.0
        %2396 = vmatmul.mubr.f32.gmra.mrb[0].mxu0 %v2211
        %v2397 = vpop.f32.mrb[0].mxu0
        %v2398 = vadd.f32 0.0, %v2397
        %v2399 = vpop.f32.mrb[0].mxu0
        %2400 = vmatprep.mubr.f32.mxu0 0.0
        %2401 = vmatmul.mubr.f32.gmra.mrb[0].mxu0 %v2214
        %v2402 = vpop.f32.mrb[0].mxu0
        %v2403 = vadd.f32 0.0, %v2402
        %v2404 = vpop.f32.mrb[0].mxu0
        %2405 = vmatprep.mubr.f32.mxu0 0.0
        %2406 = vmatmul.mubr.f32.gmra.mrb[0].mxu0 %v2217
        %v2407 = vpop.f32.mrb[0].mxu0
        %v2408 = vadd.f32 0.0, %v2407
        %v2409 = vpop.f32.mrb[0].mxu0
        %2410 = vmatprep.mubr.f32.mxu0 0.0
        %2411 = vmatmul.mubr.f32.gmra.mrb[0].mxu0 %v2220
        %v2412 = vpop.f32.mrb[0].mxu0
        %v2413 = vadd.f32 0.0, %v2412
        %v2414 = vpop.f32.mrb[0].mxu0
        %2415 = vmatprep.mubr.f32.mxu0 0.0
        %2416 = vmatmul.mubr.f32.gmra.mrb[0].mxu0 %v2223
        %v2417 = vpop.f32.mrb[0].mxu0
        %v2418 = vadd.f32 0.0, %v2417
        %v2419 = vpop.f32.mrb[0].mxu0
        %2420 = vmatprep.mubr.f32.mxu0 0.0
        %2421 = vmatmul.mubr.f32.gmra.mrb[0].mxu0 %v2226
        %v2422 = vpop.f32.mrb[0].mxu0
        %v2423 = vadd.f32 0.0, %v2422
        %v2424 = vpop.f32.mrb[0].mxu0
        %2425 = vmatprep.mubr.f32.mxu0 0.0
        %2426 = vmatmul.mubr.f32.gmra.mrb[0].mxu0 %v2229
        %v2427 = vpop.f32.mrb[0].mxu0
        %v2428 = vadd.f32 0.0, %v2427
        %v2429 = vpop.f32.mrb[0].mxu0
        %2430 = vmatprep.mubr.f32.mxu0 0.0
        %2431 = vmatmul.mubr.f32.gmra.mrb[0].mxu0 %v2232
        %v2432 = vpop.f32.mrb[0].mxu0
        %v2433 = vadd.f32 0.0, %v2432
        %v2434 = vpop.f32.mrb[0].mxu0
        %2435 = vmatprep.mubr.f32.mxu0 0.0
        %2436 = vmatmul.mubr.f32.gmra.mrb[0].mxu0 %v2235
        %v2437 = vpop.f32.mrb[0].mxu0
        %v2438 = vadd.f32 0.0, %v2437
        %v2439 = vpop.f32.mrb[0].mxu0
        %2440 = vmatprep.mubr.f32.mxu0 0.0
        %2441 = vmatmul.mubr.f32.gmra.mrb[0].mxu0 %v2238
        %v2442 = vpop.f32.mrb[0].mxu0
        %v2443 = vadd.f32 0.0, %v2442
        %v2444 = vpop.f32.mrb[0].mxu0
        %2445 = vmatprep.mubr.f32.mxu0 0.0
        %2446 = vmatmul.mubr.f32.gmra.mrb[0].mxu0 %v2241
        %v2447 = vpop.f32.mrb[0].mxu0
        %v2448 = vadd.f32 0.0, %v2447
        %v2449 = vpop.f32.mrb[0].mxu0
        %2450 = vmatprep.mubr.f32.mxu0 0.0
        %2451 = vmatmul.mubr.f32.gmra.mrb[0].mxu0 %v2244
        %v2452 = vpop.f32.mrb[0].mxu0
        %v2453 = vadd.f32 0.0, %v2452
        %v2454 = vpop.f32.mrb[0].mxu0
        %2455 = vmatprep.mubr.f32.mxu0 0.0
        %2456 = vmatmul.mubr.f32.gmra.mrb[0].mxu0 %v2247
        %v2457 = vpop.f32.mrb[0].mxu0
        %v2458 = vadd.f32 0.0, %v2457
        %v2459 = vpop.f32.mrb[0].mxu0
        %2460 = vmatprep.mubr.f32.mxu0 0.0
        %2461 = vmatmul.mubr.f32.gmra.mrb[0].mxu0 %v2250
        %v2462 = vpop.f32.mrb[0].mxu0
        %v2463 = vadd.f32 0.0, %v2462
        %v2464 = vpop.f32.mrb[0].mxu0
        %2465 = vmatprep.mubr.f32.mxu0 0.0
        %2466 = vmatmul.mubr.f32.gmra.mrb[0].mxu0 %v2253
        %v2467 = vpop.f32.mrb[0].mxu0
        %v2468 = vadd.f32 0.0, %v2467
        %v2469 = vpop.f32.mrb[0].mxu0
        %2470 = vmatprep.mubr.f32.mxu0 0.0
        %2471 = vmatmul.mubr.f32.gmra.mrb[0].mxu0 %v2256
        %v2472 = vpop.f32.mrb[0].mxu0
        %v2473 = vadd.f32 0.0, %v2472
        %v2474 = vpop.f32.mrb[0].mxu0
        %2475 = vmatprep.mubr.f32.mxu0 0.0
        %2476 = vmatmul.mubr.f32.gmra.mrb[0].mxu0 %v2259
        %v2477 = vpop.f32.mrb[0].mxu0
        %v2478 = vadd.f32 0.0, %v2477
        %v2479 = vpop.f32.mrb[0].mxu0
        %2480 = vmatprep.mubr.f32.mxu0 0.0
        %2481 = vmatmul.mubr.f32.gmra.mrb[0].mxu0 %v2262
        %v2482 = vpop.f32.mrb[0].mxu0
        %v2483 = vadd.f32 0.0, %v2482
        %v2484 = vpop.f32.mrb[0].mxu0
        %2485 = vmatprep.mubr.f32.mxu0 0.0
        %2486 = vmatmul.mubr.f32.gmra.mrb[0].mxu0 %v2265
        %v2487 = vpop.f32.mrb[0].mxu0
        %v2488 = vadd.f32 0.0, %v2487
        %v2489 = vpop.f32.mrb[0].mxu0
        %2490 = vmatprep.mubr.f32.mxu0 0.0
        %2491 = vmatmul.mubr.f32.gmra.mrb[0].mxu0 %v2268
        %v2492 = vpop.f32.mrb[0].mxu0
        %v2493 = vadd.f32 0.0, %v2492
        %v2494 = vpop.f32.mrb[0].mxu0
        %2495 = vmatprep.mubr.f32.mxu0 0.0
        %2496 = vmatmul.mubr.f32.gmra.mrb[0].mxu0 %v2271
        %v2497 = vpop.f32.mrb[0].mxu0
        %v2498 = vadd.f32 0.0, %v2497
        %v2499 = vpop.f32.mrb[0].mxu0
        %2500 = vdwg.mxu0
        %v2501 = vadd.f32 %v2111, %v2343
        %v2502 = vadd.f32 %v2112, %v2348
        %v2503 = vadd.f32 %v2113, %v2353
        %v2504 = vadd.f32 %v2114, %v2358
        %v2505 = vadd.f32 %v2115, %v2363
        %v2506 = vadd.f32 %v2116, %v2368
        %v2507 = vadd.f32 %v2117, %v2373
        %v2508 = vadd.f32 %v2118, %v2378
        %v2509 = vadd.f32 %v2119, %v2383
        %v2510 = vadd.f32 %v2120, %v2388
        %v2511 = vadd.f32 %v2121, %v2393
        %v2512 = vadd.f32 %v2122, %v2398
        %v2513 = vadd.f32 %v2123, %v2403
        %v2514 = vadd.f32 %v2124, %v2408
        %v2515 = vadd.f32 %v2125, %v2413
        %v2516 = vadd.f32 %v2126, %v2418
        %v2517 = vadd.f32 %v2127, %v2423
        %v2518 = vadd.f32 %v2128, %v2428
        %v2519 = vadd.f32 %v2129, %v2433
        %v2520 = vadd.f32 %v2130, %v2438
        %v2521 = vadd.f32 %v2131, %v2443
        %v2522 = vadd.f32 %v2132, %v2448
        %v2523 = vadd.f32 %v2133, %v2453
        %v2524 = vadd.f32 %v2134, %v2458
        %v2525 = vadd.f32 %v2135, %v2463
        %v2526 = vadd.f32 %v2136, %v2468
        %v2527 = vadd.f32 %v2137, %v2473
        %v2528 = vadd.f32 %v2138, %v2478
        %v2529 = vadd.f32 %v2139, %v2483
        %v2530 = vadd.f32 %v2140, %v2488
        %v2531 = vadd.f32 %v2141, %v2493
        %v2532 = vadd.f32 %v2142, %v2498
        %s2533 = scalar_lea.vmem %s244, 48
        %v2534 = vld [vmem:[%s2533] sm:$0xff]
        %v2535 = vld [vmem:[%s2533 + $0x8] sm:$0xff]
        %v2536 = vld [vmem:[%s2533 + $0x18] sm:$0xff]
        %v2537 = vld [vmem:[%s2533 + $0x20] sm:$0xff]
        %v2538 = vld [vmem:[%s2533 + $0x30] sm:$0xff]
        %v2539 = vld [vmem:[%s2533 + $0x38] sm:$0xff]
        %v2540 = vld [vmem:[%s2533 + $0x48] sm:$0xff]
        %v2541 = vld [vmem:[%s2533 + $0x50] sm:$0xff]
        %v2542 = vld [vmem:[%s2533 + $0x60] sm:$0xff]
        %v2543 = vld [vmem:[%s2533 + $0x68] sm:$0xff]
        %v2544 = vld [vmem:[%s2533 + $0x78] sm:$0xff]
        %v2545 = vld [vmem:[%s2533 + $0x80] sm:$0xff]
        %v2546 = vld [vmem:[%s2533 + $0x90] sm:$0xff]
        %v2547 = vld [vmem:[%s2533 + $0x98] sm:$0xff]
        %v2548 = vld [vmem:[%s2533 + $0xa8] sm:$0xff]
        %v2549 = vld [vmem:[%s2533 + $0xb0] sm:$0xff]
        %v2550 = vld [vmem:[%s2533 + $0xc0] sm:$0xff]
        %v2551 = vld [vmem:[%s2533 + $0xc8] sm:$0xff]
        %v2552 = vld [vmem:[%s2533 + $0xd8] sm:$0xff]
        %v2553 = vld [vmem:[%s2533 + $0xe0] sm:$0xff]
        %v2554 = vld [vmem:[%s2533 + $0xf0] sm:$0xff]
        %v2555 = vld [vmem:[%s2533 + $0xf8] sm:$0xff]
        %v2556 = vld [vmem:[%s2533 + $0x108] sm:$0xff]
        %v2557 = vld [vmem:[%s2533 + $0x110] sm:$0xff]
        %v2558 = vld [vmem:[%s2533 + $0x120] sm:$0xff]
        %v2559 = vld [vmem:[%s2533 + $0x128] sm:$0xff]
        %v2560 = vld [vmem:[%s2533 + $0x138] sm:$0xff]
        %v2561 = vld [vmem:[%s2533 + $0x140] sm:$0xff]
        %v2562 = vld [vmem:[%s2533 + $0x150] sm:$0xff]
        %v2563 = vld [vmem:[%s2533 + $0x158] sm:$0xff]
        %v2564 = vld [vmem:[%s2533 + $0x168] sm:$0xff]
        %v2565 = vld [vmem:[%s2533 + $0x170] sm:$0xff]
        %s2566 = scalar_lea.vmem %s248, 24
        %v2567 = vld [vmem:[%s2566] sm:$0xf]
        %v2569 = vsel %vm322, %v2534, 0
        %v2572 = vsel %vm322, %v2535, 0
        %v2575 = vsel %vm322, %v2536, 0
        %v2578 = vsel %vm322, %v2537, 0
        %v2581 = vsel %vm322, %v2538, 0
        %v2584 = vsel %vm322, %v2539, 0
        %v2587 = vsel %vm322, %v2540, 0
        %v2590 = vsel %vm322, %v2541, 0
        %v2593 = vsel %vm322, %v2542, 0
        %v2596 = vsel %vm322, %v2543, 0
        %v2599 = vsel %vm322, %v2544, 0
        %v2602 = vsel %vm322, %v2545, 0
        %v2605 = vsel %vm322, %v2546, 0
        %v2608 = vsel %vm322, %v2547, 0
        %v2611 = vsel %vm322, %v2548, 0
        %v2614 = vsel %vm322, %v2549, 0
        %v2617 = vsel %vm322, %v2550, 0
        %v2620 = vsel %vm322, %v2551, 0
        %v2623 = vsel %vm322, %v2552, 0
        %v2626 = vsel %vm322, %v2553, 0
        %v2629 = vsel %vm322, %v2554, 0
        %v2632 = vsel %vm322, %v2555, 0
        %v2635 = vsel %vm322, %v2556, 0
        %v2638 = vsel %vm322, %v2557, 0
        %v2641 = vsel %vm322, %v2558, 0
        %v2644 = vsel %vm322, %v2559, 0
        %v2647 = vsel %vm322, %v2560, 0
        %v2650 = vsel %vm322, %v2561, 0
        %v2653 = vsel %vm322, %v2562, 0
        %v2656 = vsel %vm322, %v2563, 0
        %v2659 = vsel %vm322, %v2564, 0
        %v2662 = vsel %vm322, %v2565, 0
        %v2665 = vsel %vm419, %v2567, 0
        %2667 = vmatprep.subr.mxu0 0.0
        %2668 = vmatpush1.msra.mxu0 %v2665
        %2669 = vmatprep.subr.mxu0 0.0
        %2670 = vmatpush1.msra.mxu0 0.0
        %2671 = vmatprep.subr.mxu0 0.0
        %2672 = vmatpush1.msra.mxu0 0.0
        %2673 = vmatprep.subr.mxu0 0.0
        %2674 = vmatpush1.msra.mxu0 0.0
        %2675 = vmatprep.subr.mxu0 0.0
        %2676 = vmatpush1.msra.mxu0 0.0
        %2677 = vmatprep.subr.mxu0 0.0
        %2678 = vmatpush1.msra.mxu0 0.0
        %2679 = vmatprep.subr.mxu0 0.0
        %2680 = vmatpush1.msra.mxu0 0.0
        %2681 = vmatprep.subr.mxu0 0.0
        %2682 = vmatpush1.msra.mxu0 0.0
        %2683 = vmatprep.subr.mxu0 0.0
        %2684 = vmatpush1.msra.mxu0 0.0
        %2685 = vmatprep.subr.mxu0 0.0
        %2686 = vmatpush1.msra.mxu0 0.0
        %2687 = vmatprep.subr.mxu0 0.0
        %2688 = vmatpush1.msra.mxu0 0.0
        %2689 = vmatprep.subr.mxu0 0.0
        %2690 = vmatpush1.msra.mxu0 0.0
        %2691 = vmatprep.subr.mxu0 0.0
        %2692 = vmatpush1.msra.mxu0 0.0
        %2693 = vmatprep.subr.mxu0 0.0
        %2694 = vmatpush1.msra.mxu0 0.0
        %2695 = vmatprep.subr.mxu0 0.0
        %2696 = vmatpush1.msra.mxu0 0.0
        %2697 = vmatprep.subr.mxu0 0.0
        %2698 = vmatpush1.msra.mxu0 0.0
        %2699 = vmatprep.subr.mxu0 0.0
        %2700 = vmatpush1.msra.mxu0 0.0
        %2701 = vmatprep.subr.mxu0 0.0
        %2702 = vmatpush1.msra.mxu0 0.0
        %2703 = vmatprep.subr.mxu0 0.0
        %2704 = vmatpush1.msra.mxu0 0.0
        %2705 = vmatprep.subr.mxu0 0.0
        %2706 = vmatpush1.msra.mxu0 0.0
        %2707 = vmatprep.subr.mxu0 0.0
        %2708 = vmatpush1.msra.mxu0 0.0
        %2709 = vmatprep.subr.mxu0 0.0
        %2710 = vmatpush1.msra.mxu0 0.0
        %2711 = vmatprep.subr.mxu0 0.0
        %2712 = vmatpush1.msra.mxu0 0.0
        %2713 = vmatprep.subr.mxu0 0.0
        %2714 = vmatpush1.msra.mxu0 0.0
        %2715 = vmatprep.subr.mxu0 0.0
        %2716 = vmatpush1.msra.mxu0 0.0
        %2717 = vmatprep.subr.mxu0 0.0
        %2718 = vmatpush1.msra.mxu0 0.0
        %2719 = vmatprep.subr.mxu0 0.0
        %2720 = vmatpush1.msra.mxu0 0.0
        %2721 = vmatprep.subr.mxu0 0.0
        %2722 = vmatpush1.msra.mxu0 0.0
        %2723 = vmatprep.subr.mxu0 0.0
        %2724 = vmatpush1.msra.mxu0 0.0
        %2725 = vmatprep.subr.mxu0 0.0
        %2726 = vmatpush1.msra.mxu0 0.0
        %2727 = vmatprep.subr.mxu0 0.0
        %2728 = vmatpush1.msra.mxu0 0.0
        %2729 = vmatprep.subr.mxu0 0.0
        %2730 = vmatpush1.msra.mxu0 0.0
        %2731 = vmatprep.mubr.f32.mxu0 0.0
        %2732 = vmatmul.mubr.f32.gmra.mrb[0].mxu0 %v2569
        %v2733 = vpop.f32.mrb[0].mxu0
        %v2734 = vadd.f32 0.0, %v2733
        %v2735 = vpop.f32.mrb[0].mxu0
        %2736 = vmatprep.mubr.f32.mxu0 0.0
        %2737 = vmatmul.mubr.f32.gmra.mrb[0].mxu0 %v2572
        %v2738 = vpop.f32.mrb[0].mxu0
        %v2739 = vadd.f32 0.0, %v2738
        %v2740 = vpop.f32.mrb[0].mxu0
        %2741 = vmatprep.mubr.f32.mxu0 0.0
        %2742 = vmatmul.mubr.f32.gmra.mrb[0].mxu0 %v2575
        %v2743 = vpop.f32.mrb[0].mxu0
        %v2744 = vadd.f32 0.0, %v2743
        %v2745 = vpop.f32.mrb[0].mxu0
        %2746 = vmatprep.mubr.f32.mxu0 0.0
        %2747 = vmatmul.mubr.f32.gmra.mrb[0].mxu0 %v2578
        %v2748 = vpop.f32.mrb[0].mxu0
        %v2749 = vadd.f32 0.0, %v2748
        %v2750 = vpop.f32.mrb[0].mxu0
        %2751 = vmatprep.mubr.f32.mxu0 0.0
        %2752 = vmatmul.mubr.f32.gmra.mrb[0].mxu0 %v2581
        %v2753 = vpop.f32.mrb[0].mxu0
        %v2754 = vadd.f32 0.0, %v2753
        %v2755 = vpop.f32.mrb[0].mxu0
        %2756 = vmatprep.mubr.f32.mxu0 0.0
        %2757 = vmatmul.mubr.f32.gmra.mrb[0].mxu0 %v2584
        %v2758 = vpop.f32.mrb[0].mxu0
        %v2759 = vadd.f32 0.0, %v2758
        %v2760 = vpop.f32.mrb[0].mxu0
        %2761 = vmatprep.mubr.f32.mxu0 0.0
        %2762 = vmatmul.mubr.f32.gmra.mrb[0].mxu0 %v2587
        %v2763 = vpop.f32.mrb[0].mxu0
        %v2764 = vadd.f32 0.0, %v2763
        %v2765 = vpop.f32.mrb[0].mxu0
        %2766 = vmatprep.mubr.f32.mxu0 0.0
        %2767 = vmatmul.mubr.f32.gmra.mrb[0].mxu0 %v2590
        %v2768 = vpop.f32.mrb[0].mxu0
        %v2769 = vadd.f32 0.0, %v2768
        %v2770 = vpop.f32.mrb[0].mxu0
        %2771 = vmatprep.mubr.f32.mxu0 0.0
        %2772 = vmatmul.mubr.f32.gmra.mrb[0].mxu0 %v2593
        %v2773 = vpop.f32.mrb[0].mxu0
        %v2774 = vadd.f32 0.0, %v2773
        %v2775 = vpop.f32.mrb[0].mxu0
        %2776 = vmatprep.mubr.f32.mxu0 0.0
        %2777 = vmatmul.mubr.f32.gmra.mrb[0].mxu0 %v2596
        %v2778 = vpop.f32.mrb[0].mxu0
        %v2779 = vadd.f32 0.0, %v2778
        %v2780 = vpop.f32.mrb[0].mxu0
        %2781 = vmatprep.mubr.f32.mxu0 0.0
        %2782 = vmatmul.mubr.f32.gmra.mrb[0].mxu0 %v2599
        %v2783 = vpop.f32.mrb[0].mxu0
        %v2784 = vadd.f32 0.0, %v2783
        %v2785 = vpop.f32.mrb[0].mxu0
        %2786 = vmatprep.mubr.f32.mxu0 0.0
        %2787 = vmatmul.mubr.f32.gmra.mrb[0].mxu0 %v2602
        %v2788 = vpop.f32.mrb[0].mxu0
        %v2789 = vadd.f32 0.0, %v2788
        %v2790 = vpop.f32.mrb[0].mxu0
        %2791 = vmatprep.mubr.f32.mxu0 0.0
        %2792 = vmatmul.mubr.f32.gmra.mrb[0].mxu0 %v2605
        %v2793 = vpop.f32.mrb[0].mxu0
        %v2794 = vadd.f32 0.0, %v2793
        %v2795 = vpop.f32.mrb[0].mxu0
        %2796 = vmatprep.mubr.f32.mxu0 0.0
        %2797 = vmatmul.mubr.f32.gmra.mrb[0].mxu0 %v2608
        %v2798 = vpop.f32.mrb[0].mxu0
        %v2799 = vadd.f32 0.0, %v2798
        %v2800 = vpop.f32.mrb[0].mxu0
        %2801 = vmatprep.mubr.f32.mxu0 0.0
        %2802 = vmatmul.mubr.f32.gmra.mrb[0].mxu0 %v2611
        %v2803 = vpop.f32.mrb[0].mxu0
        %v2804 = vadd.f32 0.0, %v2803
        %v2805 = vpop.f32.mrb[0].mxu0
        %2806 = vmatprep.mubr.f32.mxu0 0.0
        %2807 = vmatmul.mubr.f32.gmra.mrb[0].mxu0 %v2614
        %v2808 = vpop.f32.mrb[0].mxu0
        %v2809 = vadd.f32 0.0, %v2808
        %v2810 = vpop.f32.mrb[0].mxu0
        %2811 = vmatprep.mubr.f32.mxu0 0.0
        %2812 = vmatmul.mubr.f32.gmra.mrb[0].mxu0 %v2617
        %v2813 = vpop.f32.mrb[0].mxu0
        %v2814 = vadd.f32 0.0, %v2813
        %v2815 = vpop.f32.mrb[0].mxu0
        %2816 = vmatprep.mubr.f32.mxu0 0.0
        %2817 = vmatmul.mubr.f32.gmra.mrb[0].mxu0 %v2620
        %v2818 = vpop.f32.mrb[0].mxu0
        %v2819 = vadd.f32 0.0, %v2818
        %v2820 = vpop.f32.mrb[0].mxu0
        %2821 = vmatprep.mubr.f32.mxu0 0.0
        %2822 = vmatmul.mubr.f32.gmra.mrb[0].mxu0 %v2623
        %v2823 = vpop.f32.mrb[0].mxu0
        %v2824 = vadd.f32 0.0, %v2823
        %v2825 = vpop.f32.mrb[0].mxu0
        %2826 = vmatprep.mubr.f32.mxu0 0.0
        %2827 = vmatmul.mubr.f32.gmra.mrb[0].mxu0 %v2626
        %v2828 = vpop.f32.mrb[0].mxu0
        %v2829 = vadd.f32 0.0, %v2828
        %v2830 = vpop.f32.mrb[0].mxu0
        %2831 = vmatprep.mubr.f32.mxu0 0.0
        %2832 = vmatmul.mubr.f32.gmra.mrb[0].mxu0 %v2629
        %v2833 = vpop.f32.mrb[0].mxu0
        %v2834 = vadd.f32 0.0, %v2833
        %v2835 = vpop.f32.mrb[0].mxu0
        %2836 = vmatprep.mubr.f32.mxu0 0.0
        %2837 = vmatmul.mubr.f32.gmra.mrb[0].mxu0 %v2632
        %v2838 = vpop.f32.mrb[0].mxu0
        %v2839 = vadd.f32 0.0, %v2838
        %v2840 = vpop.f32.mrb[0].mxu0
        %2841 = vmatprep.mubr.f32.mxu0 0.0
        %2842 = vmatmul.mubr.f32.gmra.mrb[0].mxu0 %v2635
        %v2843 = vpop.f32.mrb[0].mxu0
        %v2844 = vadd.f32 0.0, %v2843
        %v2845 = vpop.f32.mrb[0].mxu0
        %2846 = vmatprep.mubr.f32.mxu0 0.0
        %2847 = vmatmul.mubr.f32.gmra.mrb[0].mxu0 %v2638
        %v2848 = vpop.f32.mrb[0].mxu0
        %v2849 = vadd.f32 0.0, %v2848
        %v2850 = vpop.f32.mrb[0].mxu0
        %2851 = vmatprep.mubr.f32.mxu0 0.0
        %2852 = vmatmul.mubr.f32.gmra.mrb[0].mxu0 %v2641
        %v2853 = vpop.f32.mrb[0].mxu0
        %v2854 = vadd.f32 0.0, %v2853
        %v2855 = vpop.f32.mrb[0].mxu0
        %2856 = vmatprep.mubr.f32.mxu0 0.0
        %2857 = vmatmul.mubr.f32.gmra.mrb[0].mxu0 %v2644
        %v2858 = vpop.f32.mrb[0].mxu0
        %v2859 = vadd.f32 0.0, %v2858
        %v2860 = vpop.f32.mrb[0].mxu0
        %2861 = vmatprep.mubr.f32.mxu0 0.0
        %2862 = vmatmul.mubr.f32.gmra.mrb[0].mxu0 %v2647
        %v2863 = vpop.f32.mrb[0].mxu0
        %v2864 = vadd.f32 0.0, %v2863
        %v2865 = vpop.f32.mrb[0].mxu0
        %2866 = vmatprep.mubr.f32.mxu0 0.0
        %2867 = vmatmul.mubr.f32.gmra.mrb[0].mxu0 %v2650
        %v2868 = vpop.f32.mrb[0].mxu0
        %v2869 = vadd.f32 0.0, %v2868
        %v2870 = vpop.f32.mrb[0].mxu0
        %2871 = vmatprep.mubr.f32.mxu0 0.0
        %2872 = vmatmul.mubr.f32.gmra.mrb[0].mxu0 %v2653
        %v2873 = vpop.f32.mrb[0].mxu0
        %v2874 = vadd.f32 0.0, %v2873
        %v2875 = vpop.f32.mrb[0].mxu0
        %2876 = vmatprep.mubr.f32.mxu0 0.0
        %2877 = vmatmul.mubr.f32.gmra.mrb[0].mxu0 %v2656
        %v2878 = vpop.f32.mrb[0].mxu0
        %v2879 = vadd.f32 0.0, %v2878
        %v2880 = vpop.f32.mrb[0].mxu0
        %2881 = vmatprep.mubr.f32.mxu0 0.0
        %2882 = vmatmul.mubr.f32.gmra.mrb[0].mxu0 %v2659
        %v2883 = vpop.f32.mrb[0].mxu0
        %v2884 = vadd.f32 0.0, %v2883
        %v2885 = vpop.f32.mrb[0].mxu0
        %2886 = vmatprep.mubr.f32.mxu0 0.0
        %2887 = vmatmul.mubr.f32.gmra.mrb[0].mxu0 %v2662
        %v2888 = vpop.f32.mrb[0].mxu0
        %v2889 = vadd.f32 0.0, %v2888
        %v2890 = vpop.f32.mrb[0].mxu0
        %2891 = vdwg.mxu0
        %v2892 = vadd.f32 %v2501, %v2734
        %v2893 = vadd.f32 %v2502, %v2739
        %v2894 = vadd.f32 %v2503, %v2744
        %v2895 = vadd.f32 %v2504, %v2749
        %v2896 = vadd.f32 %v2505, %v2754
        %v2897 = vadd.f32 %v2506, %v2759
        %v2898 = vadd.f32 %v2507, %v2764
        %v2899 = vadd.f32 %v2508, %v2769
        %v2900 = vadd.f32 %v2509, %v2774
        %v2901 = vadd.f32 %v2510, %v2779
        %v2902 = vadd.f32 %v2511, %v2784
        %v2903 = vadd.f32 %v2512, %v2789
        %v2904 = vadd.f32 %v2513, %v2794
        %v2905 = vadd.f32 %v2514, %v2799
        %v2906 = vadd.f32 %v2515, %v2804
        %v2907 = vadd.f32 %v2516, %v2809
        %v2908 = vadd.f32 %v2517, %v2814
        %v2909 = vadd.f32 %v2518, %v2819
        %v2910 = vadd.f32 %v2519, %v2824
        %v2911 = vadd.f32 %v2520, %v2829
        %v2912 = vadd.f32 %v2521, %v2834
        %v2913 = vadd.f32 %v2522, %v2839
        %v2914 = vadd.f32 %v2523, %v2844
        %v2915 = vadd.f32 %v2524, %v2849
        %v2916 = vadd.f32 %v2525, %v2854
        %v2917 = vadd.f32 %v2526, %v2859
        %v2918 = vadd.f32 %v2527, %v2864
        %v2919 = vadd.f32 %v2528, %v2869
        %v2920 = vadd.f32 %v2529, %v2874
        %v2921 = vadd.f32 %v2530, %v2879
        %v2922 = vadd.f32 %v2531, %v2884
        %v2923 = vadd.f32 %v2532, %v2889
        %v2924 = vld [vmem:[%s2533 + $0x1] sm:$0xff]
        %v2925 = vld [vmem:[%s2533 + $0x9] sm:$0xff]
        %v2926 = vld [vmem:[%s2533 + $0x19] sm:$0xff]
        %v2927 = vld [vmem:[%s2533 + $0x21] sm:$0xff]
        %v2928 = vld [vmem:[%s2533 + $0x31] sm:$0xff]
        %v2929 = vld [vmem:[%s2533 + $0x39] sm:$0xff]
        %v2930 = vld [vmem:[%s2533 + $0x49] sm:$0xff]
        %v2931 = vld [vmem:[%s2533 + $0x51] sm:$0xff]
        %v2932 = vld [vmem:[%s2533 + $0x61] sm:$0xff]
        %v2933 = vld [vmem:[%s2533 + $0x69] sm:$0xff]
        %v2934 = vld [vmem:[%s2533 + $0x79] sm:$0xff]
        %v2935 = vld [vmem:[%s2533 + $0x81] sm:$0xff]
        %v2936 = vld [vmem:[%s2533 + $0x91] sm:$0xff]
        %v2937 = vld [vmem:[%s2533 + $0x99] sm:$0xff]
        %v2938 = vld [vmem:[%s2533 + $0xa9] sm:$0xff]
        %v2939 = vld [vmem:[%s2533 + $0xb1] sm:$0xff]
        %v2940 = vld [vmem:[%s2533 + $0xc1] sm:$0xff]
        %v2941 = vld [vmem:[%s2533 + $0xc9] sm:$0xff]
        %v2942 = vld [vmem:[%s2533 + $0xd9] sm:$0xff]
        %v2943 = vld [vmem:[%s2533 + $0xe1] sm:$0xff]
        %v2944 = vld [vmem:[%s2533 + $0xf1] sm:$0xff]
        %v2945 = vld [vmem:[%s2533 + $0xf9] sm:$0xff]
        %v2946 = vld [vmem:[%s2533 + $0x109] sm:$0xff]
        %v2947 = vld [vmem:[%s2533 + $0x111] sm:$0xff]
        %v2948 = vld [vmem:[%s2533 + $0x121] sm:$0xff]
        %v2949 = vld [vmem:[%s2533 + $0x129] sm:$0xff]
        %v2950 = vld [vmem:[%s2533 + $0x139] sm:$0xff]
        %v2951 = vld [vmem:[%s2533 + $0x141] sm:$0xff]
        %v2952 = vld [vmem:[%s2533 + $0x151] sm:$0xff]
        %v2953 = vld [vmem:[%s2533 + $0x159] sm:$0xff]
        %v2954 = vld [vmem:[%s2533 + $0x169] sm:$0xff]
        %v2955 = vld [vmem:[%s2533 + $0x171] sm:$0xff]
        %s2956 = scalar_lea.vmem %s248, 28
        %v2957 = vld [vmem:[%s2956] sm:$0xf]
        %v2959 = vsel %vm322, %v2924, 0
        %v2962 = vsel %vm322, %v2925, 0
        %v2965 = vsel %vm322, %v2926, 0
        %v2968 = vsel %vm322, %v2927, 0
        %v2971 = vsel %vm322, %v2928, 0
        %v2974 = vsel %vm322, %v2929, 0
        %v2977 = vsel %vm322, %v2930, 0
        %v2980 = vsel %vm322, %v2931, 0
        %v2983 = vsel %vm322, %v2932, 0
        %v2986 = vsel %vm322, %v2933, 0
        %v2989 = vsel %vm322, %v2934, 0
        %v2992 = vsel %vm322, %v2935, 0
        %v2995 = vsel %vm322, %v2936, 0
        %v2998 = vsel %vm322, %v2937, 0
        %v3001 = vsel %vm322, %v2938, 0
        %v3004 = vsel %vm322, %v2939, 0
        %v3007 = vsel %vm322, %v2940, 0
        %v3010 = vsel %vm322, %v2941, 0
        %v3013 = vsel %vm322, %v2942, 0
        %v3016 = vsel %vm322, %v2943, 0
        %v3019 = vsel %vm322, %v2944, 0
        %v3022 = vsel %vm322, %v2945, 0
        %v3025 = vsel %vm322, %v2946, 0
        %v3028 = vsel %vm322, %v2947, 0
        %v3031 = vsel %vm322, %v2948, 0
        %v3034 = vsel %vm322, %v2949, 0
        %v3037 = vsel %vm322, %v2950, 0
        %v3040 = vsel %vm322, %v2951, 0
        %v3043 = vsel %vm322, %v2952, 0
        %v3046 = vsel %vm322, %v2953, 0
        %v3049 = vsel %vm322, %v2954, 0
        %v3052 = vsel %vm322, %v2955, 0
        %v3055 = vsel %vm419, %v2957, 0
        %3057 = vmatprep.subr.mxu0 0.0
        %3058 = vmatpush1.msra.mxu0 %v3055
        %3059 = vmatprep.subr.mxu0 0.0
        %3060 = vmatpush1.msra.mxu0 0.0
        %3061 = vmatprep.subr.mxu0 0.0
        %3062 = vmatpush1.msra.mxu0 0.0
        %3063 = vmatprep.subr.mxu0 0.0
        %3064 = vmatpush1.msra.mxu0 0.0
        %3065 = vmatprep.subr.mxu0 0.0
        %3066 = vmatpush1.msra.mxu0 0.0
        %3067 = vmatprep.subr.mxu0 0.0
        %3068 = vmatpush1.msra.mxu0 0.0
        %3069 = vmatprep.subr.mxu0 0.0
        %3070 = vmatpush1.msra.mxu0 0.0
        %3071 = vmatprep.subr.mxu0 0.0
        %3072 = vmatpush1.msra.mxu0 0.0
        %3073 = vmatprep.subr.mxu0 0.0
        %3074 = vmatpush1.msra.mxu0 0.0
        %3075 = vmatprep.subr.mxu0 0.0
        %3076 = vmatpush1.msra.mxu0 0.0
        %3077 = vmatprep.subr.mxu0 0.0
        %3078 = vmatpush1.msra.mxu0 0.0
        %3079 = vmatprep.subr.mxu0 0.0
        %3080 = vmatpush1.msra.mxu0 0.0
        %3081 = vmatprep.subr.mxu0 0.0
        %3082 = vmatpush1.msra.mxu0 0.0
        %3083 = vmatprep.subr.mxu0 0.0
        %3084 = vmatpush1.msra.mxu0 0.0
        %3085 = vmatprep.subr.mxu0 0.0
        %3086 = vmatpush1.msra.mxu0 0.0
        %3087 = vmatprep.subr.mxu0 0.0
        %3088 = vmatpush1.msra.mxu0 0.0
        %3089 = vmatprep.subr.mxu0 0.0
        %3090 = vmatpush1.msra.mxu0 0.0
        %3091 = vmatprep.subr.mxu0 0.0
        %3092 = vmatpush1.msra.mxu0 0.0
        %3093 = vmatprep.subr.mxu0 0.0
        %3094 = vmatpush1.msra.mxu0 0.0
        %3095 = vmatprep.subr.mxu0 0.0
        %3096 = vmatpush1.msra.mxu0 0.0
        %3097 = vmatprep.subr.mxu0 0.0
        %3098 = vmatpush1.msra.mxu0 0.0
        %3099 = vmatprep.subr.mxu0 0.0
        %3100 = vmatpush1.msra.mxu0 0.0
        %3101 = vmatprep.subr.mxu0 0.0
        %3102 = vmatpush1.msra.mxu0 0.0
        %3103 = vmatprep.subr.mxu0 0.0
        %3104 = vmatpush1.msra.mxu0 0.0
        %3105 = vmatprep.subr.mxu0 0.0
        %3106 = vmatpush1.msra.mxu0 0.0
        %3107 = vmatprep.subr.mxu0 0.0
        %3108 = vmatpush1.msra.mxu0 0.0
        %3109 = vmatprep.subr.mxu0 0.0
        %3110 = vmatpush1.msra.mxu0 0.0
        %3111 = vmatprep.subr.mxu0 0.0
        %3112 = vmatpush1.msra.mxu0 0.0
        %3113 = vmatprep.subr.mxu0 0.0
        %3114 = vmatpush1.msra.mxu0 0.0
        %3115 = vmatprep.subr.mxu0 0.0
        %3116 = vmatpush1.msra.mxu0 0.0
        %3117 = vmatprep.subr.mxu0 0.0
        %3118 = vmatpush1.msra.mxu0 0.0
        %3119 = vmatprep.subr.mxu0 0.0
        %3120 = vmatpush1.msra.mxu0 0.0
        %3121 = vmatprep.mubr.f32.mxu0 0.0
        %3122 = vmatmul.mubr.f32.gmra.mrb[0].mxu0 %v2959
        %v3123 = vpop.f32.mrb[0].mxu0
        %v3124 = vadd.f32 0.0, %v3123
        %v3125 = vpop.f32.mrb[0].mxu0
        %3126 = vmatprep.mubr.f32.mxu0 0.0
        %3127 = vmatmul.mubr.f32.gmra.mrb[0].mxu0 %v2962
        %v3128 = vpop.f32.mrb[0].mxu0
        %v3129 = vadd.f32 0.0, %v3128
        %v3130 = vpop.f32.mrb[0].mxu0
        %3131 = vmatprep.mubr.f32.mxu0 0.0
        %3132 = vmatmul.mubr.f32.gmra.mrb[0].mxu0 %v2965
        %v3133 = vpop.f32.mrb[0].mxu0
        %v3134 = vadd.f32 0.0, %v3133
        %v3135 = vpop.f32.mrb[0].mxu0
        %3136 = vmatprep.mubr.f32.mxu0 0.0
        %3137 = vmatmul.mubr.f32.gmra.mrb[0].mxu0 %v2968
        %v3138 = vpop.f32.mrb[0].mxu0
        %v3139 = vadd.f32 0.0, %v3138
        %v3140 = vpop.f32.mrb[0].mxu0
        %3141 = vmatprep.mubr.f32.mxu0 0.0
        %3142 = vmatmul.mubr.f32.gmra.mrb[0].mxu0 %v2971
        %v3143 = vpop.f32.mrb[0].mxu0
        %v3144 = vadd.f32 0.0, %v3143
        %v3145 = vpop.f32.mrb[0].mxu0
        %3146 = vmatprep.mubr.f32.mxu0 0.0
        %3147 = vmatmul.mubr.f32.gmra.mrb[0].mxu0 %v2974
        %v3148 = vpop.f32.mrb[0].mxu0
        %v3149 = vadd.f32 0.0, %v3148
        %v3150 = vpop.f32.mrb[0].mxu0
        %3151 = vmatprep.mubr.f32.mxu0 0.0
        %3152 = vmatmul.mubr.f32.gmra.mrb[0].mxu0 %v2977
        %v3153 = vpop.f32.mrb[0].mxu0
        %v3154 = vadd.f32 0.0, %v3153
        %v3155 = vpop.f32.mrb[0].mxu0
        %3156 = vmatprep.mubr.f32.mxu0 0.0
        %3157 = vmatmul.mubr.f32.gmra.mrb[0].mxu0 %v2980
        %v3158 = vpop.f32.mrb[0].mxu0
        %v3159 = vadd.f32 0.0, %v3158
        %v3160 = vpop.f32.mrb[0].mxu0
        %3161 = vmatprep.mubr.f32.mxu0 0.0
        %3162 = vmatmul.mubr.f32.gmra.mrb[0].mxu0 %v2983
        %v3163 = vpop.f32.mrb[0].mxu0
        %v3164 = vadd.f32 0.0, %v3163
        %v3165 = vpop.f32.mrb[0].mxu0
        %3166 = vmatprep.mubr.f32.mxu0 0.0
        %3167 = vmatmul.mubr.f32.gmra.mrb[0].mxu0 %v2986
        %v3168 = vpop.f32.mrb[0].mxu0
        %v3169 = vadd.f32 0.0, %v3168
        %v3170 = vpop.f32.mrb[0].mxu0
        %3171 = vmatprep.mubr.f32.mxu0 0.0
        %3172 = vmatmul.mubr.f32.gmra.mrb[0].mxu0 %v2989
        %v3173 = vpop.f32.mrb[0].mxu0
        %v3174 = vadd.f32 0.0, %v3173
        %v3175 = vpop.f32.mrb[0].mxu0
        %3176 = vmatprep.mubr.f32.mxu0 0.0
        %3177 = vmatmul.mubr.f32.gmra.mrb[0].mxu0 %v2992
        %v3178 = vpop.f32.mrb[0].mxu0
        %v3179 = vadd.f32 0.0, %v3178
        %v3180 = vpop.f32.mrb[0].mxu0
        %3181 = vmatprep.mubr.f32.mxu0 0.0
        %3182 = vmatmul.mubr.f32.gmra.mrb[0].mxu0 %v2995
        %v3183 = vpop.f32.mrb[0].mxu0
        %v3184 = vadd.f32 0.0, %v3183
        %v3185 = vpop.f32.mrb[0].mxu0
        %3186 = vmatprep.mubr.f32.mxu0 0.0
        %3187 = vmatmul.mubr.f32.gmra.mrb[0].mxu0 %v2998
        %v3188 = vpop.f32.mrb[0].mxu0
        %v3189 = vadd.f32 0.0, %v3188
        %v3190 = vpop.f32.mrb[0].mxu0
        %3191 = vmatprep.mubr.f32.mxu0 0.0
        %3192 = vmatmul.mubr.f32.gmra.mrb[0].mxu0 %v3001
        %v3193 = vpop.f32.mrb[0].mxu0
        %v3194 = vadd.f32 0.0, %v3193
        %v3195 = vpop.f32.mrb[0].mxu0
        %3196 = vmatprep.mubr.f32.mxu0 0.0
        %3197 = vmatmul.mubr.f32.gmra.mrb[0].mxu0 %v3004
        %v3198 = vpop.f32.mrb[0].mxu0
        %v3199 = vadd.f32 0.0, %v3198
        %v3200 = vpop.f32.mrb[0].mxu0
        %3201 = vmatprep.mubr.f32.mxu0 0.0
        %3202 = vmatmul.mubr.f32.gmra.mrb[0].mxu0 %v3007
        %v3203 = vpop.f32.mrb[0].mxu0
        %v3204 = vadd.f32 0.0, %v3203
        %v3205 = vpop.f32.mrb[0].mxu0
        %3206 = vmatprep.mubr.f32.mxu0 0.0
        %3207 = vmatmul.mubr.f32.gmra.mrb[0].mxu0 %v3010
        %v3208 = vpop.f32.mrb[0].mxu0
        %v3209 = vadd.f32 0.0, %v3208
        %v3210 = vpop.f32.mrb[0].mxu0
        %3211 = vmatprep.mubr.f32.mxu0 0.0
        %3212 = vmatmul.mubr.f32.gmra.mrb[0].mxu0 %v3013
        %v3213 = vpop.f32.mrb[0].mxu0
        %v3214 = vadd.f32 0.0, %v3213
        %v3215 = vpop.f32.mrb[0].mxu0
        %3216 = vmatprep.mubr.f32.mxu0 0.0
        %3217 = vmatmul.mubr.f32.gmra.mrb[0].mxu0 %v3016
        %v3218 = vpop.f32.mrb[0].mxu0
        %v3219 = vadd.f32 0.0, %v3218
        %v3220 = vpop.f32.mrb[0].mxu0
        %3221 = vmatprep.mubr.f32.mxu0 0.0
        %3222 = vmatmul.mubr.f32.gmra.mrb[0].mxu0 %v3019
        %v3223 = vpop.f32.mrb[0].mxu0
        %v3224 = vadd.f32 0.0, %v3223
        %v3225 = vpop.f32.mrb[0].mxu0
        %3226 = vmatprep.mubr.f32.mxu0 0.0
        %3227 = vmatmul.mubr.f32.gmra.mrb[0].mxu0 %v3022
        %v3228 = vpop.f32.mrb[0].mxu0
        %v3229 = vadd.f32 0.0, %v3228
        %v3230 = vpop.f32.mrb[0].mxu0
        %3231 = vmatprep.mubr.f32.mxu0 0.0
        %3232 = vmatmul.mubr.f32.gmra.mrb[0].mxu0 %v3025
        %v3233 = vpop.f32.mrb[0].mxu0
        %v3234 = vadd.f32 0.0, %v3233
        %v3235 = vpop.f32.mrb[0].mxu0
        %3236 = vmatprep.mubr.f32.mxu0 0.0
        %3237 = vmatmul.mubr.f32.gmra.mrb[0].mxu0 %v3028
        %v3238 = vpop.f32.mrb[0].mxu0
        %v3239 = vadd.f32 0.0, %v3238
        %v3240 = vpop.f32.mrb[0].mxu0
        %3241 = vmatprep.mubr.f32.mxu0 0.0
        %3242 = vmatmul.mubr.f32.gmra.mrb[0].mxu0 %v3031
        %v3243 = vpop.f32.mrb[0].mxu0
        %v3244 = vadd.f32 0.0, %v3243
        %v3245 = vpop.f32.mrb[0].mxu0
        %3246 = vmatprep.mubr.f32.mxu0 0.0
        %3247 = vmatmul.mubr.f32.gmra.mrb[0].mxu0 %v3034
        %v3248 = vpop.f32.mrb[0].mxu0
        %v3249 = vadd.f32 0.0, %v3248
        %v3250 = vpop.f32.mrb[0].mxu0
        %3251 = vmatprep.mubr.f32.mxu0 0.0
        %3252 = vmatmul.mubr.f32.gmra.mrb[0].mxu0 %v3037
        %v3253 = vpop.f32.mrb[0].mxu0
        %v3254 = vadd.f32 0.0, %v3253
        %v3255 = vpop.f32.mrb[0].mxu0
        %3256 = vmatprep.mubr.f32.mxu0 0.0
        %3257 = vmatmul.mubr.f32.gmra.mrb[0].mxu0 %v3040
        %v3258 = vpop.f32.mrb[0].mxu0
        %v3259 = vadd.f32 0.0, %v3258
        %v3260 = vpop.f32.mrb[0].mxu0
        %3261 = vmatprep.mubr.f32.mxu0 0.0
        %3262 = vmatmul.mubr.f32.gmra.mrb[0].mxu0 %v3043
        %v3263 = vpop.f32.mrb[0].mxu0
        %v3264 = vadd.f32 0.0, %v3263
        %v3265 = vpop.f32.mrb[0].mxu0
        %3266 = vmatprep.mubr.f32.mxu0 0.0
        %3267 = vmatmul.mubr.f32.gmra.mrb[0].mxu0 %v3046
        %v3268 = vpop.f32.mrb[0].mxu0
        %v3269 = vadd.f32 0.0, %v3268
        %v3270 = vpop.f32.mrb[0].mxu0
        %3271 = vmatprep.mubr.f32.mxu0 0.0
        %3272 = vmatmul.mubr.f32.gmra.mrb[0].mxu0 %v3049
        %v3273 = vpop.f32.mrb[0].mxu0
        %v3274 = vadd.f32 0.0, %v3273
        %v3275 = vpop.f32.mrb[0].mxu0
        %3276 = vmatprep.mubr.f32.mxu0 0.0
        %3277 = vmatmul.mubr.f32.gmra.mrb[0].mxu0 %v3052
        %v3278 = vpop.f32.mrb[0].mxu0
        %v3279 = vadd.f32 0.0, %v3278
        %v3280 = vpop.f32.mrb[0].mxu0
        %3281 = vdwg.mxu0
        %v3282 = vadd.f32 %v2892, %v3124
        %v3283 = vadd.f32 %v2893, %v3129
        %v3284 = vadd.f32 %v2894, %v3134
        %v3285 = vadd.f32 %v2895, %v3139
        %v3286 = vadd.f32 %v2896, %v3144
        %v3287 = vadd.f32 %v2897, %v3149
        %v3288 = vadd.f32 %v2898, %v3154
        %v3289 = vadd.f32 %v2899, %v3159
        %v3290 = vadd.f32 %v2900, %v3164
        %v3291 = vadd.f32 %v2901, %v3169
        %v3292 = vadd.f32 %v2902, %v3174
        %v3293 = vadd.f32 %v2903, %v3179
        %v3294 = vadd.f32 %v2904, %v3184
        %v3295 = vadd.f32 %v2905, %v3189
        %v3296 = vadd.f32 %v2906, %v3194
        %v3297 = vadd.f32 %v2907, %v3199
        %v3298 = vadd.f32 %v2908, %v3204
        %v3299 = vadd.f32 %v2909, %v3209
        %v3300 = vadd.f32 %v2910, %v3214
        %v3301 = vadd.f32 %v2911, %v3219
        %v3302 = vadd.f32 %v2912, %v3224
        %v3303 = vadd.f32 %v2913, %v3229
        %v3304 = vadd.f32 %v2914, %v3234
        %v3305 = vadd.f32 %v2915, %v3239
        %v3306 = vadd.f32 %v2916, %v3244
        %v3307 = vadd.f32 %v2917, %v3249
        %v3308 = vadd.f32 %v2918, %v3254
        %v3309 = vadd.f32 %v2919, %v3259
        %v3310 = vadd.f32 %v2920, %v3264
        %v3311 = vadd.f32 %v2921, %v3269
        %v3312 = vadd.f32 %v2922, %v3274
        %v3313 = vadd.f32 %v2923, %v3279
        %v3314 = vld [vmem:[%s2533 + $0x2] sm:$0xff]
        %v3315 = vld [vmem:[%s2533 + $0xa] sm:$0xff]
        %v3316 = vld [vmem:[%s2533 + $0x1a] sm:$0xff]
        %v3317 = vld [vmem:[%s2533 + $0x22] sm:$0xff]
        %v3318 = vld [vmem:[%s2533 + $0x32] sm:$0xff]
        %v3319 = vld [vmem:[%s2533 + $0x3a] sm:$0xff]
        %v3320 = vld [vmem:[%s2533 + $0x4a] sm:$0xff]
        %v3321 = vld [vmem:[%s2533 + $0x52] sm:$0xff]
        %v3322 = vld [vmem:[%s2533 + $0x62] sm:$0xff]
        %v3323 = vld [vmem:[%s2533 + $0x6a] sm:$0xff]
        %v3324 = vld [vmem:[%s2533 + $0x7a] sm:$0xff]
        %v3325 = vld [vmem:[%s2533 + $0x82] sm:$0xff]
        %v3326 = vld [vmem:[%s2533 + $0x92] sm:$0xff]
        %v3327 = vld [vmem:[%s2533 + $0x9a] sm:$0xff]
        %v3328 = vld [vmem:[%s2533 + $0xaa] sm:$0xff]
        %v3329 = vld [vmem:[%s2533 + $0xb2] sm:$0xff]
        %v3330 = vld [vmem:[%s2533 + $0xc2] sm:$0xff]
        %v3331 = vld [vmem:[%s2533 + $0xca] sm:$0xff]
        %v3332 = vld [vmem:[%s2533 + $0xda] sm:$0xff]
        %v3333 = vld [vmem:[%s2533 + $0xe2] sm:$0xff]
        %v3334 = vld [vmem:[%s2533 + $0xf2] sm:$0xff]
        %v3335 = vld [vmem:[%s2533 + $0xfa] sm:$0xff]
        %v3336 = vld [vmem:[%s2533 + $0x10a] sm:$0xff]
        %v3337 = vld [vmem:[%s2533 + $0x112] sm:$0xff]
        %v3338 = vld [vmem:[%s2533 + $0x122] sm:$0xff]
        %v3339 = vld [vmem:[%s2533 + $0x12a] sm:$0xff]
        %v3340 = vld [vmem:[%s2533 + $0x13a] sm:$0xff]
        %v3341 = vld [vmem:[%s2533 + $0x142] sm:$0xff]
        %v3342 = vld [vmem:[%s2533 + $0x152] sm:$0xff]
        %v3343 = vld [vmem:[%s2533 + $0x15a] sm:$0xff]
        %v3344 = vld [vmem:[%s2533 + $0x16a] sm:$0xff]
        %v3345 = vld [vmem:[%s2533 + $0x172] sm:$0xff]
        %s3346 = scalar_lea.vmem %s248, 32
        %v3347 = vld [vmem:[%s3346] sm:$0xf]
        %v3349 = vsel %vm322, %v3314, 0
        %v3352 = vsel %vm322, %v3315, 0
        %v3355 = vsel %vm322, %v3316, 0
        %v3358 = vsel %vm322, %v3317, 0
        %v3361 = vsel %vm322, %v3318, 0
        %v3364 = vsel %vm322, %v3319, 0
        %v3367 = vsel %vm322, %v3320, 0
        %v3370 = vsel %vm322, %v3321, 0
        %v3373 = vsel %vm322, %v3322, 0
        %v3376 = vsel %vm322, %v3323, 0
        %v3379 = vsel %vm322, %v3324, 0
        %v3382 = vsel %vm322, %v3325, 0
        %v3385 = vsel %vm322, %v3326, 0
        %v3388 = vsel %vm322, %v3327, 0
        %v3391 = vsel %vm322, %v3328, 0
        %v3394 = vsel %vm322, %v3329, 0
        %v3397 = vsel %vm322, %v3330, 0
        %v3400 = vsel %vm322, %v3331, 0
        %v3403 = vsel %vm322, %v3332, 0
        %v3406 = vsel %vm322, %v3333, 0
        %v3409 = vsel %vm322, %v3334, 0
        %v3412 = vsel %vm322, %v3335, 0
        %v3415 = vsel %vm322, %v3336, 0
        %v3418 = vsel %vm322, %v3337, 0
        %v3421 = vsel %vm322, %v3338, 0
        %v3424 = vsel %vm322, %v3339, 0
        %v3427 = vsel %vm322, %v3340, 0
        %v3430 = vsel %vm322, %v3341, 0
        %v3433 = vsel %vm322, %v3342, 0
        %v3436 = vsel %vm322, %v3343, 0
        %v3439 = vsel %vm322, %v3344, 0
        %v3442 = vsel %vm322, %v3345, 0
        %v3445 = vsel %vm419, %v3347, 0
        %3447 = vmatprep.subr.mxu0 0.0
        %3448 = vmatpush1.msra.mxu0 %v3445
        %3449 = vmatprep.subr.mxu0 0.0
        %3450 = vmatpush1.msra.mxu0 0.0
        %3451 = vmatprep.subr.mxu0 0.0
        %3452 = vmatpush1.msra.mxu0 0.0
        %3453 = vmatprep.subr.mxu0 0.0
        %3454 = vmatpush1.msra.mxu0 0.0
        %3455 = vmatprep.subr.mxu0 0.0
        %3456 = vmatpush1.msra.mxu0 0.0
        %3457 = vmatprep.subr.mxu0 0.0
        %3458 = vmatpush1.msra.mxu0 0.0
        %3459 = vmatprep.subr.mxu0 0.0
        %3460 = vmatpush1.msra.mxu0 0.0
        %3461 = vmatprep.subr.mxu0 0.0
        %3462 = vmatpush1.msra.mxu0 0.0
        %3463 = vmatprep.subr.mxu0 0.0
        %3464 = vmatpush1.msra.mxu0 0.0
        %3465 = vmatprep.subr.mxu0 0.0
        %3466 = vmatpush1.msra.mxu0 0.0
        %3467 = vmatprep.subr.mxu0 0.0
        %3468 = vmatpush1.msra.mxu0 0.0
        %3469 = vmatprep.subr.mxu0 0.0
        %3470 = vmatpush1.msra.mxu0 0.0
        %3471 = vmatprep.subr.mxu0 0.0
        %3472 = vmatpush1.msra.mxu0 0.0
        %3473 = vmatprep.subr.mxu0 0.0
        %3474 = vmatpush1.msra.mxu0 0.0
        %3475 = vmatprep.subr.mxu0 0.0
        %3476 = vmatpush1.msra.mxu0 0.0
        %3477 = vmatprep.subr.mxu0 0.0
        %3478 = vmatpush1.msra.mxu0 0.0
        %3479 = vmatprep.subr.mxu0 0.0
        %3480 = vmatpush1.msra.mxu0 0.0
        %3481 = vmatprep.subr.mxu0 0.0
        %3482 = vmatpush1.msra.mxu0 0.0
        %3483 = vmatprep.subr.mxu0 0.0
        %3484 = vmatpush1.msra.mxu0 0.0
        %3485 = vmatprep.subr.mxu0 0.0
        %3486 = vmatpush1.msra.mxu0 0.0
        %3487 = vmatprep.subr.mxu0 0.0
        %3488 = vmatpush1.msra.mxu0 0.0
        %3489 = vmatprep.subr.mxu0 0.0
        %3490 = vmatpush1.msra.mxu0 0.0
        %3491 = vmatprep.subr.mxu0 0.0
        %3492 = vmatpush1.msra.mxu0 0.0
        %3493 = vmatprep.subr.mxu0 0.0
        %3494 = vmatpush1.msra.mxu0 0.0
        %3495 = vmatprep.subr.mxu0 0.0
        %3496 = vmatpush1.msra.mxu0 0.0
        %3497 = vmatprep.subr.mxu0 0.0
        %3498 = vmatpush1.msra.mxu0 0.0
        %3499 = vmatprep.subr.mxu0 0.0
        %3500 = vmatpush1.msra.mxu0 0.0
        %3501 = vmatprep.subr.mxu0 0.0
        %3502 = vmatpush1.msra.mxu0 0.0
        %3503 = vmatprep.subr.mxu0 0.0
        %3504 = vmatpush1.msra.mxu0 0.0
        %3505 = vmatprep.subr.mxu0 0.0
        %3506 = vmatpush1.msra.mxu0 0.0
        %3507 = vmatprep.subr.mxu0 0.0
        %3508 = vmatpush1.msra.mxu0 0.0
        %3509 = vmatprep.subr.mxu0 0.0
        %3510 = vmatpush1.msra.mxu0 0.0
        %3511 = vmatprep.mubr.f32.mxu0 0.0
        %3512 = vmatmul.mubr.f32.gmra.mrb[0].mxu0 %v3349
        %v3513 = vpop.f32.mrb[0].mxu0
        %v3514 = vadd.f32 0.0, %v3513
        %v3515 = vpop.f32.mrb[0].mxu0
        %3516 = vmatprep.mubr.f32.mxu0 0.0
        %3517 = vmatmul.mubr.f32.gmra.mrb[0].mxu0 %v3352
        %v3518 = vpop.f32.mrb[0].mxu0
        %v3519 = vadd.f32 0.0, %v3518
        %v3520 = vpop.f32.mrb[0].mxu0
        %3521 = vmatprep.mubr.f32.mxu0 0.0
        %3522 = vmatmul.mubr.f32.gmra.mrb[0].mxu0 %v3355
        %v3523 = vpop.f32.mrb[0].mxu0
        %v3524 = vadd.f32 0.0, %v3523
        %v3525 = vpop.f32.mrb[0].mxu0
        %3526 = vmatprep.mubr.f32.mxu0 0.0
        %3527 = vmatmul.mubr.f32.gmra.mrb[0].mxu0 %v3358
        %v3528 = vpop.f32.mrb[0].mxu0
        %v3529 = vadd.f32 0.0, %v3528
        %v3530 = vpop.f32.mrb[0].mxu0
        %3531 = vmatprep.mubr.f32.mxu0 0.0
        %3532 = vmatmul.mubr.f32.gmra.mrb[0].mxu0 %v3361
        %v3533 = vpop.f32.mrb[0].mxu0
        %v3534 = vadd.f32 0.0, %v3533
        %v3535 = vpop.f32.mrb[0].mxu0
        %3536 = vmatprep.mubr.f32.mxu0 0.0
        %3537 = vmatmul.mubr.f32.gmra.mrb[0].mxu0 %v3364
        %v3538 = vpop.f32.mrb[0].mxu0
        %v3539 = vadd.f32 0.0, %v3538
        %v3540 = vpop.f32.mrb[0].mxu0
        %3541 = vmatprep.mubr.f32.mxu0 0.0
        %3542 = vmatmul.mubr.f32.gmra.mrb[0].mxu0 %v3367
        %v3543 = vpop.f32.mrb[0].mxu0
        %v3544 = vadd.f32 0.0, %v3543
        %v3545 = vpop.f32.mrb[0].mxu0
        %3546 = vmatprep.mubr.f32.mxu0 0.0
        %3547 = vmatmul.mubr.f32.gmra.mrb[0].mxu0 %v3370
        %v3548 = vpop.f32.mrb[0].mxu0
        %v3549 = vadd.f32 0.0, %v3548
        %v3550 = vpop.f32.mrb[0].mxu0
        %3551 = vmatprep.mubr.f32.mxu0 0.0
        %3552 = vmatmul.mubr.f32.gmra.mrb[0].mxu0 %v3373
        %v3553 = vpop.f32.mrb[0].mxu0
        %v3554 = vadd.f32 0.0, %v3553
        %v3555 = vpop.f32.mrb[0].mxu0
        %3556 = vmatprep.mubr.f32.mxu0 0.0
        %3557 = vmatmul.mubr.f32.gmra.mrb[0].mxu0 %v3376
        %v3558 = vpop.f32.mrb[0].mxu0
        %v3559 = vadd.f32 0.0, %v3558
        %v3560 = vpop.f32.mrb[0].mxu0
        %3561 = vmatprep.mubr.f32.mxu0 0.0
        %3562 = vmatmul.mubr.f32.gmra.mrb[0].mxu0 %v3379
        %v3563 = vpop.f32.mrb[0].mxu0
        %v3564 = vadd.f32 0.0, %v3563
        %v3565 = vpop.f32.mrb[0].mxu0
        %3566 = vmatprep.mubr.f32.mxu0 0.0
        %3567 = vmatmul.mubr.f32.gmra.mrb[0].mxu0 %v3382
        %v3568 = vpop.f32.mrb[0].mxu0
        %v3569 = vadd.f32 0.0, %v3568
        %v3570 = vpop.f32.mrb[0].mxu0
        %3571 = vmatprep.mubr.f32.mxu0 0.0
        %3572 = vmatmul.mubr.f32.gmra.mrb[0].mxu0 %v3385
        %v3573 = vpop.f32.mrb[0].mxu0
        %v3574 = vadd.f32 0.0, %v3573
        %v3575 = vpop.f32.mrb[0].mxu0
        %3576 = vmatprep.mubr.f32.mxu0 0.0
        %3577 = vmatmul.mubr.f32.gmra.mrb[0].mxu0 %v3388
        %v3578 = vpop.f32.mrb[0].mxu0
        %v3579 = vadd.f32 0.0, %v3578
        %v3580 = vpop.f32.mrb[0].mxu0
        %3581 = vmatprep.mubr.f32.mxu0 0.0
        %3582 = vmatmul.mubr.f32.gmra.mrb[0].mxu0 %v3391
        %v3583 = vpop.f32.mrb[0].mxu0
        %v3584 = vadd.f32 0.0, %v3583
        %v3585 = vpop.f32.mrb[0].mxu0
        %3586 = vmatprep.mubr.f32.mxu0 0.0
        %3587 = vmatmul.mubr.f32.gmra.mrb[0].mxu0 %v3394
        %v3588 = vpop.f32.mrb[0].mxu0
        %v3589 = vadd.f32 0.0, %v3588
        %v3590 = vpop.f32.mrb[0].mxu0
        %3591 = vmatprep.mubr.f32.mxu0 0.0
        %3592 = vmatmul.mubr.f32.gmra.mrb[0].mxu0 %v3397
        %v3593 = vpop.f32.mrb[0].mxu0
        %v3594 = vadd.f32 0.0, %v3593
        %v3595 = vpop.f32.mrb[0].mxu0
        %3596 = vmatprep.mubr.f32.mxu0 0.0
        %3597 = vmatmul.mubr.f32.gmra.mrb[0].mxu0 %v3400
        %v3598 = vpop.f32.mrb[0].mxu0
        %v3599 = vadd.f32 0.0, %v3598
        %v3600 = vpop.f32.mrb[0].mxu0
        %3601 = vmatprep.mubr.f32.mxu0 0.0
        %3602 = vmatmul.mubr.f32.gmra.mrb[0].mxu0 %v3403
        %v3603 = vpop.f32.mrb[0].mxu0
        %v3604 = vadd.f32 0.0, %v3603
        %v3605 = vpop.f32.mrb[0].mxu0
        %3606 = vmatprep.mubr.f32.mxu0 0.0
        %3607 = vmatmul.mubr.f32.gmra.mrb[0].mxu0 %v3406
        %v3608 = vpop.f32.mrb[0].mxu0
        %v3609 = vadd.f32 0.0, %v3608
        %v3610 = vpop.f32.mrb[0].mxu0
        %3611 = vmatprep.mubr.f32.mxu0 0.0
        %3612 = vmatmul.mubr.f32.gmra.mrb[0].mxu0 %v3409
        %v3613 = vpop.f32.mrb[0].mxu0
        %v3614 = vadd.f32 0.0, %v3613
        %v3615 = vpop.f32.mrb[0].mxu0
        %3616 = vmatprep.mubr.f32.mxu0 0.0
        %3617 = vmatmul.mubr.f32.gmra.mrb[0].mxu0 %v3412
        %v3618 = vpop.f32.mrb[0].mxu0
        %v3619 = vadd.f32 0.0, %v3618
        %v3620 = vpop.f32.mrb[0].mxu0
        %3621 = vmatprep.mubr.f32.mxu0 0.0
        %3622 = vmatmul.mubr.f32.gmra.mrb[0].mxu0 %v3415
        %v3623 = vpop.f32.mrb[0].mxu0
        %v3624 = vadd.f32 0.0, %v3623
        %v3625 = vpop.f32.mrb[0].mxu0
        %3626 = vmatprep.mubr.f32.mxu0 0.0
        %3627 = vmatmul.mubr.f32.gmra.mrb[0].mxu0 %v3418
        %v3628 = vpop.f32.mrb[0].mxu0
        %v3629 = vadd.f32 0.0, %v3628
        %v3630 = vpop.f32.mrb[0].mxu0
        %3631 = vmatprep.mubr.f32.mxu0 0.0
        %3632 = vmatmul.mubr.f32.gmra.mrb[0].mxu0 %v3421
        %v3633 = vpop.f32.mrb[0].mxu0
        %v3634 = vadd.f32 0.0, %v3633
        %v3635 = vpop.f32.mrb[0].mxu0
        %3636 = vmatprep.mubr.f32.mxu0 0.0
        %3637 = vmatmul.mubr.f32.gmra.mrb[0].mxu0 %v3424
        %v3638 = vpop.f32.mrb[0].mxu0
        %v3639 = vadd.f32 0.0, %v3638
        %v3640 = vpop.f32.mrb[0].mxu0
        %3641 = vmatprep.mubr.f32.mxu0 0.0
        %3642 = vmatmul.mubr.f32.gmra.mrb[0].mxu0 %v3427
        %v3643 = vpop.f32.mrb[0].mxu0
        %v3644 = vadd.f32 0.0, %v3643
        %v3645 = vpop.f32.mrb[0].mxu0
        %3646 = vmatprep.mubr.f32.mxu0 0.0
        %3647 = vmatmul.mubr.f32.gmra.mrb[0].mxu0 %v3430
        %v3648 = vpop.f32.mrb[0].mxu0
        %v3649 = vadd.f32 0.0, %v3648
        %v3650 = vpop.f32.mrb[0].mxu0
        %3651 = vmatprep.mubr.f32.mxu0 0.0
        %3652 = vmatmul.mubr.f32.gmra.mrb[0].mxu0 %v3433
        %v3653 = vpop.f32.mrb[0].mxu0
        %v3654 = vadd.f32 0.0, %v3653
        %v3655 = vpop.f32.mrb[0].mxu0
        %3656 = vmatprep.mubr.f32.mxu0 0.0
        %3657 = vmatmul.mubr.f32.gmra.mrb[0].mxu0 %v3436
        %v3658 = vpop.f32.mrb[0].mxu0
        %v3659 = vadd.f32 0.0, %v3658
        %v3660 = vpop.f32.mrb[0].mxu0
        %3661 = vmatprep.mubr.f32.mxu0 0.0
        %3662 = vmatmul.mubr.f32.gmra.mrb[0].mxu0 %v3439
        %v3663 = vpop.f32.mrb[0].mxu0
        %v3664 = vadd.f32 0.0, %v3663
        %v3665 = vpop.f32.mrb[0].mxu0
        %3666 = vmatprep.mubr.f32.mxu0 0.0
        %3667 = vmatmul.mubr.f32.gmra.mrb[0].mxu0 %v3442
        %v3668 = vpop.f32.mrb[0].mxu0
        %v3669 = vadd.f32 0.0, %v3668
        %v3670 = vpop.f32.mrb[0].mxu0
        %3671 = vdwg.mxu0
        %v3672 = vadd.f32 %v3282, %v3514
        %v3673 = vadd.f32 %v3283, %v3519
        %v3674 = vadd.f32 %v3284, %v3524
        %v3675 = vadd.f32 %v3285, %v3529
        %v3676 = vadd.f32 %v3286, %v3534
        %v3677 = vadd.f32 %v3287, %v3539
        %v3678 = vadd.f32 %v3288, %v3544
        %v3679 = vadd.f32 %v3289, %v3549
        %v3680 = vadd.f32 %v3290, %v3554
        %v3681 = vadd.f32 %v3291, %v3559
        %v3682 = vadd.f32 %v3292, %v3564
        %v3683 = vadd.f32 %v3293, %v3569
        %v3684 = vadd.f32 %v3294, %v3574
        %v3685 = vadd.f32 %v3295, %v3579
        %v3686 = vadd.f32 %v3296, %v3584
        %v3687 = vadd.f32 %v3297, %v3589
        %v3688 = vadd.f32 %v3298, %v3594
        %v3689 = vadd.f32 %v3299, %v3599
        %v3690 = vadd.f32 %v3300, %v3604
        %v3691 = vadd.f32 %v3301, %v3609
        %v3692 = vadd.f32 %v3302, %v3614
        %v3693 = vadd.f32 %v3303, %v3619
        %v3694 = vadd.f32 %v3304, %v3624
        %v3695 = vadd.f32 %v3305, %v3629
        %v3696 = vadd.f32 %v3306, %v3634
        %v3697 = vadd.f32 %v3307, %v3639
        %v3698 = vadd.f32 %v3308, %v3644
        %v3699 = vadd.f32 %v3309, %v3649
        %v3700 = vadd.f32 %v3310, %v3654
        %v3701 = vadd.f32 %v3311, %v3659
        %v3702 = vadd.f32 %v3312, %v3664
        %v3703 = vadd.f32 %v3313, %v3669
        %v3704 = vld [vmem:[%s251] sm:$0x1]
        %v3706 = vlaneseq
        %v3707 = vshrl.u32 %v3706, 7
        %v3708 = vsub.s32 0, %v3707
        %v3709 = vrot.slane %v3704, %v3708
        %v3711 = vmul.f32 %v3672, %v3709
        %v3712 = vmul.f32 %v3673, %v3709
        %v3713 = vmul.f32 %v3674, %v3709
        %v3714 = vmul.f32 %v3675, %v3709
        %v3715 = vmul.f32 %v3676, %v3709
        %v3716 = vmul.f32 %v3677, %v3709
        %v3717 = vmul.f32 %v3678, %v3709
        %v3718 = vmul.f32 %v3679, %v3709
        %v3719 = vmul.f32 %v3680, %v3709
        %v3720 = vmul.f32 %v3681, %v3709
        %v3721 = vmul.f32 %v3682, %v3709
        %v3722 = vmul.f32 %v3683, %v3709
        %v3723 = vmul.f32 %v3684, %v3709
        %v3724 = vmul.f32 %v3685, %v3709
        %v3725 = vmul.f32 %v3686, %v3709
        %v3726 = vmul.f32 %v3687, %v3709
        %v3727 = vmul.f32 %v3688, %v3709
        %v3728 = vmul.f32 %v3689, %v3709
        %v3729 = vmul.f32 %v3690, %v3709
        %v3730 = vmul.f32 %v3691, %v3709
        %v3731 = vmul.f32 %v3692, %v3709
        %v3732 = vmul.f32 %v3693, %v3709
        %v3733 = vmul.f32 %v3694, %v3709
        %v3734 = vmul.f32 %v3695, %v3709
        %v3735 = vmul.f32 %v3696, %v3709
        %v3736 = vmul.f32 %v3697, %v3709
        %v3737 = vmul.f32 %v3698, %v3709
        %v3738 = vmul.f32 %v3699, %v3709
        %v3739 = vmul.f32 %v3700, %v3709
        %v3740 = vmul.f32 %v3701, %v3709
        %v3741 = vmul.f32 %v3702, %v3709
        %v3742 = vmul.f32 %v3703, %v3709
        %v3743 = vld [vmem:[%s254] sm:$0x1]
        %v3745 = vlaneseq
        %v3746 = vshrl.u32 %v3745, 7
        %v3747 = vsub.s32 0, %v3746
        %v3748 = vrot.slane %v3743, %v3747
        %v3750 = vadd.f32 %v3711, %v3748
        %v3751 = vadd.f32 %v3712, %v3748
        %v3752 = vadd.f32 %v3713, %v3748
        %v3753 = vadd.f32 %v3714, %v3748
        %v3754 = vadd.f32 %v3715, %v3748
        %v3755 = vadd.f32 %v3716, %v3748
        %v3756 = vadd.f32 %v3717, %v3748
        %v3757 = vadd.f32 %v3718, %v3748
        %v3758 = vadd.f32 %v3719, %v3748
        %v3759 = vadd.f32 %v3720, %v3748
        %v3760 = vadd.f32 %v3721, %v3748
        %v3761 = vadd.f32 %v3722, %v3748
        %v3762 = vadd.f32 %v3723, %v3748
        %v3763 = vadd.f32 %v3724, %v3748
        %v3764 = vadd.f32 %v3725, %v3748
        %v3765 = vadd.f32 %v3726, %v3748
        %v3766 = vadd.f32 %v3727, %v3748
        %v3767 = vadd.f32 %v3728, %v3748
        %v3768 = vadd.f32 %v3729, %v3748
        %v3769 = vadd.f32 %v3730, %v3748
        %v3770 = vadd.f32 %v3731, %v3748
        %v3771 = vadd.f32 %v3732, %v3748
        %v3772 = vadd.f32 %v3733, %v3748
        %v3773 = vadd.f32 %v3734, %v3748
        %v3774 = vadd.f32 %v3735, %v3748
        %v3775 = vadd.f32 %v3736, %v3748
        %v3776 = vadd.f32 %v3737, %v3748
        %v3777 = vadd.f32 %v3738, %v3748
        %v3778 = vadd.f32 %v3739, %v3748
        %v3779 = vadd.f32 %v3740, %v3748
        %v3780 = vadd.f32 %v3741, %v3748
        %v3781 = vadd.f32 %v3742, %v3748
        %v3782 = vmax.f32 %v3750, 0.0
        %v3783 = vmax.f32 %v3751, 0.0
        %v3784 = vmax.f32 %v3752, 0.0
        %v3785 = vmax.f32 %v3753, 0.0
        %v3786 = vmax.f32 %v3754, 0.0
        %v3787 = vmax.f32 %v3755, 0.0
        %v3788 = vmax.f32 %v3756, 0.0
        %v3789 = vmax.f32 %v3757, 0.0
        %v3790 = vmax.f32 %v3758, 0.0
        %v3791 = vmax.f32 %v3759, 0.0
        %v3792 = vmax.f32 %v3760, 0.0
        %v3793 = vmax.f32 %v3761, 0.0
        %v3794 = vmax.f32 %v3762, 0.0
        %v3795 = vmax.f32 %v3763, 0.0
        %v3796 = vmax.f32 %v3764, 0.0
        %v3797 = vmax.f32 %v3765, 0.0
        %v3798 = vmax.f32 %v3766, 0.0
        %v3799 = vmax.f32 %v3767, 0.0
        %v3800 = vmax.f32 %v3768, 0.0
        %v3801 = vmax.f32 %v3769, 0.0
        %v3802 = vmax.f32 %v3770, 0.0
        %v3803 = vmax.f32 %v3771, 0.0
        %v3804 = vmax.f32 %v3772, 0.0
        %v3805 = vmax.f32 %v3773, 0.0
        %v3806 = vmax.f32 %v3774, 0.0
        %v3807 = vmax.f32 %v3775, 0.0
        %v3808 = vmax.f32 %v3776, 0.0
        %v3809 = vmax.f32 %v3777, 0.0
        %v3810 = vmax.f32 %v3778, 0.0
        %v3811 = vmax.f32 %v3779, 0.0
        %v3812 = vmax.f32 %v3780, 0.0
        %v3813 = vmax.f32 %v3781, 0.0
        %3814 = vst [vmem:[%s239] sm:$0xff] %v3782
        %3815 = vst [vmem:[%s239 + $0x8] sm:$0xff] %v3783
        %3816 = vst [vmem:[%s239 + $0x10] sm:$0xff] %v3784
        %3817 = vst [vmem:[%s239 + $0x18] sm:$0xff] %v3785
        %3818 = vst [vmem:[%s239 + $0x20] sm:$0xff] %v3786
        %3819 = vst [vmem:[%s239 + $0x28] sm:$0xff] %v3787
        %3820 = vst [vmem:[%s239 + $0x30] sm:$0xff] %v3788
        %3821 = vst [vmem:[%s239 + $0x38] sm:$0xff] %v3789
        %3822 = vst [vmem:[%s239 + $0x40] sm:$0xff] %v3790
        %3823 = vst [vmem:[%s239 + $0x48] sm:$0xff] %v3791
        %3824 = vst [vmem:[%s239 + $0x50] sm:$0xff] %v3792
        %3825 = vst [vmem:[%s239 + $0x58] sm:$0xff] %v3793
        %3826 = vst [vmem:[%s239 + $0x60] sm:$0xff] %v3794
        %3827 = vst [vmem:[%s239 + $0x68] sm:$0xff] %v3795
        %3828 = vst [vmem:[%s239 + $0x70] sm:$0xff] %v3796
        %3829 = vst [vmem:[%s239 + $0x78] sm:$0xff] %v3797
        %3830 = vst [vmem:[%s239 + $0x80] sm:$0xff] %v3798
        %3831 = vst [vmem:[%s239 + $0x88] sm:$0xff] %v3799
        %3832 = vst [vmem:[%s239 + $0x90] sm:$0xff] %v3800
        %3833 = vst [vmem:[%s239 + $0x98] sm:$0xff] %v3801
        %3834 = vst [vmem:[%s239 + $0xa0] sm:$0xff] %v3802
        %3835 = vst [vmem:[%s239 + $0xa8] sm:$0xff] %v3803
        %3836 = vst [vmem:[%s239 + $0xb0] sm:$0xff] %v3804
        %3837 = vst [vmem:[%s239 + $0xb8] sm:$0xff] %v3805
        %3838 = vst [vmem:[%s239 + $0xc0] sm:$0xff] %v3806
        %3839 = vst [vmem:[%s239 + $0xc8] sm:$0xff] %v3807
        %3840 = vst [vmem:[%s239 + $0xd0] sm:$0xff] %v3808
        %3841 = vst [vmem:[%s239 + $0xd8] sm:$0xff] %v3809
        %3842 = vst [vmem:[%s239 + $0xe0] sm:$0xff] %v3810
        %3843 = vst [vmem:[%s239 + $0xe8] sm:$0xff] %v3811
        %3844 = vst [vmem:[%s239 + $0xf0] sm:$0xff] %v3812
        %3845 = vst [vmem:[%s239 + $0xf8] sm:$0xff] %v3813
        %s3846 = sand.u32 %s144, 1
        %s3847 = scalar_lea.sflag [#allocation3], %s3846
        %s3848 = sand.u32 %s144, 1
        %s3849 = smul.addr %s3848, 256
        %s3850 = scalar_lea.vmem [#allocation2], %s3849
        // Predicated region
        $region37: #{tpu_custom_call.1} parent=35 // pred_check
          %p3851 = pneg %p154
        $region38: #{tpu_custom_call.1} parent=35 // pred_check_branch
          %3853 = sbr.rel (%p3851) target = $region40
        $region39: #{tpu_custom_call.1} parent=35 // pred_region
          %s3855 = ssub.s32 4096, 4096
          %3856 = vsyncadd %s3847, %s3855
          %s3857 = smul.addr %s22, 32
          %s3858 = sadd.s32 %s23, %s3857
          %s3859 = smul.addr %s3858, 128
          %s3860 = scalar_lea.hbm %s4, %s3859
          %s3861 = sshll.u32 %s3850, 4
          %s3862 = int_to_ptr.vmem [resolvable:$true] %s3861
          %3867 = dma.vmem_to_hbm [thread:$0]  %s3862, 4096, %s3860, %s3847, 128, 128, 8
        $region40: #{tpu_custom_call.1} parent=35 // pred_fallthru
          _
      $region36: #{tpu_custom_call.1} parent=5 // pred_fallthru
        _
      %p3868 = scmp.le.s32.totalorder 2, %s13
      // Predicated region
      $region41: #{tpu_custom_call.1} parent=5 // pred_check
        %p3869 = pneg %p3868
      $region42: #{tpu_custom_call.1} parent=5 // pred_check_branch
        %3871 = sbr.rel (%p3869) target = $region44
      $region43: #{tpu_custom_call.1} parent=5 // pred_region
        %s3872 = ssub.s32 %s13, 2
        // Predicated region
        $region45: #{tpu_custom_call.1} parent=43 // pred_check
          %p3873 = pneg %p160
        $region46: #{tpu_custom_call.1} parent=43 // pred_check_branch
          %3875 = sbr.rel (%p3873) target = $region48
        $region47: #{tpu_custom_call.1} parent=43 // pred_region
          %s3876 = sand.u32 %s145, 1
          %s3877 = scalar_lea.sflag [#allocation3], %s3876
          %s3878 = sand.u32 %s145, 1
          %s3879 = smul.addr %s3878, 256
          %s3880 = scalar_lea.vmem [#allocation2], %s3879
          %3881 = dma.done %s3877, 4096
        $region48: #{tpu_custom_call.1} parent=43 // pred_fallthru
          _
      $region44: #{tpu_custom_call.1} parent=5 // pred_fallthru
        _
    $region6: #{tpu_custom_call.1} parent=1 // loop_footer
      %s17 = sadd.s32 1, %s13
    $region7: #{tpu_custom_call.1} parent=1 // loop_footer_branch
      %12 = sbr.rel target = $region3
    $region8: #{tpu_custom_call.1} parent=1 // loop_exit
      _
    %3882 = vsyncpa [#allocation3], 1
    %s3883 = scalar_lea.sflag [#allocation3], 1
    %3884 = vsyncpa %s3883, 1

// kernel: tpu_custom_call.1
$region0: #{tpu_custom_call.1}
  #allocation0 [shape = 'u32[]', space=smem, size = 0x4, offset = 0x4, fixed_abs, tag = 'smem constant byte address 0x4 - core index']
  #allocation1 [shape = 'u32[144,128]{1,0:T(1,128)}', space=vmem, size = 0x12000, scoped, tag = 'internal scratch']
  %s0 = inlined_call_operand.hbm [shape: f32[512,128], index: 0, kind: input, shape index: {}]
  %s1 = inlined_call_operand.hbm [shape: f32[128,128], index: 1, kind: input, shape index: {}]
  %s2 = inlined_call_operand.vmem [shape: f32[1,128], index: 2, kind: input, shape index: {}]
  %s3 = inlined_call_operand.vmem [shape: f32[1,128], index: 3, kind: input, shape index: {}]
  %s4 = inlined_call_operand.hbm [shape: f32[512,128], index: 4, kind: output, shape index: {}]
  %s5 = sld [smem:[#allocation0]]
  $region57: #{tpu_custom_call.1} parent=0
    _
  %s7 = ssub.s32 1, %s5
  %s8 = scalar_select 0, %s7, %s5
  $region1: #{tpu_custom_call.1} parent=0
    #allocation2 [shape = 'u8[262144]{0}', space=vmem, size = 0x40000, scoped, tag = 'input window, operand 0']
    #allocation3 [shape = 's32[2]{0}', space=sflag, size = 0x8, scoped, tag = 'scoped memory for tpu_custom_call.1']
    #allocation4 [shape = 's32[2]{0}', space=sflag, size = 0x8, scoped, tag = 'scoped memory for tpu_custom_call.1']
    #allocation5 [shape = 'u8[65536]{0}', space=vmem, size = 0x10000, scoped, tag = 'input window, operand 1, single buffered']
    #allocation6 [shape = 's32[1]{0}', space=sflag, size = 0x4, scoped, tag = 'scoped memory for tpu_custom_call.1']
    #allocation7 [shape = 'u8[262144]{0}', space=vmem, size = 0x40000, scoped, tag = 'output window, operand 0']
    %9 = vsyncpa [#allocation3], 0
    %s10 = scalar_lea.sflag [#allocation3], 1
    %11 = vsyncpa %s10, 0
    %12 = vsyncpa [#allocation6], 0
    %13 = vsyncpa [#allocation4], 0
    %s14 = scalar_lea.sflag [#allocation4], 1
    %15 = vsyncpa %s14, 0
    loop: start=0, step=1, limit=4
    $region2: #{tpu_custom_call.1} parent=1 // loop_pre_header
      _
    $region3: #{tpu_custom_call.1} parent=1 // loop_header
      %s17 = sphi 0, %s21
      %p18 = scmp.ge.s32.totalorder %s17, 4
      %s24 = sphi 0, %s36
      %s25 = sphi 0, %s32
      %s26 = sphi 0, %s24
      %s27 = sphi 0, %s25
      %s28 = sphi 0, %s26
      %s29 = sphi 0, %s27
      %s39 = sphi 0, %s41
      %s42 = sphi 0, %s39
      %s43 = sphi 0, %s42
      %s59 = sphi 0, %s43
      %s65 = sphi 0, %s67
      %s68 = sphi 0, %s65
      %s69 = sphi 0, %s68
      %s85 = sphi 0, %s69
      %s91 = sphi 0, %s93
      %s94 = sphi 0, %s91
      %s95 = sphi 0, %s94
      %s111 = sphi 0, %s95
      %s117 = sphi 0, %s119
      %s120 = sphi 0, %s117
      %s121 = sphi 0, %s120
      %s137 = sphi 0, %s121
      %s145 = sphi 0, %s147
      %s148 = sphi 0, %s145
      %s149 = sphi 0, %s148
      %s165 = sphi 0, %s149
    $region4: #{tpu_custom_call.1} parent=1 // loop_header_branch
      %20 = sbr.rel (%p18) target = $region8
    $region5: #{tpu_custom_call.1} parent=1 // loop_body
      %s22 = ssub.s32 %s17, 1
      %s23 = ssub.s32 %s17, 2
      %s30 = sadd.s32 1, %s25
      %p31 = scmp.ge.s32.totalorder %s30, 1
      %s32 = scalar_select %p31, 0, %s30
      %s33 = sadd.s32 1, %s24
      %s34 = scalar_select %p31, %s33, %s24
      %p35 = scmp.ge.s32.totalorder %s34, 2
      %s36 = scalar_select %p35, 0, %s34
      %s37 = ssub.s32 %s24, %s36
      %p38 = scmp.eq.s32.totalorder %s37, 0
      %s40 = sadd.s32 %s39, 1
      %s41 = scalar_select %p38, %s39, %s40
      %p44 = pneg %p38
      %p45 = scmp.eq.s32.totalorder %s17, 1
      %p46 = por %p44, %p45
      %p47 = scmp.ne.s32.totalorder %s39, %s42
      %p48 = scmp.eq.s32.totalorder %s17, 0
      %p49 = por %p47, %p48
      %p50 = scmp.ne.s32.totalorder %s39, %s42
      %p51 = scmp.eq.s32.totalorder %s22, 1
      %p52 = por %p50, %p51
      %p53 = scmp.ne.s32.totalorder %s42, %s43
      %p54 = scmp.eq.s32.totalorder %s22, 0
      %p55 = por %p53, %p54
      %p56 = scmp.ne.s32.totalorder %s42, %s43
      %p57 = scmp.eq.s32.totalorder %s23, 1
      %p58 = por %p56, %p57
      %p60 = scmp.ne.s32.totalorder %s43, %s59
      %p61 = scmp.eq.s32.totalorder %s23, 0
      %p62 = por %p60, %p61
      %s63 = ssub.s32 %s25, %s32
      %p64 = scmp.eq.s32.totalorder %s63, 0
      %s66 = sadd.s32 %s65, 1
      %s67 = scalar_select %p64, %s65, %s66
      %p70 = pneg %p64
      %p71 = scmp.eq.s32.totalorder %s17, 1
      %p72 = por %p70, %p71
      %p73 = scmp.ne.s32.totalorder %s65, %s68
      %p74 = scmp.eq.s32.totalorder %s17, 0
      %p75 = por %p73, %p74
      %p76 = scmp.ne.s32.totalorder %s65, %s68
      %p77 = scmp.eq.s32.totalorder %s22, 1
      %p78 = por %p76, %p77
      %p79 = scmp.ne.s32.totalorder %s68, %s69
      %p80 = scmp.eq.s32.totalorder %s22, 0
      %p81 = por %p79, %p80
      %p82 = scmp.ne.s32.totalorder %s68, %s69
      %p83 = scmp.eq.s32.totalorder %s23, 1
      %p84 = por %p82, %p83
      %p86 = scmp.ne.s32.totalorder %s69, %s85
      %p87 = scmp.eq.s32.totalorder %s23, 0
      %p88 = por %p86, %p87
      %s89 = ssub.s32 %s25, %s32
      %p90 = scmp.eq.s32.totalorder %s89, 0
      %s92 = sadd.s32 %s91, 1
      %s93 = scalar_select %p90, %s91, %s92
      %p96 = pneg %p90
      %p97 = scmp.eq.s32.totalorder %s17, 1
      %p98 = por %p96, %p97
      %p99 = scmp.ne.s32.totalorder %s91, %s94
      %p100 = scmp.eq.s32.totalorder %s17, 0
      %p101 = por %p99, %p100
      %p102 = scmp.ne.s32.totalorder %s91, %s94
      %p103 = scmp.eq.s32.totalorder %s22, 1
      %p104 = por %p102, %p103
      %p105 = scmp.ne.s32.totalorder %s94, %s95
      %p106 = scmp.eq.s32.totalorder %s22, 0
      %p107 = por %p105, %p106
      %p108 = scmp.ne.s32.totalorder %s94, %s95
      %p109 = scmp.eq.s32.totalorder %s23, 1
      %p110 = por %p108, %p109
      %p112 = scmp.ne.s32.totalorder %s95, %s111
      %p113 = scmp.eq.s32.totalorder %s23, 0
      %p114 = por %p112, %p113
      %s115 = ssub.s32 %s25, %s32
      %p116 = scmp.eq.s32.totalorder %s115, 0
      %s118 = sadd.s32 %s117, 1
      %s119 = scalar_select %p116, %s117, %s118
      %p122 = pneg %p116
      %p123 = scmp.eq.s32.totalorder %s17, 1
      %p124 = por %p122, %p123
      %p125 = scmp.ne.s32.totalorder %s117, %s120
      %p126 = scmp.eq.s32.totalorder %s17, 0
      %p127 = por %p125, %p126
      %p128 = scmp.ne.s32.totalorder %s117, %s120
      %p129 = scmp.eq.s32.totalorder %s22, 1
      %p130 = por %p128, %p129
      %p131 = scmp.ne.s32.totalorder %s120, %s121
      %p132 = scmp.eq.s32.totalorder %s22, 0
      %p133 = por %p131, %p132
      %p134 = scmp.ne.s32.totalorder %s120, %s121
      %p135 = scmp.eq.s32.totalorder %s23, 1
      %p136 = por %p134, %p135
      %p138 = scmp.ne.s32.totalorder %s121, %s137
      %p139 = scmp.eq.s32.totalorder %s23, 0
      %p140 = por %p138, %p139
      %s141 = ssub.s32 %s24, %s36
      %s142 = ssub.s32 %s25, %s32
      %s143 = sor.u32 %s141, %s142
      %p144 = scmp.eq.s32.totalorder %s143, 0
      %s146 = sadd.s32 %s145, 1
      %s147 = scalar_select %p144, %s145, %s146
      %p150 = pneg %p144
      %p151 = scmp.eq.s32.totalorder %s17, 1
      %p152 = por %p150, %p151
      %p153 = scmp.ne.s32.totalorder %s145, %s148
      %p154 = scmp.eq.s32.totalorder %s17, 0
      %p155 = por %p153, %p154
      %p156 = scmp.ne.s32.totalorder %s145, %s148
      %p157 = scmp.eq.s32.totalorder %s22, 1
      %p158 = por %p156, %p157
      %p159 = scmp.ne.s32.totalorder %s148, %s149
      %p160 = scmp.eq.s32.totalorder %s22, 0
      %p161 = por %p159, %p160
      %p162 = scmp.ne.s32.totalorder %s148, %s149
      %p163 = scmp.eq.s32.totalorder %s23, 1
      %p164 = por %p162, %p163
      %p166 = scmp.ne.s32.totalorder %s149, %s165
      %p167 = scmp.eq.s32.totalorder %s23, 0
      %p168 = por %p166, %p167
      %p169 = scmp.le.s32.totalorder 1, %s17
      %p170 = scmp.lt.s32.totalorder %s17, 3
      %p171 = pnand %p169, %p170
      %p172 = pneg %p171
      // Predicated region
      $region9: #{tpu_custom_call.1} parent=5 // pred_check
        _
      $region10: #{tpu_custom_call.1} parent=5 // pred_check_branch
        %174 = sbr.rel (%p171) target = $region12
      $region11: #{tpu_custom_call.1} parent=5 // pred_region
        %s175 = ssub.s32 %s17, 1
        // Predicated region
        $region13: #{tpu_custom_call.1} parent=11 // pred_check
          %p176 = pneg %p81
        $region14: #{tpu_custom_call.1} parent=11 // pred_check_branch
          %178 = sbr.rel (%p176) target = $region16
        $region15: #{tpu_custom_call.1} parent=11 // pred_region
          %s180 = ssub.s32 2048, 2048
          %181 = vsyncadd [#allocation6], %s180
          %s182 = smul.addr %s27, 128
          %s183 = scalar_lea.hbm %s1, %s182
          %s184 = sshll.u32 [#allocation5], 4
          %s185 = int_to_ptr.vmem [resolvable:$true] %s184
          %190 = dma.hbm_to_vmem [thread:$0]  %s183, 2048, %s185, [#allocation6], 128, 128, 8
        $region16: #{tpu_custom_call.1} parent=11 // pred_fallthru
          _
        // Predicated region
        $region17: #{tpu_custom_call.1} parent=11 // pred_check
          %p191 = pneg %p107
        $region18: #{tpu_custom_call.1} parent=11 // pred_check_branch
          %193 = sbr.rel (%p191) target = $region20
        $region19: #{tpu_custom_call.1} parent=11 // pred_region
          %p194 = scmp.lt.s32.totalorder %s27, 0
          %s195 = scalar_select %p194, %s27, 0
          %s196 = scalar_lea.vmem %s2, %s195
        $region20: #{tpu_custom_call.1} parent=11 // pred_fallthru
          _
        // Predicated region
        $region21: #{tpu_custom_call.1} parent=11 // pred_check
          %p197 = pneg %p133
        $region22: #{tpu_custom_call.1} parent=11 // pred_check_branch
          %199 = sbr.rel (%p197) target = $region24
        $region23: #{tpu_custom_call.1} parent=11 // pred_region
          %p200 = scmp.lt.s32.totalorder %s27, 0
          %s201 = scalar_select %p200, %s27, 0
          %s202 = scalar_lea.vmem %s3, %s201
        $region24: #{tpu_custom_call.1} parent=11 // pred_fallthru
          _
      $region12: #{tpu_custom_call.1} parent=5 // pred_fallthru
        _
      %p203 = scmp.lt.s32.totalorder %s17, 2
      // Predicated region
      $region25: #{tpu_custom_call.1} parent=5 // pred_check
        %p204 = pneg %p203
      $region26: #{tpu_custom_call.1} parent=5 // pred_check_branch
        %206 = sbr.rel (%p204) target = $region28
      $region27: #{tpu_custom_call.1} parent=5 // pred_region
        // Predicated region
        $region29: #{tpu_custom_call.1} parent=27 // pred_check
          %p207 = pneg %p49
        $region30: #{tpu_custom_call.1} parent=27 // pred_check_branch
          %209 = sbr.rel (%p207) target = $region32
        $region31: #{tpu_custom_call.1} parent=27 // pred_region
          %s210 = sand.u32 %s39, 1
          %s211 = scalar_lea.sflag [#allocation3], %s210
          %s212 = sand.u32 %s39, 1
          %s213 = smul.addr %s212, 256
          %s214 = scalar_lea.vmem [#allocation2], %s213
          %s215 = smul.u32 32, %s24
          %s217 = ssub.s32 4096, 4096
          %218 = vsyncadd %s211, %s217
          %s219 = smul.addr %s215, 128
          %s220 = scalar_lea.hbm %s0, %s219
          %s221 = sshll.u32 %s214, 4
          %s222 = int_to_ptr.vmem [resolvable:$true] %s221
          %227 = dma.hbm_to_vmem [thread:$0]  %s220, 4096, %s222, %s211, 128, 128, 8
        $region32: #{tpu_custom_call.1} parent=27 // pred_fallthru
          _
      $region28: #{tpu_custom_call.1} parent=5 // pred_fallthru
        _
      %p228 = scmp.le.s32.totalorder 1, %s17
      %p229 = scmp.lt.s32.totalorder %s17, 3
      %p230 = pnand %p228, %p229
      %p231 = pneg %p230
      // Predicated region
      $region33: #{tpu_custom_call.1} parent=5 // pred_check
        _
      $region34: #{tpu_custom_call.1} parent=5 // pred_check_branch
        %233 = sbr.rel (%p230) target = $region36
      $region35: #{tpu_custom_call.1} parent=5 // pred_region
        %s234 = ssub.s32 %s17, 1
        %s235 = sand.u32 %s42, 1
        %s236 = scalar_lea.sflag [#allocation3], %s235
        %s237 = sand.u32 %s42, 1
        %s238 = smul.addr %s237, 256
        %s239 = scalar_lea.vmem [#allocation2], %s238
        // Predicated region
        $region37: #{tpu_custom_call.1} parent=35 // pred_check
          %p240 = pneg %p55
        $region38: #{tpu_custom_call.1} parent=35 // pred_check_branch
          %242 = sbr.rel (%p240) target = $region40
        $region39: #{tpu_custom_call.1} parent=35 // pred_region
          %243 = dma.done %s236, 4096
        $region40: #{tpu_custom_call.1} parent=35 // pred_fallthru
          _
        // Predicated region
        $region41: #{tpu_custom_call.1} parent=35 // pred_check
          %p244 = pneg %p81
        $region42: #{tpu_custom_call.1} parent=35 // pred_check_branch
          %246 = sbr.rel (%p244) target = $region44
        $region43: #{tpu_custom_call.1} parent=35 // pred_region
          %247 = dma.done [#allocation6], 2048
        $region44: #{tpu_custom_call.1} parent=35 // pred_fallthru
          _
        %s248 = sand.u32 %s42, 1
        %s249 = scalar_lea.sflag [#allocation3], %s248
        %s250 = sand.u32 %s42, 1
        %s251 = smul.addr %s250, 256
        %s252 = scalar_lea.vmem [#allocation2], %s251
        %p253 = pneg %p55
        %p254 = pneg %p52
        %p255 = pneg %p81
        %p256 = pneg %p78
        %p257 = scmp.lt.s32.totalorder %s27, 0
        %s258 = scalar_select %p257, %s27, 0
        %s259 = scalar_lea.vmem %s2, %s258
        %p260 = pneg %p107
        %p261 = pneg %p104
        %p262 = scmp.lt.s32.totalorder %s27, 0
        %s263 = scalar_select %p262, %s27, 0
        %s264 = scalar_lea.vmem %s3, %s263
        %p265 = pneg %p133
        %p266 = pneg %p130
        %p267 = pneg %p161
        %p268 = pneg %p158
        %s269 = sand.u32 %s148, 1
        %s270 = scalar_lea.sflag [#allocation4], %s269
        %s271 = sand.u32 %s148, 1
        %s272 = smul.addr %s271, 256
        %s273 = scalar_lea.vmem [#allocation7], %s272
        %s274 = smul.u32 32, %s26
        %p275 = scmp.lt.s32.totalorder %s27, 0
        %s276 = scalar_select %p275, %s27, 0
        %s277 = scalar_lea.vmem %s2, %s276
        %p278 = scmp.lt.s32.totalorder %s27, 0
        %s279 = scalar_select %p278, %s27, 0
        %s280 = scalar_lea.vmem %s3, %s279
        %s281 = smul.u32 32, %s26
        %v282 = vld [vmem:[%s239] sm:$0xff]
        %v283 = vld [vmem:[%s239 + $0x8] sm:$0xff]
        %v284 = vld [vmem:[%s239 + $0x10] sm:$0xff]
        %v285 = vld [vmem:[%s239 + $0x18] sm:$0xff]
        %v286 = vld [vmem:[%s239 + $0x20] sm:$0xff]
        %v287 = vld [vmem:[%s239 + $0x28] sm:$0xff]
        %v288 = vld [vmem:[%s239 + $0x30] sm:$0xff]
        %v289 = vld [vmem:[%s239 + $0x38] sm:$0xff]
        %v290 = vld [vmem:[%s239 + $0x40] sm:$0xff]
        %v291 = vld [vmem:[%s239 + $0x48] sm:$0xff]
        %v292 = vld [vmem:[%s239 + $0x50] sm:$0xff]
        %v293 = vld [vmem:[%s239 + $0x58] sm:$0xff]
        %v294 = vld [vmem:[%s239 + $0x60] sm:$0xff]
        %v295 = vld [vmem:[%s239 + $0x68] sm:$0xff]
        %v296 = vld [vmem:[%s239 + $0x70] sm:$0xff]
        %v297 = vld [vmem:[%s239 + $0x78] sm:$0xff]
        %v298 = vld [vmem:[%s239 + $0x80] sm:$0xff]
        %v299 = vld [vmem:[%s239 + $0x88] sm:$0xff]
        %v300 = vld [vmem:[%s239 + $0x90] sm:$0xff]
        %v301 = vld [vmem:[%s239 + $0x98] sm:$0xff]
        %v302 = vld [vmem:[%s239 + $0xa0] sm:$0xff]
        %v303 = vld [vmem:[%s239 + $0xa8] sm:$0xff]
        %v304 = vld [vmem:[%s239 + $0xb0] sm:$0xff]
        %v305 = vld [vmem:[%s239 + $0xb8] sm:$0xff]
        %v306 = vld [vmem:[%s239 + $0xc0] sm:$0xff]
        %v307 = vld [vmem:[%s239 + $0xc8] sm:$0xff]
        %v308 = vld [vmem:[%s239 + $0xd0] sm:$0xff]
        %v309 = vld [vmem:[%s239 + $0xd8] sm:$0xff]
        %v310 = vld [vmem:[%s239 + $0xe0] sm:$0xff]
        %v311 = vld [vmem:[%s239 + $0xe8] sm:$0xff]
        %v312 = vld [vmem:[%s239 + $0xf0] sm:$0xff]
        %v313 = vld [vmem:[%s239 + $0xf8] sm:$0xff]
        %v314 = vld [vmem:[#allocation5] sm:$0xff]
        %v315 = vld [vmem:[#allocation5 + $0x8] sm:$0xff]
        %v316 = vld [vmem:[#allocation5 + $0x10] sm:$0xff]
        %v317 = vld [vmem:[#allocation5 + $0x18] sm:$0xff]
        %v318 = vld [vmem:[#allocation5 + $0x20] sm:$0xff]
        %v319 = vld [vmem:[#allocation5 + $0x28] sm:$0xff]
        %v320 = vld [vmem:[#allocation5 + $0x30] sm:$0xff]
        %v321 = vld [vmem:[#allocation5 + $0x38] sm:$0xff]
        %v322 = vld [vmem:[#allocation5 + $0x40] sm:$0xff]
        %v323 = vld [vmem:[#allocation5 + $0x48] sm:$0xff]
        %v324 = vld [vmem:[#allocation5 + $0x50] sm:$0xff]
        %v325 = vld [vmem:[#allocation5 + $0x58] sm:$0xff]
        %v326 = vld [vmem:[#allocation5 + $0x60] sm:$0xff]
        %v327 = vld [vmem:[#allocation5 + $0x68] sm:$0xff]
        %v328 = vld [vmem:[#allocation5 + $0x70] sm:$0xff]
        %v329 = vld [vmem:[#allocation5 + $0x78] sm:$0xff]
        %330 = vmatprep.subr.mxu0 0.0
        %331 = vmatpush1.msra.mxu0 %v314
        %332 = vmatprep.subr.mxu0 0.0
        %333 = vmatpush1.msra.mxu0 %v315
        %334 = vmatprep.subr.mxu0 0.0
        %335 = vmatpush1.msra.mxu0 %v316
        %336 = vmatprep.subr.mxu0 0.0
        %337 = vmatpush1.msra.mxu0 %v317
        %338 = vmatprep.subr.mxu0 0.0
        %339 = vmatpush1.msra.mxu0 %v318
        %340 = vmatprep.subr.mxu0 0.0
        %341 = vmatpush1.msra.mxu0 %v319
        %342 = vmatprep.subr.mxu0 0.0
        %343 = vmatpush1.msra.mxu0 %v320
        %344 = vmatprep.subr.mxu0 0.0
        %345 = vmatpush1.msra.mxu0 %v321
        %346 = vmatprep.subr.mxu0 0.0
        %347 = vmatpush1.msra.mxu0 %v322
        %348 = vmatprep.subr.mxu0 0.0
        %349 = vmatpush1.msra.mxu0 %v323
        %350 = vmatprep.subr.mxu0 0.0
        %351 = vmatpush1.msra.mxu0 %v324
        %352 = vmatprep.subr.mxu0 0.0
        %353 = vmatpush1.msra.mxu0 %v325
        %354 = vmatprep.subr.mxu0 0.0
        %355 = vmatpush1.msra.mxu0 %v326
        %356 = vmatprep.subr.mxu0 0.0
        %357 = vmatpush1.msra.mxu0 %v327
        %358 = vmatprep.subr.mxu0 0.0
        %359 = vmatpush1.msra.mxu0 %v328
        %360 = vmatprep.subr.mxu0 0.0
        %361 = vmatpush1.msra.mxu0 %v329
        %362 = vmatprep.subr.mxu0 0.0
        %363 = vmatpush1.msra.mxu0 0.0
        %364 = vmatprep.subr.mxu0 0.0
        %365 = vmatpush1.msra.mxu0 0.0
        %366 = vmatprep.subr.mxu0 0.0
        %367 = vmatpush1.msra.mxu0 0.0
        %368 = vmatprep.subr.mxu0 0.0
        %369 = vmatpush1.msra.mxu0 0.0
        %370 = vmatprep.subr.mxu0 0.0
        %371 = vmatpush1.msra.mxu0 0.0
        %372 = vmatprep.subr.mxu0 0.0
        %373 = vmatpush1.msra.mxu0 0.0
        %374 = vmatprep.subr.mxu0 0.0
        %375 = vmatpush1.msra.mxu0 0.0
        %376 = vmatprep.subr.mxu0 0.0
        %377 = vmatpush1.msra.mxu0 0.0
        %378 = vmatprep.subr.mxu0 0.0
        %379 = vmatpush1.msra.mxu0 0.0
        %380 = vmatprep.subr.mxu0 0.0
        %381 = vmatpush1.msra.mxu0 0.0
        %382 = vmatprep.subr.mxu0 0.0
        %383 = vmatpush1.msra.mxu0 0.0
        %384 = vmatprep.subr.mxu0 0.0
        %385 = vmatpush1.msra.mxu0 0.0
        %386 = vmatprep.subr.mxu0 0.0
        %387 = vmatpush1.msra.mxu0 0.0
        %388 = vmatprep.subr.mxu0 0.0
        %389 = vmatpush1.msra.mxu0 0.0
        %390 = vmatprep.subr.mxu0 0.0
        %391 = vmatpush1.msra.mxu0 0.0
        %392 = vmatprep.subr.mxu0 0.0
        %393 = vmatpush1.msra.mxu0 0.0
        %394 = vmatprep.mubr.f32.mxu0 0.0
        %395 = vmatmul.mubr.f32.gmra.mrb[0].mxu0 %v282
        %v396 = vpop.f32.mrb[0].mxu0
        %v397 = vadd.f32 0.0, %v396
        %v398 = vpop.f32.mrb[0].mxu0
        %399 = vmatprep.mubr.f32.mxu0 0.0
        %400 = vmatmul.mubr.f32.gmra.mrb[0].mxu0 %v283
        %v401 = vpop.f32.mrb[0].mxu0
        %v402 = vadd.f32 0.0, %v401
        %v403 = vpop.f32.mrb[0].mxu0
        %404 = vmatprep.mubr.f32.mxu0 0.0
        %405 = vmatmul.mubr.f32.gmra.mrb[0].mxu0 %v284
        %v406 = vpop.f32.mrb[0].mxu0
        %v407 = vadd.f32 0.0, %v406
        %v408 = vpop.f32.mrb[0].mxu0
        %409 = vmatprep.mubr.f32.mxu0 0.0
        %410 = vmatmul.mubr.f32.gmra.mrb[0].mxu0 %v285
        %v411 = vpop.f32.mrb[0].mxu0
        %v412 = vadd.f32 0.0, %v411
        %v413 = vpop.f32.mrb[0].mxu0
        %414 = vmatprep.mubr.f32.mxu0 0.0
        %415 = vmatmul.mubr.f32.gmra.mrb[0].mxu0 %v286
        %v416 = vpop.f32.mrb[0].mxu0
        %v417 = vadd.f32 0.0, %v416
        %v418 = vpop.f32.mrb[0].mxu0
        %419 = vmatprep.mubr.f32.mxu0 0.0
        %420 = vmatmul.mubr.f32.gmra.mrb[0].mxu0 %v287
        %v421 = vpop.f32.mrb[0].mxu0
        %v422 = vadd.f32 0.0, %v421
        %v423 = vpop.f32.mrb[0].mxu0
        %424 = vmatprep.mubr.f32.mxu0 0.0
        %425 = vmatmul.mubr.f32.gmra.mrb[0].mxu0 %v288
        %v426 = vpop.f32.mrb[0].mxu0
        %v427 = vadd.f32 0.0, %v426
        %v428 = vpop.f32.mrb[0].mxu0
        %429 = vmatprep.mubr.f32.mxu0 0.0
        %430 = vmatmul.mubr.f32.gmra.mrb[0].mxu0 %v289
        %v431 = vpop.f32.mrb[0].mxu0
        %v432 = vadd.f32 0.0, %v431
        %v433 = vpop.f32.mrb[0].mxu0
        %434 = vmatprep.mubr.f32.mxu0 0.0
        %435 = vmatmul.mubr.f32.gmra.mrb[0].mxu0 %v290
        %v436 = vpop.f32.mrb[0].mxu0
        %v437 = vadd.f32 0.0, %v436
        %v438 = vpop.f32.mrb[0].mxu0
        %439 = vmatprep.mubr.f32.mxu0 0.0
        %440 = vmatmul.mubr.f32.gmra.mrb[0].mxu0 %v291
        %v441 = vpop.f32.mrb[0].mxu0
        %v442 = vadd.f32 0.0, %v441
        %v443 = vpop.f32.mrb[0].mxu0
        %444 = vmatprep.mubr.f32.mxu0 0.0
        %445 = vmatmul.mubr.f32.gmra.mrb[0].mxu0 %v292
        %v446 = vpop.f32.mrb[0].mxu0
        %v447 = vadd.f32 0.0, %v446
        %v448 = vpop.f32.mrb[0].mxu0
        %449 = vmatprep.mubr.f32.mxu0 0.0
        %450 = vmatmul.mubr.f32.gmra.mrb[0].mxu0 %v293
        %v451 = vpop.f32.mrb[0].mxu0
        %v452 = vadd.f32 0.0, %v451
        %v453 = vpop.f32.mrb[0].mxu0
        %454 = vmatprep.mubr.f32.mxu0 0.0
        %455 = vmatmul.mubr.f32.gmra.mrb[0].mxu0 %v294
        %v456 = vpop.f32.mrb[0].mxu0
        %v457 = vadd.f32 0.0, %v456
        %v458 = vpop.f32.mrb[0].mxu0
        %459 = vmatprep.mubr.f32.mxu0 0.0
        %460 = vmatmul.mubr.f32.gmra.mrb[0].mxu0 %v295
        %v461 = vpop.f32.mrb[0].mxu0
        %v462 = vadd.f32 0.0, %v461
        %v463 = vpop.f32.mrb[0].mxu0
        %464 = vmatprep.mubr.f32.mxu0 0.0
        %465 = vmatmul.mubr.f32.gmra.mrb[0].mxu0 %v296
        %v466 = vpop.f32.mrb[0].mxu0
        %v467 = vadd.f32 0.0, %v466
        %v468 = vpop.f32.mrb[0].mxu0
        %469 = vmatprep.mubr.f32.mxu0 0.0
        %470 = vmatmul.mubr.f32.gmra.mrb[0].mxu0 %v297
        %v471 = vpop.f32.mrb[0].mxu0
        %v472 = vadd.f32 0.0, %v471
        %v473 = vpop.f32.mrb[0].mxu0
        %474 = vmatprep.mubr.f32.mxu0 0.0
        %475 = vmatmul.mubr.f32.gmra.mrb[0].mxu0 %v298
        %v476 = vpop.f32.mrb[0].mxu0
        %v477 = vadd.f32 0.0, %v476
        %v478 = vpop.f32.mrb[0].mxu0
        %479 = vmatprep.mubr.f32.mxu0 0.0
        %480 = vmatmul.mubr.f32.gmra.mrb[0].mxu0 %v299
        %v481 = vpop.f32.mrb[0].mxu0
        %v482 = vadd.f32 0.0, %v481
        %v483 = vpop.f32.mrb[0].mxu0
        %484 = vmatprep.mubr.f32.mxu0 0.0
        %485 = vmatmul.mubr.f32.gmra.mrb[0].mxu0 %v300
        %v486 = vpop.f32.mrb[0].mxu0
        %v487 = vadd.f32 0.0, %v486
        %v488 = vpop.f32.mrb[0].mxu0
        %489 = vmatprep.mubr.f32.mxu0 0.0
        %490 = vmatmul.mubr.f32.gmra.mrb[0].mxu0 %v301
        %v491 = vpop.f32.mrb[0].mxu0
        %v492 = vadd.f32 0.0, %v491
        %v493 = vpop.f32.mrb[0].mxu0
        %494 = vmatprep.mubr.f32.mxu0 0.0
        %495 = vmatmul.mubr.f32.gmra.mrb[0].mxu0 %v302
        %v496 = vpop.f32.mrb[0].mxu0
        %v497 = vadd.f32 0.0, %v496
        %v498 = vpop.f32.mrb[0].mxu0
        %499 = vmatprep.mubr.f32.mxu0 0.0
        %500 = vmatmul.mubr.f32.gmra.mrb[0].mxu0 %v303
        %v501 = vpop.f32.mrb[0].mxu0
        %v502 = vadd.f32 0.0, %v501
        %v503 = vpop.f32.mrb[0].mxu0
        %504 = vmatprep.mubr.f32.mxu0 0.0
        %505 = vmatmul.mubr.f32.gmra.mrb[0].mxu0 %v304
        %v506 = vpop.f32.mrb[0].mxu0
        %v507 = vadd.f32 0.0, %v506
        %v508 = vpop.f32.mrb[0].mxu0
        %509 = vmatprep.mubr.f32.mxu0 0.0
        %510 = vmatmul.mubr.f32.gmra.mrb[0].mxu0 %v305
        %v511 = vpop.f32.mrb[0].mxu0
        %v512 = vadd.f32 0.0, %v511
        %v513 = vpop.f32.mrb[0].mxu0
        %514 = vmatprep.mubr.f32.mxu0 0.0
        %515 = vmatmul.mubr.f32.gmra.mrb[0].mxu0 %v306
        %v516 = vpop.f32.mrb[0].mxu0
        %v517 = vadd.f32 0.0, %v516
        %v518 = vpop.f32.mrb[0].mxu0
        %519 = vmatprep.mubr.f32.mxu0 0.0
        %520 = vmatmul.mubr.f32.gmra.mrb[0].mxu0 %v307
        %v521 = vpop.f32.mrb[0].mxu0
        %v522 = vadd.f32 0.0, %v521
        %v523 = vpop.f32.mrb[0].mxu0
        %524 = vmatprep.mubr.f32.mxu0 0.0
        %525 = vmatmul.mubr.f32.gmra.mrb[0].mxu0 %v308
        %v526 = vpop.f32.mrb[0].mxu0
        %v527 = vadd.f32 0.0, %v526
        %v528 = vpop.f32.mrb[0].mxu0
        %529 = vmatprep.mubr.f32.mxu0 0.0
        %530 = vmatmul.mubr.f32.gmra.mrb[0].mxu0 %v309
        %v531 = vpop.f32.mrb[0].mxu0
        %v532 = vadd.f32 0.0, %v531
        %v533 = vpop.f32.mrb[0].mxu0
        %534 = vmatprep.mubr.f32.mxu0 0.0
        %535 = vmatmul.mubr.f32.gmra.mrb[0].mxu0 %v310
        %v536 = vpop.f32.mrb[0].mxu0
        %v537 = vadd.f32 0.0, %v536
        %v538 = vpop.f32.mrb[0].mxu0
        %539 = vmatprep.mubr.f32.mxu0 0.0
        %540 = vmatmul.mubr.f32.gmra.mrb[0].mxu0 %v311
        %v541 = vpop.f32.mrb[0].mxu0
        %v542 = vadd.f32 0.0, %v541
        %v543 = vpop.f32.mrb[0].mxu0
        %544 = vmatprep.mubr.f32.mxu0 0.0
        %545 = vmatmul.mubr.f32.gmra.mrb[0].mxu0 %v312
        %v546 = vpop.f32.mrb[0].mxu0
        %v547 = vadd.f32 0.0, %v546
        %v548 = vpop.f32.mrb[0].mxu0
        %549 = vmatprep.mubr.f32.mxu0 0.0
        %550 = vmatmul.mubr.f32.gmra.mrb[0].mxu0 %v313
        %v551 = vpop.f32.mrb[0].mxu0
        %v552 = vadd.f32 0.0, %v551
        %v553 = vpop.f32.mrb[0].mxu0
        %554 = vdwg.mxu0
        %v555 = vld [vmem:[%s277] sm:$0x1]
        %v557 = vlaneseq
        %v558 = vshrl.u32 %v557, 7
        %v559 = vsub.s32 0, %v558
        %v560 = vrot.slane %v555, %v559
        %v562 = vmul.f32 %v397, %v560
        %v563 = vmul.f32 %v402, %v560
        %v564 = vmul.f32 %v407, %v560
        %v565 = vmul.f32 %v412, %v560
        %v566 = vmul.f32 %v417, %v560
        %v567 = vmul.f32 %v422, %v560
        %v568 = vmul.f32 %v427, %v560
        %v569 = vmul.f32 %v432, %v560
        %v570 = vmul.f32 %v437, %v560
        %v571 = vmul.f32 %v442, %v560
        %v572 = vmul.f32 %v447, %v560
        %v573 = vmul.f32 %v452, %v560
        %v574 = vmul.f32 %v457, %v560
        %v575 = vmul.f32 %v462, %v560
        %v576 = vmul.f32 %v467, %v560
        %v577 = vmul.f32 %v472, %v560
        %v578 = vmul.f32 %v477, %v560
        %v579 = vmul.f32 %v482, %v560
        %v580 = vmul.f32 %v487, %v560
        %v581 = vmul.f32 %v492, %v560
        %v582 = vmul.f32 %v497, %v560
        %v583 = vmul.f32 %v502, %v560
        %v584 = vmul.f32 %v507, %v560
        %v585 = vmul.f32 %v512, %v560
        %v586 = vmul.f32 %v517, %v560
        %v587 = vmul.f32 %v522, %v560
        %v588 = vmul.f32 %v527, %v560
        %v589 = vmul.f32 %v532, %v560
        %v590 = vmul.f32 %v537, %v560
        %v591 = vmul.f32 %v542, %v560
        %v592 = vmul.f32 %v547, %v560
        %v593 = vmul.f32 %v552, %v560
        %v594 = vld [vmem:[%s280] sm:$0x1]
        %v596 = vlaneseq
        %v597 = vshrl.u32 %v596, 7
        %v598 = vsub.s32 0, %v597
        %v599 = vrot.slane %v594, %v598
        %v601 = vadd.f32 %v562, %v599
        %v602 = vadd.f32 %v563, %v599
        %v603 = vadd.f32 %v564, %v599
        %v604 = vadd.f32 %v565, %v599
        %v605 = vadd.f32 %v566, %v599
        %v606 = vadd.f32 %v567, %v599
        %v607 = vadd.f32 %v568, %v599
        %v608 = vadd.f32 %v569, %v599
        %v609 = vadd.f32 %v570, %v599
        %v610 = vadd.f32 %v571, %v599
        %v611 = vadd.f32 %v572, %v599
        %v612 = vadd.f32 %v573, %v599
        %v613 = vadd.f32 %v574, %v599
        %v614 = vadd.f32 %v575, %v599
        %v615 = vadd.f32 %v576, %v599
        %v616 = vadd.f32 %v577, %v599
        %v617 = vadd.f32 %v578, %v599
        %v618 = vadd.f32 %v579, %v599
        %v619 = vadd.f32 %v580, %v599
        %v620 = vadd.f32 %v581, %v599
        %v621 = vadd.f32 %v582, %v599
        %v622 = vadd.f32 %v583, %v599
        %v623 = vadd.f32 %v584, %v599
        %v624 = vadd.f32 %v585, %v599
        %v625 = vadd.f32 %v586, %v599
        %v626 = vadd.f32 %v587, %v599
        %v627 = vadd.f32 %v588, %v599
        %v628 = vadd.f32 %v589, %v599
        %v629 = vadd.f32 %v590, %v599
        %v630 = vadd.f32 %v591, %v599
        %v631 = vadd.f32 %v592, %v599
        %v632 = vadd.f32 %v593, %v599
        %v633 = vmax.f32 %v601, 0.0
        %v634 = vmax.f32 %v602, 0.0
        %v635 = vmax.f32 %v603, 0.0
        %v636 = vmax.f32 %v604, 0.0
        %v637 = vmax.f32 %v605, 0.0
        %v638 = vmax.f32 %v606, 0.0
        %v639 = vmax.f32 %v607, 0.0
        %v640 = vmax.f32 %v608, 0.0
        %v641 = vmax.f32 %v609, 0.0
        %v642 = vmax.f32 %v610, 0.0
        %v643 = vmax.f32 %v611, 0.0
        %v644 = vmax.f32 %v612, 0.0
        %v645 = vmax.f32 %v613, 0.0
        %v646 = vmax.f32 %v614, 0.0
        %v647 = vmax.f32 %v615, 0.0
        %v648 = vmax.f32 %v616, 0.0
        %v649 = vmax.f32 %v617, 0.0
        %v650 = vmax.f32 %v618, 0.0
        %v651 = vmax.f32 %v619, 0.0
        %v652 = vmax.f32 %v620, 0.0
        %v653 = vmax.f32 %v621, 0.0
        %v654 = vmax.f32 %v622, 0.0
        %v655 = vmax.f32 %v623, 0.0
        %v656 = vmax.f32 %v624, 0.0
        %v657 = vmax.f32 %v625, 0.0
        %v658 = vmax.f32 %v626, 0.0
        %v659 = vmax.f32 %v627, 0.0
        %v660 = vmax.f32 %v628, 0.0
        %v661 = vmax.f32 %v629, 0.0
        %v662 = vmax.f32 %v630, 0.0
        %v663 = vmax.f32 %v631, 0.0
        %v664 = vmax.f32 %v632, 0.0
        %665 = vst [vmem:[%s273] sm:$0xff] %v633
        %666 = vst [vmem:[%s273 + $0x8] sm:$0xff] %v634
        %667 = vst [vmem:[%s273 + $0x10] sm:$0xff] %v635
        %668 = vst [vmem:[%s273 + $0x18] sm:$0xff] %v636
        %669 = vst [vmem:[%s273 + $0x20] sm:$0xff] %v637
        %670 = vst [vmem:[%s273 + $0x28] sm:$0xff] %v638
        %671 = vst [vmem:[%s273 + $0x30] sm:$0xff] %v639
        %672 = vst [vmem:[%s273 + $0x38] sm:$0xff] %v640
        %673 = vst [vmem:[%s273 + $0x40] sm:$0xff] %v641
        %674 = vst [vmem:[%s273 + $0x48] sm:$0xff] %v642
        %675 = vst [vmem:[%s273 + $0x50] sm:$0xff] %v643
        %676 = vst [vmem:[%s273 + $0x58] sm:$0xff] %v644
        %677 = vst [vmem:[%s273 + $0x60] sm:$0xff] %v645
        %678 = vst [vmem:[%s273 + $0x68] sm:$0xff] %v646
        %679 = vst [vmem:[%s273 + $0x70] sm:$0xff] %v647
        %680 = vst [vmem:[%s273 + $0x78] sm:$0xff] %v648
        %681 = vst [vmem:[%s273 + $0x80] sm:$0xff] %v649
        %682 = vst [vmem:[%s273 + $0x88] sm:$0xff] %v650
        %683 = vst [vmem:[%s273 + $0x90] sm:$0xff] %v651
        %684 = vst [vmem:[%s273 + $0x98] sm:$0xff] %v652
        %685 = vst [vmem:[%s273 + $0xa0] sm:$0xff] %v653
        %686 = vst [vmem:[%s273 + $0xa8] sm:$0xff] %v654
        %687 = vst [vmem:[%s273 + $0xb0] sm:$0xff] %v655
        %688 = vst [vmem:[%s273 + $0xb8] sm:$0xff] %v656
        %689 = vst [vmem:[%s273 + $0xc0] sm:$0xff] %v657
        %690 = vst [vmem:[%s273 + $0xc8] sm:$0xff] %v658
        %691 = vst [vmem:[%s273 + $0xd0] sm:$0xff] %v659
        %692 = vst [vmem:[%s273 + $0xd8] sm:$0xff] %v660
        %693 = vst [vmem:[%s273 + $0xe0] sm:$0xff] %v661
        %694 = vst [vmem:[%s273 + $0xe8] sm:$0xff] %v662
        %695 = vst [vmem:[%s273 + $0xf0] sm:$0xff] %v663
        %696 = vst [vmem:[%s273 + $0xf8] sm:$0xff] %v664
        %s697 = sand.u32 %s148, 1
        %s698 = scalar_lea.sflag [#allocation4], %s697
        %s699 = sand.u32 %s148, 1
        %s700 = smul.addr %s699, 256
        %s701 = scalar_lea.vmem [#allocation7], %s700
        // Predicated region
        $region45: #{tpu_custom_call.1} parent=35 // pred_check
          %p702 = pneg %p158
        $region46: #{tpu_custom_call.1} parent=35 // pred_check_branch
          %704 = sbr.rel (%p702) target = $region48
        $region47: #{tpu_custom_call.1} parent=35 // pred_region
          %s705 = smul.u32 32, %s26
          %s707 = ssub.s32 4096, 4096
          %708 = vsyncadd %s698, %s707
          %s709 = sadd.s32 %s27, %s705
          %s710 = smul.addr %s709, 128
          %s711 = scalar_lea.hbm %s4, %s710
          %s712 = sshll.u32 %s701, 4
          %s713 = int_to_ptr.vmem [resolvable:$true] %s712
          %718 = dma.vmem_to_hbm [thread:$0]  %s713, 4096, %s711, %s698, 128, 128, 8
        $region48: #{tpu_custom_call.1} parent=35 // pred_fallthru
          _
      $region36: #{tpu_custom_call.1} parent=5 // pred_fallthru
        _
      %p719 = scmp.le.s32.totalorder 2, %s17
      // Predicated region
      $region49: #{tpu_custom_call.1} parent=5 // pred_check
        %p720 = pneg %p719
      $region50: #{tpu_custom_call.1} parent=5 // pred_check_branch
        %722 = sbr.rel (%p720) target = $region52
      $region51: #{tpu_custom_call.1} parent=5 // pred_region
        %s723 = ssub.s32 %s17, 2
        // Predicated region
        $region53: #{tpu_custom_call.1} parent=51 // pred_check
          %p724 = pneg %p164
        $region54: #{tpu_custom_call.1} parent=51 // pred_check_branch
          %726 = sbr.rel (%p724) target = $region56
        $region55: #{tpu_custom_call.1} parent=51 // pred_region
          %s727 = sand.u32 %s149, 1
          %s728 = scalar_lea.sflag [#allocation4], %s727
          %s729 = sand.u32 %s149, 1
          %s730 = smul.addr %s729, 256
          %s731 = scalar_lea.vmem [#allocation7], %s730
          %732 = dma.done %s728, 4096
        $region56: #{tpu_custom_call.1} parent=51 // pred_fallthru
          _
      $region52: #{tpu_custom_call.1} parent=5 // pred_fallthru
        _
    $region6: #{tpu_custom_call.1} parent=1 // loop_footer
      %s21 = sadd.s32 1, %s17
    $region7: #{tpu_custom_call.1} parent=1 // loop_footer_branch
      %16 = sbr.rel target = $region3
    $region8: #{tpu_custom_call.1} parent=1 // loop_exit
      _
    %733 = vsyncpa [#allocation3], 1
    %s734 = scalar_lea.sflag [#allocation3], 1
    %735 = vsyncpa %s734, 1
    %736 = vsyncpa [#allocation6], 1
    %737 = vsyncpa [#allocation4], 1
    %s738 = scalar_lea.sflag [#allocation4], 1
    %739 = vsyncpa %s738, 1

</llo_original>
